<compile_context>
chip_gen: v6e
topology: v6e:2x2x1
jax: 0.10.0
libtpu: 0.0.40
codegen_flags: <defaults>
</compile_context>

<pallas_src>
import functools

import jax
import jax.numpy as jnp
from jax.experimental import pallas as pl
from jax.experimental.pallas import tpu as pltpu


def _round_up(x, m):
    return ((x + m - 1) // m) * m


# ----------------------------------------------------------------------------
# Pallas kernel 1: single-K-step GEMM + bias + optional ReLU
#   (used by the three conv layers; grid is ("parallel","parallel") over M, N)
# ----------------------------------------------------------------------------
def _gemm_bias_act_kernel(x_ref, w_ref, b_ref, o_ref, *, apply_relu):
    acc = jnp.dot(x_ref[...], w_ref[...], preferred_element_type=jnp.float32)
    acc = acc + b_ref[...]
    if apply_relu:
        acc = jnp.maximum(acc, 0.0)
    o_ref[...] = acc.astype(o_ref.dtype)


def gemm_bias_act(x, w, b, *, relu, out_dtype=None, tm_max=256):
    """y = act(x @ w + b); x:(M,K) bf16, w:(K,N) bf16, b:(N,) f32.

    Pads M internally (multiple of 16, or of tm_max when M-tiled) and slices
    the padded rows back off, so the caller sees exactly (M, N).
    """
    M, K = x.shape
    K2, N = w.shape
    assert K == K2, (K, K2)

    # N tile: whole-N for N <= 256 (single step, fills a 256-wide MXU),
    # else lane-dense 128-wide tiles.
    if N <= 256:
        tn = N
    else:
        assert N % 128 == 0, N
        tn = 128
    grid_n = N // tn

    # M tile: pad to 16 rows (bf16 sublane packing); tile with tm_max when
    # the problem is large enough to benefit.
    if M > tm_max:
        Mp = _round_up(M, tm_max)
        tm = tm_max
    else:
        Mp = _round_up(M, 16)
        tm = Mp
    if Mp != M:
        x = jnp.pad(x, ((0, Mp - M), (0, 0)))
    grid_m = Mp // tm

    kernel = functools.partial(_gemm_bias_act_kernel, apply_relu=relu)
    y = pl.pallas_call(
        kernel,
        out_shape=jax.ShapeDtypeStruct((Mp, N), out_dtype or x.dtype),
        grid_spec=pltpu.PrefetchScalarGridSpec(
            num_scalar_prefetch=0,
            grid=(grid_m, grid_n),
            in_specs=[
                pl.BlockSpec((tm, K), lambda i, j: (i, 0)),
                pl.BlockSpec((K, tn), lambda i, j: (0, j)),
                pl.BlockSpec((1, tn), lambda i, j: (0, j)),
            ],
            out_specs=pl.BlockSpec((tm, tn), lambda i, j: (i, j)),
        ),
        compiler_params=pltpu.CompilerParams(
            dimension_semantics=("parallel", "parallel"),
        ),
    )(x, w, b.reshape(1, N))
    return y[:M] if Mp != M else y


# ----------------------------------------------------------------------------
# Pallas kernel 2: fused classifier
#   fc1 (K-tiled, N1 split across a "parallel" axis) + ReLU + partial fc2.
#   Output is one (Bp, 128) partial per N1 tile; the wrapper sums them.
# ----------------------------------------------------------------------------
def _fc_fused_kernel(x_ref, w1_ref, b1_ref, w2_ref, o_ref, acc_ref):
    k = pl.program_id(1)

    @pl.when(k == 0)
    def _():
        # Fold this N1-tile's fc1 bias into the accumulator init.
        acc_ref[...] = jnp.zeros_like(acc_ref) + b1_ref[...]

    acc_ref[...] += jnp.dot(
        x_ref[...], w1_ref[...], preferred_element_type=jnp.float32
    )

    @pl.when(k == pl.num_programs(1) - 1)
    def _():
        h = jnp.maximum(acc_ref[...], 0.0)
        # TODO(synk): Dropout is identity here (eval mode).
        h = h.astype(w2_ref.dtype)
        out = jnp.dot(h, w2_ref[...], preferred_element_type=jnp.float32)
        o_ref[...] = out.astype(o_ref.dtype)


def fc_fused(x, w1, b1, w2, *, tk=1280, n1_tiles=2):
    """partials[j] = relu(x @ w1[:, j-th 512] + b1[j]) @ w2[j-th 512, :].

    x:(Bp,K) bf16, w1:(K,N1) bf16, b1:(N1,) f32, w2:(N1,N2) bf16 (N2 lane-
    dense, zero-padded).  Returns (n1_tiles, Bp, N2) f32; sum over axis 0 and
    add the fc2 bias outside.
    """
    Bp, K = x.shape
    K1, N1 = w1.shape
    N1b, N2 = w2.shape
    assert K == K1 and N1 == N1b
    assert K % tk == 0 and tk % 128 == 0, (K, tk)
    assert N1 % n1_tiles == 0 and (N1 // n1_tiles) % 128 == 0
    tn1 = N1 // n1_tiles
    nk = K // tk

    flops = 2 * Bp * K * N1 + 2 * Bp * N1 * N2
    bytes_accessed = (
        Bp * K * 2            # x (bf16)
        + K * N1 * 2          # w1 (bf16) — dominant stream
        + N1 * 4              # b1 (f32)
        + N1 * N2 * 2         # w2 (bf16)
        + n1_tiles * Bp * N2 * 4  # partial outputs (f32)
    )

    return pl.pallas_call(
        _fc_fused_kernel,
        out_shape=jax.ShapeDtypeStruct((n1_tiles, Bp, N2), jnp.float32),
        grid_spec=pltpu.PrefetchScalarGridSpec(
            num_scalar_prefetch=0,
            grid=(n1_tiles, nk),
            in_specs=[
                pl.BlockSpec((Bp, tk), lambda j, k: (0, k)),
                pl.BlockSpec((tk, tn1), lambda j, k: (k, j)),
                pl.BlockSpec((1, tn1), lambda j, k: (0, j)),
                pl.BlockSpec((tn1, N2), lambda j, k: (j, 0)),
            ],
            out_specs=pl.BlockSpec((None, Bp, N2), lambda j, k: (j, 0, 0)),
            scratch_shapes=[pltpu.VMEM((Bp, tn1), jnp.float32)],
        ),
        compiler_params=pltpu.CompilerParams(
            dimension_semantics=("parallel", "arbitrary"),
        ),
        cost_estimate=pl.CostEstimate(
            flops=flops, transcendentals=0, bytes_accessed=bytes_accessed
        ),
    )(x, w1, b1.reshape(1, N1), w2)


# ----------------------------------------------------------------------------
# im2col glue in NHWC (pad + strided slices + channel concat; no transposes)
# ----------------------------------------------------------------------------
def im2col_nhwc(x, ksize, stride, padding):
    """x: (N, H, W, C) -> patches (N*Ho*Wo, ksize*ksize*C), Ho, Wo.

    K-dim ordering is (kh, kw, Cin), matching the offline weight reshape.
    """
    n, h, w, c = x.shape
    if padding > 0:
        x = jnp.pad(x, ((0, 0), (padding, padding), (padding, padding), (0, 0)))
    hp, wp = h + 2 * padding, w + 2 * padding
    ho = (hp - ksize) // stride + 1
    wo = (wp - ksize) // stride + 1
    cols = []
    for i in range(ksize):
        for j in range(ksize):
            cols.append(
                x[:, i : i + stride * ho : stride, j : j + stride * wo : stride, :]
            )
    p = jnp.concatenate(cols, axis=-1)                 # (N, Ho, Wo, k*k*C)
    return p.reshape(n * ho * wo, ksize * ksize * c), ho, wo


def conv2d_relu_nhwc(x, w2d, b, *, ksize, stride, padding):
    """Conv2d+ReLU in NHWC. x:(N,H,W,C) bf16, w2d:(kh*kw*Cin,Cout) bf16."""
    n = x.shape[0]
    patches, ho, wo = im2col_nhwc(x, ksize, stride, padding)
    cout = w2d.shape[1]
    y = gemm_bias_act(patches, w2d, b, relu=True, out_dtype=jnp.bfloat16)
    return y.reshape(n, ho, wo, cout)


# ----------------------------------------------------------------------------
# Parameter init (deterministic, synthetic, PyTorch-style layouts)
# ----------------------------------------------------------------------------
def init_params(key):
    keys = jax.random.split(key, 10)

    def u(k, shape, fan_in):
        bound = 1.0 / jnp.sqrt(fan_in)
        return jax.random.uniform(k, shape, jnp.float32, -bound, bound)

    return {
        "conv1_w": u(keys[0], (64, 1, 3, 3), 1 * 9),
        "conv1_b": u(keys[1], (64,), 1 * 9),
        "conv2_w": u(keys[2], (128, 64, 3, 3), 64 * 9),
        "conv2_b": u(keys[3], (128,), 64 * 9),
        "conv3_w": u(keys[4], (256, 128, 3, 3), 128 * 9),
        "conv3_b": u(keys[5], (256,), 128 * 9),
        "fc1_w": u(keys[6], (256 * 5 * 5, 1024), 256 * 5 * 5),  # NCHW-flatten row order
        "fc1_b": u(keys[7], (1024,), 256 * 5 * 5),
        "fc2_w": u(keys[8], (1024, 10), 1024),
        "fc2_b": u(keys[9], (10,), 1024),
    }


def prepare_params(params):
    """One-time offline prep: bf16 weights, kernel-friendly layouts, padding."""

    def conv_w(w, cin_pad=None, cout_pad=None):
        # (Cout, Cin, kh, kw) -> (kh*kw*Cin', Cout') bf16, with optional
        # zero padding of Cin / Cout for lane-dense layouts.
        cout, cin, kh, kw = w.shape
        w = jnp.transpose(w, (2, 3, 1, 0))              # (kh, kw, Cin, Cout)
        if cin_pad is not None and cin_pad > cin:
            w = jnp.pad(w, ((0, 0), (0, 0), (0, cin_pad - cin), (0, 0)))
            cin = cin_pad
        if cout_pad is not None and cout_pad > cout:
            w = jnp.pad(w, ((0, 0), (0, 0), (0, 0), (0, cout_pad - cout)))
            cout = cout_pad
        return w.reshape(kh * kw * cin, cout).astype(jnp.bfloat16)

    # conv1: pad Cout 64 -> 128 for a lane-dense output (no masked stores).
    # conv2: pad Cin 64 -> 128 so conv1's zero channels hit zero weight rows.
    conv1_w = conv_w(params["conv1_w"], cout_pad=128)
    conv1_b = jnp.pad(params["conv1_b"], ((0, 128 - 64),)).astype(jnp.float32)
    conv2_w = conv_w(params["conv2_w"], cin_pad=128)
    conv2_b = params["conv2_b"].astype(jnp.float32)
    conv3_w = conv_w(params["conv3_w"])
    conv3_b = params["conv3_b"].astype(jnp.float32)

    # Permute fc1 rows: PyTorch NCHW flatten (c*25 + h*5 + w) -> NHWC flatten
    # (h*5*256 + w*256 + c) used internally.
    c, h, w = 256, 5, 5
    fc1_w = (
        params["fc1_w"]
        .reshape(c, h, w, 1024)
        .transpose(1, 2, 0, 3)
        .reshape(c * h * w, 1024)
        .astype(jnp.bfloat16)
    )
    # Pad fc2 to a lane-dense N=128 output (zeros in the padded columns);
    # the fc2 bias is added outside the kernel after slicing to 10 logits.
    fc2_w = jnp.pad(params["fc2_w"], ((0, 0), (0, 128 - 10))).astype(jnp.bfloat16)

    return {
        "conv1_w": conv1_w,
        "conv1_b": conv1_b,
        "conv2_w": conv2_w,
        "conv2_b": conv2_b,
        "conv3_w": conv3_w,
        "conv3_b": conv3_b,
        "fc1_w": fc1_w,
        "fc1_b": params["fc1_b"].astype(jnp.float32),
        "fc2_w": fc2_w,
        "fc2_b": params["fc2_b"].astype(jnp.float32),
    }


# ----------------------------------------------------------------------------
# Full forward (matches PyTorch CNN.forward, eval mode)
# ----------------------------------------------------------------------------
@jax.jit
def cnn_forward(prepared, x):
    # x: (B, 1, 28, 28) f32 (NCHW, PyTorch layout). Convert once to NHWC bf16.
    b = x.shape[0]
    x = jnp.transpose(x, (0, 2, 3, 1)).astype(jnp.bfloat16)

    x = conv2d_relu_nhwc(x, prepared["conv1_w"], prepared["conv1_b"],
                         ksize=3, stride=2, padding=1)   # (B,14,14,128) 64 real + 64 zero
    x = conv2d_relu_nhwc(x, prepared["conv2_w"], prepared["conv2_b"],
                         ksize=3, stride=2, padding=1)   # (B,7,7,128)
    x = conv2d_relu_nhwc(x, prepared["conv3_w"], prepared["conv3_b"],
                         ksize=3, stride=1, padding=0)   # (B,5,5,256)

    feats = x.reshape(b, 256 * 5 * 5)                    # NHWC flatten (fc1_w permuted)
    bp = _round_up(b, 16)
    if bp != b:
        feats = jnp.pad(feats, ((0, bp - b), (0, 0)))

    partials = fc_fused(feats, prepared["fc1_w"], prepared["fc1_b"],
                        prepared["fc2_w"], tk=1280, n1_tiles=2)
    logits = partials.sum(axis=0)[:b, :10] + prepared["fc2_b"]
    return logits


if __name__ == "__main__":
    key = jax.random.PRNGKey(0)
    pkey, xkey = jax.random.split(key)
    params = init_params(pkey)
    prepared = prepare_params(params)

    # FMNIST-like input: batch=2, 1 channel, 28x28 (required by 256*5*5 flatten)
    x = jax.random.normal(xkey, (2, 1, 28, 28), dtype=jnp.float32)

    out = cnn_forward(prepared, x)
    jax.block_until_ready(out)
    assert out.shape == (2, 10) and out.dtype == jnp.float32
    print("KERNEL_OK")
</pallas_src>

<mosaic_0001>
module attributes {stable_mosaic.version = 11 : i64} {
  func.func @_gemm_bias_act_kernel(%arg0: i32, %arg1: i32, %arg2: memref<256x9xbf16, #tpu.memory_space<vmem>>, %arg3: memref<9x128xbf16, #tpu.memory_space<vmem>>, %arg4: memref<1x128xf32, #tpu.memory_space<vmem>>, %arg5: memref<256x128xbf16, #tpu.memory_space<vmem>>) attributes {dimension_semantics = [#tpu.dimension_semantics<parallel>, #tpu.dimension_semantics<parallel>], iteration_bounds = array<i64: 2, 1>, scalar_prefetch = 0 : i64, scratch_operands = 0 : i64, tpu.core_type = #tpu.core_type<tc>, window_params = [{transform_indices = @transform_0, window_bounds = array<i64: 256, 9>}, {transform_indices = @transform_1, window_bounds = array<i64: 9, 128>}, {transform_indices = @transform_2, window_bounds = array<i64: 1, 128>}, {transform_indices = @transform_3, window_bounds = array<i64: 256, 128>}]} {
    %c0 = arith.constant 0 : index
    %c0_0 = arith.constant 0 : index
    %0 = vector.load %arg2[%c0, %c0_0] : memref<256x9xbf16, #tpu.memory_space<vmem>>, vector<256x9xbf16>
    %c0_1 = arith.constant 0 : index
    %c0_2 = arith.constant 0 : index
    %1 = vector.load %arg3[%c0_1, %c0_2] : memref<9x128xbf16, #tpu.memory_space<vmem>>, vector<9x128xbf16>
    %cst = arith.constant dense<0.000000e+00> : vector<256x128xf32>
    %2 = tpu.matmul %0, %1, %cst {dimension_numbers = #tpu.dot_dimension_numbers<[1], [0], [0], [1], [0, 0, 1, 1], [], []>} : vector<256x9xbf16>, vector<9x128xbf16>, vector<256x128xf32> -> vector<256x128xf32>
    %c0_3 = arith.constant 0 : index
    %c0_4 = arith.constant 0 : index
    %3 = vector.load %arg4[%c0_3, %c0_4] : memref<1x128xf32, #tpu.memory_space<vmem>>, vector<1x128xf32>
    %4 = vector.broadcast %3 : vector<1x128xf32> to vector<256x128xf32>
    %5 = arith.addf %2, %4 : vector<256x128xf32>
    %cst_5 = arith.constant 0.000000e+00 : f32
    %6 = vector.broadcast %cst_5 : f32 to vector<256x128xf32>
    %7 = arith.maximumf %5, %6 : vector<256x128xf32>
    %8 = arith.truncf %7 : vector<256x128xf32> to vector<256x128xbf16>
    %c0_6 = arith.constant 0 : index
    %c0_7 = arith.constant 0 : index
    %9 = vector.load %arg5[%c0_6, %c0_7] : memref<256x128xbf16, #tpu.memory_space<vmem>>, vector<256x128xbf16>
    tpu.vector_store %arg5[%c0_6, %c0_7], %8 {strides = array<i32>} : memref<256x128xbf16, #tpu.memory_space<vmem>>, vector<256x128xbf16>,
    return
  }
  func.func @transform_0(%arg0: i32, %arg1: i32) -> (i32, i32) {
    %c0_i32 = arith.constant 0 : i32
    %c0_i32_0 = arith.constant 0 : i32
    return %arg0, %c0_i32 : i32, i32
  }
  func.func @transform_1(%arg0: i32, %arg1: i32) -> (i32, i32) {
    %c0_i32 = arith.constant 0 : i32
    %c0_i32_0 = arith.constant 0 : i32
    return %c0_i32, %arg1 : i32, i32
  }
  func.func @transform_2(%arg0: i32, %arg1: i32) -> (i32, i32) {
    %c0_i32 = arith.constant 0 : i32
    %c0_i32_0 = arith.constant 0 : i32
    return %c0_i32, %arg1 : i32, i32
  }
  func.func @transform_3(%arg0: i32, %arg1: i32) -> (i32, i32) {
    %c0_i32 = arith.constant 0 : i32
    return %arg0, %arg1 : i32, i32
  }
}

module attributes {stable_mosaic.version = 11 : i64} {
  func.func @_gemm_bias_act_kernel(%arg0: i32, %arg1: i32, %arg2: memref<112x1152xbf16, #tpu.memory_space<vmem>>, %arg3: memref<1152x128xbf16, #tpu.memory_space<vmem>>, %arg4: memref<1x128xf32, #tpu.memory_space<vmem>>, %arg5: memref<112x128xbf16, #tpu.memory_space<vmem>>) attributes {dimension_semantics = [#tpu.dimension_semantics<parallel>, #tpu.dimension_semantics<parallel>], iteration_bounds = array<i64: 1, 1>, scalar_prefetch = 0 : i64, scratch_operands = 0 : i64, tpu.core_type = #tpu.core_type<tc>, window_params = [{transform_indices = @transform_0, window_bounds = array<i64: 112, 1152>}, {transform_indices = @transform_1, window_bounds = array<i64: 1152, 128>}, {transform_indices = @transform_2, window_bounds = array<i64: 1, 128>}, {transform_indices = @transform_3, window_bounds = array<i64: 112, 128>}]} {
    %c0 = arith.constant 0 : index
    %c0_0 = arith.constant 0 : index
    %0 = vector.load %arg2[%c0, %c0_0] : memref<112x1152xbf16, #tpu.memory_space<vmem>>, vector<112x1152xbf16>
    %c0_1 = arith.constant 0 : index
    %c0_2 = arith.constant 0 : index
    %1 = vector.load %arg3[%c0_1, %c0_2] : memref<1152x128xbf16, #tpu.memory_space<vmem>>, vector<1152x128xbf16>
    %cst = arith.constant dense<0.000000e+00> : vector<112x128xf32>
    %2 = tpu.matmul %0, %1, %cst {dimension_numbers = #tpu.dot_dimension_numbers<[1], [0], [0], [1], [0, 0, 1, 1], [], []>} : vector<112x1152xbf16>, vector<1152x128xbf16>, vector<112x128xf32> -> vector<112x128xf32>
    %c0_3 = arith.constant 0 : index
    %c0_4 = arith.constant 0 : index
    %3 = vector.load %arg4[%c0_3, %c0_4] : memref<1x128xf32, #tpu.memory_space<vmem>>, vector<1x128xf32>
    %4 = vector.broadcast %3 : vector<1x128xf32> to vector<112x128xf32>
    %5 = arith.addf %2, %4 : vector<112x128xf32>
    %cst_5 = arith.constant 0.000000e+00 : f32
    %6 = vector.broadcast %cst_5 : f32 to vector<112x128xf32>
    %7 = arith.maximumf %5, %6 : vector<112x128xf32>
    %8 = arith.truncf %7 : vector<112x128xf32> to vector<112x128xbf16>
    %c0_6 = arith.constant 0 : index
    %c0_7 = arith.constant 0 : index
    %9 = vector.load %arg5[%c0_6, %c0_7] : memref<112x128xbf16, #tpu.memory_space<vmem>>, vector<112x128xbf16>
    tpu.vector_store %arg5[%c0_6, %c0_7], %8 {strides = array<i32>} : memref<112x128xbf16, #tpu.memory_space<vmem>>, vector<112x128xbf16>,
    return
  }
  func.func @transform_0(%arg0: i32, %arg1: i32) -> (i32, i32) {
    %c0_i32 = arith.constant 0 : i32
    %c0_i32_0 = arith.constant 0 : i32
    return %arg0, %c0_i32 : i32, i32
  }
  func.func @transform_1(%arg0: i32, %arg1: i32) -> (i32, i32) {
    %c0_i32 = arith.constant 0 : i32
    %c0_i32_0 = arith.constant 0 : i32
    return %c0_i32, %arg1 : i32, i32
  }
  func.func @transform_2(%arg0: i32, %arg1: i32) -> (i32, i32) {
    %c0_i32 = arith.constant 0 : i32
    %c0_i32_0 = arith.constant 0 : i32
    return %c0_i32, %arg1 : i32, i32
  }
  func.func @transform_3(%arg0: i32, %arg1: i32) -> (i32, i32) {
    %c0_i32 = arith.constant 0 : i32
    return %arg0, %arg1 : i32, i32
  }
}

module attributes {stable_mosaic.version = 11 : i64} {
  func.func @_gemm_bias_act_kernel(%arg0: i32, %arg1: i32, %arg2: memref<64x1152xbf16, #tpu.memory_space<vmem>>, %arg3: memref<1152x256xbf16, #tpu.memory_space<vmem>>, %arg4: memref<1x256xf32, #tpu.memory_space<vmem>>, %arg5: memref<64x256xbf16, #tpu.memory_space<vmem>>) attributes {dimension_semantics = [#tpu.dimension_semantics<parallel>, #tpu.dimension_semantics<parallel>], iteration_bounds = array<i64: 1, 1>, scalar_prefetch = 0 : i64, scratch_operands = 0 : i64, tpu.core_type = #tpu.core_type<tc>, window_params = [{transform_indices = @transform_0, window_bounds = array<i64: 64, 1152>}, {transform_indices = @transform_1, window_bounds = array<i64: 1152, 256>}, {transform_indices = @transform_2, window_bounds = array<i64: 1, 256>}, {transform_indices = @transform_3, window_bounds = array<i64: 64, 256>}]} {
    %c0 = arith.constant 0 : index
    %c0_0 = arith.constant 0 : index
    %0 = vector.load %arg2[%c0, %c0_0] : memref<64x1152xbf16, #tpu.memory_space<vmem>>, vector<64x1152xbf16>
    %c0_1 = arith.constant 0 : index
    %c0_2 = arith.constant 0 : index
    %1 = vector.load %arg3[%c0_1, %c0_2] : memref<1152x256xbf16, #tpu.memory_space<vmem>>, vector<1152x256xbf16>
    %cst = arith.constant dense<0.000000e+00> : vector<64x256xf32>
    %2 = tpu.matmul %0, %1, %cst {dimension_numbers = #tpu.dot_dimension_numbers<[1], [0], [0], [1], [0, 0, 1, 1], [], []>} : vector<64x1152xbf16>, vector<1152x256xbf16>, vector<64x256xf32> -> vector<64x256xf32>
    %c0_3 = arith.constant 0 : index
    %c0_4 = arith.constant 0 : index
    %3 = vector.load %arg4[%c0_3, %c0_4] : memref<1x256xf32, #tpu.memory_space<vmem>>, vector<1x256xf32>
    %4 = vector.broadcast %3 : vector<1x256xf32> to vector<64x256xf32>
    %5 = arith.addf %2, %4 : vector<64x256xf32>
    %cst_5 = arith.constant 0.000000e+00 : f32
    %6 = vector.broadcast %cst_5 : f32 to vector<64x256xf32>
    %7 = arith.maximumf %5, %6 : vector<64x256xf32>
    %8 = arith.truncf %7 : vector<64x256xf32> to vector<64x256xbf16>
    %c0_6 = arith.constant 0 : index
    %c0_7 = arith.constant 0 : index
    %9 = vector.load %arg5[%c0_6, %c0_7] : memref<64x256xbf16, #tpu.memory_space<vmem>>, vector<64x256xbf16>
    tpu.vector_store %arg5[%c0_6, %c0_7], %8 {strides = array<i32>} : memref<64x256xbf16, #tpu.memory_space<vmem>>, vector<64x256xbf16>,
    return
  }
  func.func @transform_0(%arg0: i32, %arg1: i32) -> (i32, i32) {
    %c0_i32 = arith.constant 0 : i32
    %c0_i32_0 = arith.constant 0 : i32
    return %arg0, %c0_i32 : i32, i32
  }
  func.func @transform_1(%arg0: i32, %arg1: i32) -> (i32, i32) {
    %c0_i32 = arith.constant 0 : i32
    %c0_i32_0 = arith.constant 0 : i32
    return %c0_i32, %arg1 : i32, i32
  }
  func.func @transform_2(%arg0: i32, %arg1: i32) -> (i32, i32) {
    %c0_i32 = arith.constant 0 : i32
    %c0_i32_0 = arith.constant 0 : i32
    return %c0_i32, %arg1 : i32, i32
  }
  func.func @transform_3(%arg0: i32, %arg1: i32) -> (i32, i32) {
    %c0_i32 = arith.constant 0 : i32
    return %arg0, %arg1 : i32, i32
  }
}

module attributes {stable_mosaic.version = 11 : i64} {
  func.func @_fc_fused_kernel(%arg0: i32, %arg1: i32, %arg2: memref<16x1280xbf16, #tpu.memory_space<vmem>>, %arg3: memref<1280x512xbf16, #tpu.memory_space<vmem>>, %arg4: memref<1x512xf32, #tpu.memory_space<vmem>>, %arg5: memref<512x128xbf16, #tpu.memory_space<vmem>>, %arg6: memref<1x16x128xf32, #tpu.memory_space<vmem>>, %arg7: memref<16x512xf32, #tpu.memory_space<vmem>>) attributes {dimension_semantics = [#tpu.dimension_semantics<parallel>, #tpu.dimension_semantics<arbitrary>], iteration_bounds = array<i64: 2, 5>, scalar_prefetch = 0 : i64, scratch_operands = 1 : i64, tpu.core_type = #tpu.core_type<tc>, window_params = [{transform_indices = @transform_0, window_bounds = array<i64: 16, 1280>}, {transform_indices = @transform_1, window_bounds = array<i64: 1280, 512>}, {transform_indices = @transform_2, window_bounds = array<i64: 1, 512>}, {transform_indices = @transform_3, window_bounds = array<i64: 512, 128>}, {transform_indices = @transform_4, window_bounds = array<i64: 1, 16, 128>}]} {
    %c0_i32 = arith.constant 0 : i32
    %0 = arith.cmpi eq, %arg1, %c0_i32 : i32
    %1 = arith.extui %0 : i1 to i32
    %c0_i32_0 = arith.constant 0 : i32
    %2 = arith.cmpi ne, %1, %c0_i32_0 : i32
    scf.if %2 {
      %cst_9 = arith.constant 0.000000e+00 : f32
      %12 = vector.broadcast %cst_9 : f32 to vector<16x512xf32>
      %c0_10 = arith.constant 0 : index
      %c0_11 = arith.constant 0 : index
      %13 = vector.load %arg4[%c0_10, %c0_11] : memref<1x512xf32, #tpu.memory_space<vmem>>, vector<1x512xf32>
      %14 = vector.broadcast %13 : vector<1x512xf32> to vector<16x512xf32>
      %15 = arith.addf %12, %14 : vector<16x512xf32>
      %c0_12 = arith.constant 0 : index
      %c0_13 = arith.constant 0 : index
      %16 = vector.load %arg7[%c0_12, %c0_13] : memref<16x512xf32, #tpu.memory_space<vmem>>, vector<16x512xf32>
      tpu.vector_store %arg7[%c0_12, %c0_13], %15 {strides = array<i32>} : memref<16x512xf32, #tpu.memory_space<vmem>>, vector<16x512xf32>,
    } else {
    }
    %c0 = arith.constant 0 : index
    %c0_1 = arith.constant 0 : index
    %3 = vector.load %arg7[%c0, %c0_1] : memref<16x512xf32, #tpu.memory_space<vmem>>, vector<16x512xf32>
    %c0_2 = arith.constant 0 : index
    %c0_3 = arith.constant 0 : index
    %4 = vector.load %arg2[%c0_2, %c0_3] : memref<16x1280xbf16, #tpu.memory_space<vmem>>, vector<16x1280xbf16>
    %c0_4 = arith.constant 0 : index
    %c0_5 = arith.constant 0 : index
    %5 = vector.load %arg3[%c0_4, %c0_5] : memref<1280x512xbf16, #tpu.memory_space<vmem>>, vector<1280x512xbf16>
    %cst = arith.constant dense<0.000000e+00> : vector<16x512xf32>
    %6 = tpu.matmul %4, %5, %cst {dimension_numbers = #tpu.dot_dimension_numbers<[1], [0], [0], [1], [0, 0, 1, 1], [], []>} : vector<16x1280xbf16>, vector<1280x512xbf16>, vector<16x512xf32> -> vector<16x512xf32>
    %7 = arith.addf %3, %6 : vector<16x512xf32>
    %c0_6 = arith.constant 0 : index
    %c0_7 = arith.constant 0 : index
    %8 = vector.load %arg7[%c0_6, %c0_7] : memref<16x512xf32, #tpu.memory_space<vmem>>, vector<16x512xf32>
    tpu.vector_store %arg7[%c0_6, %c0_7], %7 {strides = array<i32>} : memref<16x512xf32, #tpu.memory_space<vmem>>, vector<16x512xf32>,
    %c4_i32 = arith.constant 4 : i32
    %9 = arith.cmpi eq, %arg1, %c4_i32 : i32
    %10 = arith.extui %9 : i1 to i32
    %c0_i32_8 = arith.constant 0 : i32
    %11 = arith.cmpi ne, %10, %c0_i32_8 : i32
    scf.if %11 {
      %c0_9 = arith.constant 0 : index
      %c0_10 = arith.constant 0 : index
      %12 = vector.load %arg7[%c0_9, %c0_10] : memref<16x512xf32, #tpu.memory_space<vmem>>, vector<16x512xf32>
      %cst_11 = arith.constant 0.000000e+00 : f32
      %13 = vector.broadcast %cst_11 : f32 to vector<16x512xf32>
      %14 = arith.maximumf %12, %13 : vector<16x512xf32>
      %15 = arith.truncf %14 : vector<16x512xf32> to vector<16x512xbf16>
      %c0_12 = arith.constant 0 : index
      %c0_13 = arith.constant 0 : index
      %16 = vector.load %arg5[%c0_12, %c0_13] : memref<512x128xbf16, #tpu.memory_space<vmem>>, vector<512x128xbf16>
      %cst_14 = arith.constant dense<0.000000e+00> : vector<16x128xf32>
      %17 = tpu.matmul %15, %16, %cst_14 {dimension_numbers = #tpu.dot_dimension_numbers<[1], [0], [0], [1], [0, 0, 1, 1], [], []>} : vector<16x512xbf16>, vector<512x128xbf16>, vector<16x128xf32> -> vector<16x128xf32>
      %c0_15 = arith.constant 0 : index
      %c0_16 = arith.constant 0 : index
      %c0_17 = arith.constant 0 : index
      %18 = vector.load %arg6[%c0_15, %c0_16, %c0_17] : memref<1x16x128xf32, #tpu.memory_space<vmem>>, vector<1x16x128xf32>
      %19 = vector.shape_cast %18 : vector<1x16x128xf32> to vector<16x128xf32>
      %20 = vector.shape_cast %17 : vector<16x128xf32> to vector<1x16x128xf32>
      tpu.vector_store %arg6[%c0_15, %c0_16, %c0_17], %20 {strides = array<i32>} : memref<1x16x128xf32, #tpu.memory_space<vmem>>, vector<1x16x128xf32>,
    } else {
    }
    return
  }
  func.func @transform_0(%arg0: i32, %arg1: i32) -> (i32, i32) {
    %c0_i32 = arith.constant 0 : i32
    %c0_i32_0 = arith.constant 0 : i32
    return %c0_i32, %arg1 : i32, i32
  }
  func.func @transform_1(%arg0: i32, %arg1: i32) -> (i32, i32) {
    %c0_i32 = arith.constant 0 : i32
    return %arg1, %arg0 : i32, i32
  }
  func.func @transform_2(%arg0: i32, %arg1: i32) -> (i32, i32) {
    %c0_i32 = arith.constant 0 : i32
    %c0_i32_0 = arith.constant 0 : i32
    return %c0_i32, %arg0 : i32, i32
  }
  func.func @transform_3(%arg0: i32, %arg1: i32) -> (i32, i32) {
    %c0_i32 = arith.constant 0 : i32
    %c0_i32_0 = arith.constant 0 : i32
    return %arg0, %c0_i32 : i32, i32
  }
  func.func @transform_4(%arg0: i32, %arg1: i32) -> (i32, i32, i32) {
    %c0_i32 = arith.constant 0 : i32
    %c0_i32_0 = arith.constant 0 : i32
    %c0_i32_1 = arith.constant 0 : i32
    return %arg0, %c0_i32, %c0_i32_0 : i32, i32, i32
  }
}

</mosaic_0001>

<llo_original>
// kernel: cnn_forward.4
$region0: #{cnn_forward.4}
  #allocation0 [shape = 'u32[]', space=smem, size = 0x4, offset = 0x4, fixed_abs, tag = 'smem constant byte address 0x4 - core index']
  #allocation1 [shape = 'u32[144,128]{1,0:T(1,128)}', space=vmem, size = 0x12000, scoped, tag = 'internal scratch']
  %s0 = inlined_call_operand.vmem [shape: bf16[512,9], index: 0, kind: input, shape index: {}]
  %s1 = inlined_call_operand.hbm [shape: bf16[9,128], index: 1, kind: input, shape index: {}]
  %s2 = inlined_call_operand.hbm [shape: f32[1,128], index: 2, kind: input, shape index: {}]
  %s3 = inlined_call_operand.vmem [shape: bf16[512,128], index: 3, kind: output, shape index: {}]
  %s4 = sld [smem:[#allocation0]]
  $region53: #{cnn_forward.4} parent=0
    _
  %s6 = ssub.s32 1, %s4
  %s7 = scalar_select 0, %s6, %s4
  $region1: #{cnn_forward.4} parent=0
    #allocation2 [shape = 'u8[4096]{0}', space=vmem, size = 0x1000, scoped, tag = 'input window, operand 1, single buffered']
    #allocation3 [shape = 's32[2]{0}', space=sflag, size = 0x8, scoped, tag = 'scoped memory for cnn_forward.4']
    #allocation4 [shape = 'u8[512]{0}', space=vmem, size = 0x400, scoped, tag = 'input window, operand 2, single buffered']
    #allocation5 [shape = 's32[1]{0}', space=sflag, size = 0x4, scoped, tag = 'scoped memory for cnn_forward.4']
    %8 = vsyncpa [#allocation3], 0
    %9 = vsyncpa [#allocation5], 0
    loop: start=0, step=1, limit=4
    $region2: #{cnn_forward.4} parent=1 // loop_pre_header
      _
    $region3: #{cnn_forward.4} parent=1 // loop_header
      %s11 = sphi 0, %s15
      %p12 = scmp.ge.s32.totalorder %s11, 4
      %s18 = sphi 0, %s30
      %s19 = sphi 0, %s26
      %s20 = sphi 0, %s18
      %s21 = sphi 0, %s19
      %s22 = sphi 0, %s20
      %s23 = sphi 0, %s21
      %s33 = sphi 0, %s35
      %s36 = sphi 0, %s33
      %s37 = sphi 0, %s36
      %s53 = sphi 0, %s37
      %s59 = sphi 0, %s61
      %s62 = sphi 0, %s59
      %s63 = sphi 0, %s62
      %s79 = sphi 0, %s63
      %s85 = sphi 0, %s87
      %s88 = sphi 0, %s85
      %s89 = sphi 0, %s88
      %s105 = sphi 0, %s89
      %s113 = sphi 0, %s115
      %s116 = sphi 0, %s113
      %s117 = sphi 0, %s116
      %s133 = sphi 0, %s117
    $region4: #{cnn_forward.4} parent=1 // loop_header_branch
      %14 = sbr.rel (%p12) target = $region8
    $region5: #{cnn_forward.4} parent=1 // loop_body
      %s16 = ssub.s32 %s11, 1
      %s17 = ssub.s32 %s11, 2
      %s24 = sadd.s32 1, %s19
      %p25 = scmp.ge.s32.totalorder %s24, 1
      %s26 = scalar_select %p25, 0, %s24
      %s27 = sadd.s32 1, %s18
      %s28 = scalar_select %p25, %s27, %s18
      %p29 = scmp.ge.s32.totalorder %s28, 2
      %s30 = scalar_select %p29, 0, %s28
      %s31 = ssub.s32 %s18, %s30
      %p32 = scmp.eq.s32.totalorder %s31, 0
      %s34 = sadd.s32 %s33, 1
      %s35 = scalar_select %p32, %s33, %s34
      %p38 = pneg %p32
      %p39 = scmp.eq.s32.totalorder %s11, 1
      %p40 = por %p38, %p39
      %p41 = scmp.ne.s32.totalorder %s33, %s36
      %p42 = scmp.eq.s32.totalorder %s11, 0
      %p43 = por %p41, %p42
      %p44 = scmp.ne.s32.totalorder %s33, %s36
      %p45 = scmp.eq.s32.totalorder %s16, 1
      %p46 = por %p44, %p45
      %p47 = scmp.ne.s32.totalorder %s36, %s37
      %p48 = scmp.eq.s32.totalorder %s16, 0
      %p49 = por %p47, %p48
      %p50 = scmp.ne.s32.totalorder %s36, %s37
      %p51 = scmp.eq.s32.totalorder %s17, 1
      %p52 = por %p50, %p51
      %p54 = scmp.ne.s32.totalorder %s37, %s53
      %p55 = scmp.eq.s32.totalorder %s17, 0
      %p56 = por %p54, %p55
      %s57 = ssub.s32 %s19, %s26
      %p58 = scmp.eq.s32.totalorder %s57, 0
      %s60 = sadd.s32 %s59, 1
      %s61 = scalar_select %p58, %s59, %s60
      %p64 = pneg %p58
      %p65 = scmp.eq.s32.totalorder %s11, 1
      %p66 = por %p64, %p65
      %p67 = scmp.ne.s32.totalorder %s59, %s62
      %p68 = scmp.eq.s32.totalorder %s11, 0
      %p69 = por %p67, %p68
      %p70 = scmp.ne.s32.totalorder %s59, %s62
      %p71 = scmp.eq.s32.totalorder %s16, 1
      %p72 = por %p70, %p71
      %p73 = scmp.ne.s32.totalorder %s62, %s63
      %p74 = scmp.eq.s32.totalorder %s16, 0
      %p75 = por %p73, %p74
      %p76 = scmp.ne.s32.totalorder %s62, %s63
      %p77 = scmp.eq.s32.totalorder %s17, 1
      %p78 = por %p76, %p77
      %p80 = scmp.ne.s32.totalorder %s63, %s79
      %p81 = scmp.eq.s32.totalorder %s17, 0
      %p82 = por %p80, %p81
      %s83 = ssub.s32 %s19, %s26
      %p84 = scmp.eq.s32.totalorder %s83, 0
      %s86 = sadd.s32 %s85, 1
      %s87 = scalar_select %p84, %s85, %s86
      %p90 = pneg %p84
      %p91 = scmp.eq.s32.totalorder %s11, 1
      %p92 = por %p90, %p91
      %p93 = scmp.ne.s32.totalorder %s85, %s88
      %p94 = scmp.eq.s32.totalorder %s11, 0
      %p95 = por %p93, %p94
      %p96 = scmp.ne.s32.totalorder %s85, %s88
      %p97 = scmp.eq.s32.totalorder %s16, 1
      %p98 = por %p96, %p97
      %p99 = scmp.ne.s32.totalorder %s88, %s89
      %p100 = scmp.eq.s32.totalorder %s16, 0
      %p101 = por %p99, %p100
      %p102 = scmp.ne.s32.totalorder %s88, %s89
      %p103 = scmp.eq.s32.totalorder %s17, 1
      %p104 = por %p102, %p103
      %p106 = scmp.ne.s32.totalorder %s89, %s105
      %p107 = scmp.eq.s32.totalorder %s17, 0
      %p108 = por %p106, %p107
      %s109 = ssub.s32 %s18, %s30
      %s110 = ssub.s32 %s19, %s26
      %s111 = sor.u32 %s109, %s110
      %p112 = scmp.eq.s32.totalorder %s111, 0
      %s114 = sadd.s32 %s113, 1
      %s115 = scalar_select %p112, %s113, %s114
      %p118 = pneg %p112
      %p119 = scmp.eq.s32.totalorder %s11, 1
      %p120 = por %p118, %p119
      %p121 = scmp.ne.s32.totalorder %s113, %s116
      %p122 = scmp.eq.s32.totalorder %s11, 0
      %p123 = por %p121, %p122
      %p124 = scmp.ne.s32.totalorder %s113, %s116
      %p125 = scmp.eq.s32.totalorder %s16, 1
      %p126 = por %p124, %p125
      %p127 = scmp.ne.s32.totalorder %s116, %s117
      %p128 = scmp.eq.s32.totalorder %s16, 0
      %p129 = por %p127, %p128
      %p130 = scmp.ne.s32.totalorder %s116, %s117
      %p131 = scmp.eq.s32.totalorder %s17, 1
      %p132 = por %p130, %p131
      %p134 = scmp.ne.s32.totalorder %s117, %s133
      %p135 = scmp.eq.s32.totalorder %s17, 0
      %p136 = por %p134, %p135
      %p137 = scmp.le.s32.totalorder 1, %s11
      %p138 = scmp.lt.s32.totalorder %s11, 3
      %p139 = pnand %p137, %p138
      %p140 = pneg %p139
      // Predicated region
      $region9: #{cnn_forward.4} parent=5 // pred_check
        _
      $region10: #{cnn_forward.4} parent=5 // pred_check_branch
        %142 = sbr.rel (%p139) target = $region12
      $region11: #{cnn_forward.4} parent=5 // pred_region
        %s143 = ssub.s32 %s11, 1
        // Predicated region
        $region13: #{cnn_forward.4} parent=11 // pred_check
          %p144 = pneg %p75
        $region14: #{cnn_forward.4} parent=11 // pred_check_branch
          %146 = sbr.rel (%p144) target = $region16
        $region15: #{cnn_forward.4} parent=11 // pred_region
          %s148 = ssub.s32 128, 128
          %149 = vsyncadd [#allocation3], %s148
          %s150 = smul.addr %s21, 64
          %s151 = scalar_lea.hbm %s1, %s150
          %s152 = sshll.u32 [#allocation2], 4
          %s153 = int_to_ptr.vmem [resolvable:$true] %s152
          %158 = dma.hbm_to_vmem [thread:$0]  %s151, 128, %s153, [#allocation3], 64, 64, 4
        $region16: #{cnn_forward.4} parent=11 // pred_fallthru
          _
        // Predicated region
        $region17: #{cnn_forward.4} parent=11 // pred_check
          %p159 = pneg %p101
        $region18: #{cnn_forward.4} parent=11 // pred_check_branch
          %161 = sbr.rel (%p159) target = $region20
        $region19: #{cnn_forward.4} parent=11 // pred_region
          %s163 = ssub.s32 16, 16
          %164 = vsyncadd [#allocation5], %s163
          %s165 = smul.addr %s21, 16
          %s166 = scalar_lea.hbm %s2, %s165
          %s168 = sshll.u32 [#allocation4], 4
          %s169 = int_to_ptr.vmem [resolvable:$true] %s168
          %171 = dma.hbm_to_vmem [thread:$0]  %s166, 16, %s169, [#allocation5]
        $region20: #{cnn_forward.4} parent=11 // pred_fallthru
          _
      $region12: #{cnn_forward.4} parent=5 // pred_fallthru
        _
      %p172 = scmp.lt.s32.totalorder %s11, 2
      // Predicated region
      $region21: #{cnn_forward.4} parent=5 // pred_check
        %p173 = pneg %p172
      $region22: #{cnn_forward.4} parent=5 // pred_check_branch
        %175 = sbr.rel (%p173) target = $region24
      $region23: #{cnn_forward.4} parent=5 // pred_region
        // Predicated region
        $region25: #{cnn_forward.4} parent=23 // pred_check
          %p176 = pneg %p43
        $region26: #{cnn_forward.4} parent=23 // pred_check_branch
          %178 = sbr.rel (%p176) target = $region28
        $region27: #{cnn_forward.4} parent=23 // pred_region
          %s179 = smul.u32 32, %s18
          %p180 = scmp.lt.s32.totalorder %s179, 63
          %s181 = scalar_select %p180, %s179, 63
          %s182 = smul.addr %s181, 4
          %s183 = scalar_lea.vmem %s0, %s182
          %s184 = smul.u32 32, %s18
        $region28: #{cnn_forward.4} parent=23 // pred_fallthru
          _
      $region24: #{cnn_forward.4} parent=5 // pred_fallthru
        _
      %p185 = scmp.le.s32.totalorder 1, %s11
      %p186 = scmp.lt.s32.totalorder %s11, 3
      %p187 = pnand %p185, %p186
      %p188 = pneg %p187
      // Predicated region
      $region29: #{cnn_forward.4} parent=5 // pred_check
        _
      $region30: #{cnn_forward.4} parent=5 // pred_check_branch
        %190 = sbr.rel (%p187) target = $region32
      $region31: #{cnn_forward.4} parent=5 // pred_region
        %s191 = ssub.s32 %s11, 1
        // Predicated region
        $region33: #{cnn_forward.4} parent=31 // pred_check
          %p192 = pneg %p75
        $region34: #{cnn_forward.4} parent=31 // pred_check_branch
          %194 = sbr.rel (%p192) target = $region36
        $region35: #{cnn_forward.4} parent=31 // pred_region
          %195 = dma.done [#allocation3], 128
        $region36: #{cnn_forward.4} parent=31 // pred_fallthru
          _
        // Predicated region
        $region37: #{cnn_forward.4} parent=31 // pred_check
          %p196 = pneg %p101
        $region38: #{cnn_forward.4} parent=31 // pred_check_branch
          %198 = sbr.rel (%p196) target = $region40
        $region39: #{cnn_forward.4} parent=31 // pred_region
          %199 = dma.done [#allocation5], 16
        $region40: #{cnn_forward.4} parent=31 // pred_fallthru
          _
        %s200 = smul.u32 32, %s20
        %p201 = scmp.lt.s32.totalorder %s200, 63
        %s202 = scalar_select %p201, %s200, 63
        %s203 = smul.addr %s202, 4
        %s204 = scalar_lea.vmem %s0, %s203
        %p205 = pneg %p49
        %p206 = pneg %p46
        %p207 = pneg %p75
        %p208 = pneg %p72
        %p209 = pneg %p101
        %p210 = pneg %p98
        %p211 = pneg %p129
        %p212 = pneg %p126
        %s213 = smul.u32 32, %s20
        %p214 = scmp.lt.s32.totalorder %s213, 63
        %s215 = scalar_select %p214, %s213, 63
        %p216 = scmp.lt.s32.totalorder %s21, 0
        %s217 = scalar_select %p216, %s21, 0
        %s218 = sadd.s32 %s217, %s215
        %s219 = smul.addr %s218, 4
        %s220 = scalar_lea.vmem %s3, %s219
        %s221 = smul.u32 32, %s20
        %p222 = scmp.lt.s32.totalorder %s221, 63
        %s223 = scalar_select %p222, %s221, 63
        %s224 = smul.addr %s223, 4
        %s225 = scalar_lea.vmem %s0, %s224
        %s226 = smul.u32 32, %s20
        %s227 = smul.u32 32, %s20
        %p228 = scmp.lt.s32.totalorder %s227, 63
        %s229 = scalar_select %p228, %s227, 63
        %p230 = scmp.lt.s32.totalorder %s21, 0
        %s231 = scalar_select %p230, %s21, 0
        %s232 = sadd.s32 %s231, %s229
        %s233 = smul.addr %s232, 4
        %s234 = scalar_lea.vmem %s3, %s233
        %s235 = smul.u32 32, %s20
        %v237 = vld [vmem:[%s225] sm:$0xf]
        %v238 = vld [vmem:[%s225 + $0x4] sm:$0xf]
        %v239 = vld [vmem:[%s225 + $0x8] sm:$0xf]
        %v240 = vld [vmem:[%s225 + $0xc] sm:$0xf]
        %v241 = vld [vmem:[%s225 + $0x10] sm:$0xf]
        %v242 = vld [vmem:[%s225 + $0x14] sm:$0xf]
        %v243 = vld [vmem:[%s225 + $0x18] sm:$0xf]
        %v244 = vld [vmem:[%s225 + $0x1c] sm:$0xf]
        %v245 = vld [vmem:[%s225 + $0x20] sm:$0xf]
        %v246 = vld [vmem:[%s225 + $0x24] sm:$0xf]
        %v247 = vld [vmem:[%s225 + $0x28] sm:$0xf]
        %v248 = vld [vmem:[%s225 + $0x2c] sm:$0xf]
        %v249 = vld [vmem:[%s225 + $0x30] sm:$0xf]
        %v250 = vld [vmem:[%s225 + $0x34] sm:$0xf]
        %v251 = vld [vmem:[%s225 + $0x38] sm:$0xf]
        %v252 = vld [vmem:[%s225 + $0x3c] sm:$0xf]
        %v253 = vld [vmem:[%s225 + $0x40] sm:$0xf]
        %v254 = vld [vmem:[%s225 + $0x44] sm:$0xf]
        %v255 = vld [vmem:[%s225 + $0x48] sm:$0xf]
        %v256 = vld [vmem:[%s225 + $0x4c] sm:$0xf]
        %v257 = vld [vmem:[%s225 + $0x50] sm:$0xf]
        %v258 = vld [vmem:[%s225 + $0x54] sm:$0xf]
        %v259 = vld [vmem:[%s225 + $0x58] sm:$0xf]
        %v260 = vld [vmem:[%s225 + $0x5c] sm:$0xf]
        %v261 = vld [vmem:[%s225 + $0x60] sm:$0xf]
        %v262 = vld [vmem:[%s225 + $0x64] sm:$0xf]
        %v263 = vld [vmem:[%s225 + $0x68] sm:$0xf]
        %v264 = vld [vmem:[%s225 + $0x6c] sm:$0xf]
        %v265 = vld [vmem:[%s225 + $0x70] sm:$0xf]
        %v266 = vld [vmem:[%s225 + $0x74] sm:$0xf]
        %v267 = vld [vmem:[%s225 + $0x78] sm:$0xf]
        %v268 = vld [vmem:[%s225 + $0x7c] sm:$0xf]
        %v269 = vld [vmem:[#allocation2] sm:$0xf]
        %v270 = vld [vmem:[#allocation2 + $0x4] sm:$0x1]
        %v271 = vld [vmem:[#allocation4] sm:$0x1]
        %v273 = vlaneseq
        %v274 = vshrl.u32 %v273, 7
        %v275 = vsub.s32 0, %v274
        %v276 = vrot.slane %v271, %v275
        %v310 = vunpack.c.l.b16 %v237
        %v311 = vunpack.c.l.b16 %v238
        %v312 = vunpack.c.l.b16 %v239
        %v313 = vunpack.c.l.b16 %v240
        %v314 = vunpack.c.l.b16 %v241
        %v315 = vunpack.c.l.b16 %v242
        %v316 = vunpack.c.l.b16 %v243
        %v317 = vunpack.c.l.b16 %v244
        %v318 = vunpack.c.l.b16 %v245
        %v319 = vunpack.c.l.b16 %v246
        %v320 = vunpack.c.l.b16 %v247
        %v321 = vunpack.c.l.b16 %v248
        %v322 = vunpack.c.l.b16 %v249
        %v323 = vunpack.c.l.b16 %v250
        %v324 = vunpack.c.l.b16 %v251
        %v325 = vunpack.c.l.b16 %v252
        %v326 = vunpack.c.l.b16 %v253
        %v327 = vunpack.c.l.b16 %v254
        %v328 = vunpack.c.l.b16 %v255
        %v329 = vunpack.c.l.b16 %v256
        %v330 = vunpack.c.l.b16 %v257
        %v331 = vunpack.c.l.b16 %v258
        %v332 = vunpack.c.l.b16 %v259
        %v333 = vunpack.c.l.b16 %v260
        %v334 = vunpack.c.l.b16 %v261
        %v335 = vunpack.c.l.b16 %v262
        %v336 = vunpack.c.l.b16 %v263
        %v337 = vunpack.c.l.b16 %v264
        %v338 = vunpack.c.l.b16 %v265
        %v339 = vunpack.c.l.b16 %v266
        %v340 = vunpack.c.l.b16 %v267
        %v341 = vunpack.c.l.b16 %v268
        %v342 = vpack.c.b16 %v311, %v310
        %v343 = vpack.c.b16 %v313, %v312
        %v344 = vpack.c.b16 %v315, %v314
        %v345 = vpack.c.b16 %v317, %v316
        %v346 = vpack.c.b16 %v319, %v318
        %v347 = vpack.c.b16 %v321, %v320
        %v348 = vpack.c.b16 %v323, %v322
        %v349 = vpack.c.b16 %v325, %v324
        %v350 = vpack.c.b16 %v327, %v326
        %v351 = vpack.c.b16 %v329, %v328
        %v352 = vpack.c.b16 %v331, %v330
        %v353 = vpack.c.b16 %v333, %v332
        %v354 = vpack.c.b16 %v335, %v334
        %v355 = vpack.c.b16 %v337, %v336
        %v356 = vpack.c.b16 %v339, %v338
        %v357 = vpack.c.b16 %v341, %v340
        %v360 = vunpack.c.l.b16 %v269
        %v361 = vunpack.c.l.b16 %v270
        %v362 = vpack.c.b16 %v361, %v360
        %vm363 = vcmask 72704
        %v365 = vsel %vm363, %v342, 0
        %v368 = vsel %vm363, %v343, 0
        %v371 = vsel %vm363, %v344, 0
        %v374 = vsel %vm363, %v345, 0
        %v377 = vsel %vm363, %v346, 0
        %v380 = vsel %vm363, %v347, 0
        %v383 = vsel %vm363, %v348, 0
        %v386 = vsel %vm363, %v349, 0
        %v389 = vsel %vm363, %v350, 0
        %v392 = vsel %vm363, %v351, 0
        %v395 = vsel %vm363, %v352, 0
        %v398 = vsel %vm363, %v353, 0
        %v401 = vsel %vm363, %v354, 0
        %v404 = vsel %vm363, %v355, 0
        %v407 = vsel %vm363, %v356, 0
        %v410 = vsel %vm363, %v357, 0
        %vm412 = vcmask 1043456
        %vm413 = vcmask 1044480
        %v414 = vsel %vm412, 4294967295, 65535
        %v415 = vsel %vm413, %v414, 0
        %v417 = vand.u32 %v362, %v415
        %419 = vmatprep.subr.bf16.mxu0 0
        %420 = vmatpush1.bf16.msra.mxu0 0
        %421 = vmatprep.subr.bf16.mxu0 0
        %422 = vmatpush1.bf16.msra.mxu0 0
        %423 = vmatprep.subr.bf16.mxu0 0
        %424 = vmatpush1.bf16.msra.mxu0 0
        %425 = vmatprep.subr.bf16.mxu0 0
        %426 = vmatpush1.bf16.msra.mxu0 0
        %427 = vmatprep.subr.bf16.mxu0 0
        %428 = vmatpush1.bf16.msra.mxu0 0
        %429 = vmatprep.subr.bf16.mxu0 0
        %430 = vmatpush1.bf16.msra.mxu0 0
        %431 = vmatprep.subr.bf16.mxu0 0
        %432 = vmatpush1.bf16.msra.mxu0 0
        %433 = vmatprep.subr.bf16.mxu0 0
        %434 = vmatpush1.bf16.msra.mxu0 %v417
        %435 = vmatprep.subr.bf16.mxu0 0
        %436 = vmatpush2.bf16.msra.mxu0 0
        %437 = vmatprep.subr.bf16.mxu0 0
        %438 = vmatpush2.bf16.msra.mxu0 0
        %439 = vmatprep.subr.bf16.mxu0 0
        %440 = vmatpush2.bf16.msra.mxu0 0
        %441 = vmatprep.subr.bf16.mxu0 0
        %442 = vmatpush2.bf16.msra.mxu0 0
        %443 = vmatprep.subr.bf16.mxu0 0
        %444 = vmatpush2.bf16.msra.mxu0 0
        %445 = vmatprep.subr.bf16.mxu0 0
        %446 = vmatpush2.bf16.msra.mxu0 0
        %447 = vmatprep.subr.bf16.mxu0 0
        %448 = vmatpush2.bf16.msra.mxu0 0
        %449 = vmatprep.subr.bf16.mxu0 0
        %450 = vmatpush2.bf16.msra.mxu0 0
        %451 = vmatprep.mubr.bf16.mxu0 0
        %452 = vmatmul.mubr.bf16.gmra.mxu0 %v365
        %v453 = vpop.f32.mrf.mxu0
        %v454 = vadd.f32 %v276, %v453
        %v455 = vpop.f32.mrf.mxu0
        %v456 = vpop.f32.mrf.mxu0
        %v457 = vadd.f32 %v276, %v456
        %v458 = vpop.f32.mrf.mxu0
        %459 = vmatprep.mubr.bf16.mxu0 0
        %460 = vmatmul.mubr.bf16.gmra.mxu0 %v368
        %v461 = vpop.f32.mrf.mxu0
        %v462 = vadd.f32 %v276, %v461
        %v463 = vpop.f32.mrf.mxu0
        %v464 = vpop.f32.mrf.mxu0
        %v465 = vadd.f32 %v276, %v464
        %v466 = vpop.f32.mrf.mxu0
        %467 = vmatprep.mubr.bf16.mxu0 0
        %468 = vmatmul.mubr.bf16.gmra.mxu0 %v371
        %v469 = vpop.f32.mrf.mxu0
        %v470 = vadd.f32 %v276, %v469
        %v471 = vpop.f32.mrf.mxu0
        %v472 = vpop.f32.mrf.mxu0
        %v473 = vadd.f32 %v276, %v472
        %v474 = vpop.f32.mrf.mxu0
        %475 = vmatprep.mubr.bf16.mxu0 0
        %476 = vmatmul.mubr.bf16.gmra.mxu0 %v374
        %v477 = vpop.f32.mrf.mxu0
        %v478 = vadd.f32 %v276, %v477
        %v479 = vpop.f32.mrf.mxu0
        %v480 = vpop.f32.mrf.mxu0
        %v481 = vadd.f32 %v276, %v480
        %v482 = vpop.f32.mrf.mxu0
        %483 = vmatprep.mubr.bf16.mxu0 0
        %484 = vmatmul.mubr.bf16.gmra.mxu0 %v377
        %v485 = vpop.f32.mrf.mxu0
        %v486 = vadd.f32 %v276, %v485
        %v487 = vpop.f32.mrf.mxu0
        %v488 = vpop.f32.mrf.mxu0
        %v489 = vadd.f32 %v276, %v488
        %v490 = vpop.f32.mrf.mxu0
        %491 = vmatprep.mubr.bf16.mxu0 0
        %492 = vmatmul.mubr.bf16.gmra.mxu0 %v380
        %v493 = vpop.f32.mrf.mxu0
        %v494 = vadd.f32 %v276, %v493
        %v495 = vpop.f32.mrf.mxu0
        %v496 = vpop.f32.mrf.mxu0
        %v497 = vadd.f32 %v276, %v496
        %v498 = vpop.f32.mrf.mxu0
        %499 = vmatprep.mubr.bf16.mxu0 0
        %500 = vmatmul.mubr.bf16.gmra.mxu0 %v383
        %v501 = vpop.f32.mrf.mxu0
        %v502 = vadd.f32 %v276, %v501
        %v503 = vpop.f32.mrf.mxu0
        %v504 = vpop.f32.mrf.mxu0
        %v505 = vadd.f32 %v276, %v504
        %v506 = vpop.f32.mrf.mxu0
        %507 = vmatprep.mubr.bf16.mxu0 0
        %508 = vmatmul.mubr.bf16.gmra.mxu0 %v386
        %v509 = vpop.f32.mrf.mxu0
        %v510 = vadd.f32 %v276, %v509
        %v511 = vpop.f32.mrf.mxu0
        %v512 = vpop.f32.mrf.mxu0
        %v513 = vadd.f32 %v276, %v512
        %v514 = vpop.f32.mrf.mxu0
        %515 = vmatprep.mubr.bf16.mxu0 0
        %516 = vmatmul.mubr.bf16.gmra.mxu0 %v389
        %v517 = vpop.f32.mrf.mxu0
        %v518 = vadd.f32 %v276, %v517
        %v519 = vpop.f32.mrf.mxu0
        %v520 = vpop.f32.mrf.mxu0
        %v521 = vadd.f32 %v276, %v520
        %v522 = vpop.f32.mrf.mxu0
        %523 = vmatprep.mubr.bf16.mxu0 0
        %524 = vmatmul.mubr.bf16.gmra.mxu0 %v392
        %v525 = vpop.f32.mrf.mxu0
        %v526 = vadd.f32 %v276, %v525
        %v527 = vpop.f32.mrf.mxu0
        %v528 = vpop.f32.mrf.mxu0
        %v529 = vadd.f32 %v276, %v528
        %v530 = vpop.f32.mrf.mxu0
        %531 = vmatprep.mubr.bf16.mxu0 0
        %532 = vmatmul.mubr.bf16.gmra.mxu0 %v395
        %v533 = vpop.f32.mrf.mxu0
        %v534 = vadd.f32 %v276, %v533
        %v535 = vpop.f32.mrf.mxu0
        %v536 = vpop.f32.mrf.mxu0
        %v537 = vadd.f32 %v276, %v536
        %v538 = vpop.f32.mrf.mxu0
        %539 = vmatprep.mubr.bf16.mxu0 0
        %540 = vmatmul.mubr.bf16.gmra.mxu0 %v398
        %v541 = vpop.f32.mrf.mxu0
        %v542 = vadd.f32 %v276, %v541
        %v543 = vpop.f32.mrf.mxu0
        %v544 = vpop.f32.mrf.mxu0
        %v545 = vadd.f32 %v276, %v544
        %v546 = vpop.f32.mrf.mxu0
        %547 = vmatprep.mubr.bf16.mxu0 0
        %548 = vmatmul.mubr.bf16.gmra.mxu0 %v401
        %v549 = vpop.f32.mrf.mxu0
        %v550 = vadd.f32 %v276, %v549
        %v551 = vpop.f32.mrf.mxu0
        %v552 = vpop.f32.mrf.mxu0
        %v553 = vadd.f32 %v276, %v552
        %v554 = vpop.f32.mrf.mxu0
        %555 = vmatprep.mubr.bf16.mxu0 0
        %556 = vmatmul.mubr.bf16.gmra.mxu0 %v404
        %v557 = vpop.f32.mrf.mxu0
        %v558 = vadd.f32 %v276, %v557
        %v559 = vpop.f32.mrf.mxu0
        %v560 = vpop.f32.mrf.mxu0
        %v561 = vadd.f32 %v276, %v560
        %v562 = vpop.f32.mrf.mxu0
        %563 = vmatprep.mubr.bf16.mxu0 0
        %564 = vmatmul.mubr.bf16.gmra.mxu0 %v407
        %v565 = vpop.f32.mrf.mxu0
        %v566 = vadd.f32 %v276, %v565
        %v567 = vpop.f32.mrf.mxu0
        %v568 = vpop.f32.mrf.mxu0
        %v569 = vadd.f32 %v276, %v568
        %v570 = vpop.f32.mrf.mxu0
        %571 = vmatprep.mubr.bf16.mxu0 0
        %572 = vmatmul.mubr.bf16.gmra.mxu0 %v410
        %v573 = vpop.f32.mrf.mxu0
        %v574 = vadd.f32 %v276, %v573
        %v575 = vpop.f32.mrf.mxu0
        %v576 = vpop.f32.mrf.mxu0
        %v577 = vadd.f32 %v276, %v576
        %v578 = vpop.f32.mrf.mxu0
        %579 = vdwg.mxu0
        %v580 = vmax.f32 %v454, 0.0
        %v581 = vmax.f32 %v457, 0.0
        %v582 = vmax.f32 %v462, 0.0
        %v583 = vmax.f32 %v465, 0.0
        %v584 = vmax.f32 %v470, 0.0
        %v585 = vmax.f32 %v473, 0.0
        %v586 = vmax.f32 %v478, 0.0
        %v587 = vmax.f32 %v481, 0.0
        %v588 = vmax.f32 %v486, 0.0
        %v589 = vmax.f32 %v489, 0.0
        %v590 = vmax.f32 %v494, 0.0
        %v591 = vmax.f32 %v497, 0.0
        %v592 = vmax.f32 %v502, 0.0
        %v593 = vmax.f32 %v505, 0.0
        %v594 = vmax.f32 %v510, 0.0
        %v595 = vmax.f32 %v513, 0.0
        %v596 = vmax.f32 %v518, 0.0
        %v597 = vmax.f32 %v521, 0.0
        %v598 = vmax.f32 %v526, 0.0
        %v599 = vmax.f32 %v529, 0.0
        %v600 = vmax.f32 %v534, 0.0
        %v601 = vmax.f32 %v537, 0.0
        %v602 = vmax.f32 %v542, 0.0
        %v603 = vmax.f32 %v545, 0.0
        %v604 = vmax.f32 %v550, 0.0
        %v605 = vmax.f32 %v553, 0.0
        %v606 = vmax.f32 %v558, 0.0
        %v607 = vmax.f32 %v561, 0.0
        %v608 = vmax.f32 %v566, 0.0
        %v609 = vmax.f32 %v569, 0.0
        %v610 = vmax.f32 %v574, 0.0
        %v611 = vmax.f32 %v577, 0.0
        %v612 = vpack.c.bf16 %v581, %v580
        %v613 = vpack.c.bf16 %v583, %v582
        %v614 = vpack.c.bf16 %v585, %v584
        %v615 = vpack.c.bf16 %v587, %v586
        %v616 = vpack.c.bf16 %v589, %v588
        %v617 = vpack.c.bf16 %v591, %v590
        %v618 = vpack.c.bf16 %v593, %v592
        %v619 = vpack.c.bf16 %v595, %v594
        %v620 = vpack.c.bf16 %v597, %v596
        %v621 = vpack.c.bf16 %v599, %v598
        %v622 = vpack.c.bf16 %v601, %v600
        %v623 = vpack.c.bf16 %v603, %v602
        %v624 = vpack.c.bf16 %v605, %v604
        %v625 = vpack.c.bf16 %v607, %v606
        %v626 = vpack.c.bf16 %v609, %v608
        %v627 = vpack.c.bf16 %v611, %v610
        %v644 = vunpack.c.l.b16 %v612
        %v645 = vunpack.c.h.b16 %v612
        %v646 = vunpack.c.l.b16 %v613
        %v647 = vunpack.c.h.b16 %v613
        %v648 = vunpack.c.l.b16 %v614
        %v649 = vunpack.c.h.b16 %v614
        %v650 = vunpack.c.l.b16 %v615
        %v651 = vunpack.c.h.b16 %v615
        %v652 = vunpack.c.l.b16 %v616
        %v653 = vunpack.c.h.b16 %v616
        %v654 = vunpack.c.l.b16 %v617
        %v655 = vunpack.c.h.b16 %v617
        %v656 = vunpack.c.l.b16 %v618
        %v657 = vunpack.c.h.b16 %v618
        %v658 = vunpack.c.l.b16 %v619
        %v659 = vunpack.c.h.b16 %v619
        %v660 = vunpack.c.l.b16 %v620
        %v661 = vunpack.c.h.b16 %v620
        %v662 = vunpack.c.l.b16 %v621
        %v663 = vunpack.c.h.b16 %v621
        %v664 = vunpack.c.l.b16 %v622
        %v665 = vunpack.c.h.b16 %v622
        %v666 = vunpack.c.l.b16 %v623
        %v667 = vunpack.c.h.b16 %v623
        %v668 = vunpack.c.l.b16 %v624
        %v669 = vunpack.c.h.b16 %v624
        %v670 = vunpack.c.l.b16 %v625
        %v671 = vunpack.c.h.b16 %v625
        %v672 = vunpack.c.l.b16 %v626
        %v673 = vunpack.c.h.b16 %v626
        %v674 = vunpack.c.l.b16 %v627
        %v675 = vunpack.c.h.b16 %v627
        %v676 = vpack.c.b16 %v644, %v644
        %v677 = vpack.c.b16 %v645, %v645
        %v678 = vpack.c.b16 %v646, %v646
        %v679 = vpack.c.b16 %v647, %v647
        %v680 = vpack.c.b16 %v648, %v648
        %v681 = vpack.c.b16 %v649, %v649
        %v682 = vpack.c.b16 %v650, %v650
        %v683 = vpack.c.b16 %v651, %v651
        %v684 = vpack.c.b16 %v652, %v652
        %v685 = vpack.c.b16 %v653, %v653
        %v686 = vpack.c.b16 %v654, %v654
        %v687 = vpack.c.b16 %v655, %v655
        %v688 = vpack.c.b16 %v656, %v656
        %v689 = vpack.c.b16 %v657, %v657
        %v690 = vpack.c.b16 %v658, %v658
        %v691 = vpack.c.b16 %v659, %v659
        %v692 = vpack.c.b16 %v660, %v660
        %v693 = vpack.c.b16 %v661, %v661
        %v694 = vpack.c.b16 %v662, %v662
        %v695 = vpack.c.b16 %v663, %v663
        %v696 = vpack.c.b16 %v664, %v664
        %v697 = vpack.c.b16 %v665, %v665
        %v698 = vpack.c.b16 %v666, %v666
        %v699 = vpack.c.b16 %v667, %v667
        %v700 = vpack.c.b16 %v668, %v668
        %v701 = vpack.c.b16 %v669, %v669
        %v702 = vpack.c.b16 %v670, %v670
        %v703 = vpack.c.b16 %v671, %v671
        %v704 = vpack.c.b16 %v672, %v672
        %v705 = vpack.c.b16 %v673, %v673
        %v706 = vpack.c.b16 %v674, %v674
        %v707 = vpack.c.b16 %v675, %v675
        %740 = vst [vmem:[%s234] sm:$0xf] %v676
        %741 = vst [vmem:[%s234 + $0x4] sm:$0xf] %v677
        %742 = vst [vmem:[%s234 + $0x8] sm:$0xf] %v678
        %743 = vst [vmem:[%s234 + $0xc] sm:$0xf] %v679
        %744 = vst [vmem:[%s234 + $0x10] sm:$0xf] %v680
        %745 = vst [vmem:[%s234 + $0x14] sm:$0xf] %v681
        %746 = vst [vmem:[%s234 + $0x18] sm:$0xf] %v682
        %747 = vst [vmem:[%s234 + $0x1c] sm:$0xf] %v683
        %748 = vst [vmem:[%s234 + $0x20] sm:$0xf] %v684
        %749 = vst [vmem:[%s234 + $0x24] sm:$0xf] %v685
        %750 = vst [vmem:[%s234 + $0x28] sm:$0xf] %v686
        %751 = vst [vmem:[%s234 + $0x2c] sm:$0xf] %v687
        %752 = vst [vmem:[%s234 + $0x30] sm:$0xf] %v688
        %753 = vst [vmem:[%s234 + $0x34] sm:$0xf] %v689
        %754 = vst [vmem:[%s234 + $0x38] sm:$0xf] %v690
        %755 = vst [vmem:[%s234 + $0x3c] sm:$0xf] %v691
        %756 = vst [vmem:[%s234 + $0x40] sm:$0xf] %v692
        %757 = vst [vmem:[%s234 + $0x44] sm:$0xf] %v693
        %758 = vst [vmem:[%s234 + $0x48] sm:$0xf] %v694
        %759 = vst [vmem:[%s234 + $0x4c] sm:$0xf] %v695
        %760 = vst [vmem:[%s234 + $0x50] sm:$0xf] %v696
        %761 = vst [vmem:[%s234 + $0x54] sm:$0xf] %v697
        %762 = vst [vmem:[%s234 + $0x58] sm:$0xf] %v698
        %763 = vst [vmem:[%s234 + $0x5c] sm:$0xf] %v699
        %764 = vst [vmem:[%s234 + $0x60] sm:$0xf] %v700
        %765 = vst [vmem:[%s234 + $0x64] sm:$0xf] %v701
        %766 = vst [vmem:[%s234 + $0x68] sm:$0xf] %v702
        %767 = vst [vmem:[%s234 + $0x6c] sm:$0xf] %v703
        %768 = vst [vmem:[%s234 + $0x70] sm:$0xf] %v704
        %769 = vst [vmem:[%s234 + $0x74] sm:$0xf] %v705
        %770 = vst [vmem:[%s234 + $0x78] sm:$0xf] %v706
        %771 = vst [vmem:[%s234 + $0x7c] sm:$0xf] %v707
        %s772 = smul.u32 32, %s20
        %p773 = scmp.lt.s32.totalorder %s772, 63
        %s774 = scalar_select %p773, %s772, 63
        %p775 = scmp.lt.s32.totalorder %s21, 0
        %s776 = scalar_select %p775, %s21, 0
        %s777 = sadd.s32 %s776, %s774
        %s778 = smul.addr %s777, 4
        %s779 = scalar_lea.vmem %s3, %s778
        // Predicated region
        $region41: #{cnn_forward.4} parent=31 // pred_check
          %p780 = pneg %p126
        $region42: #{cnn_forward.4} parent=31 // pred_check_branch
          %782 = sbr.rel (%p780) target = $region44
        $region43: #{cnn_forward.4} parent=31 // pred_region
          %s783 = smul.u32 32, %s20
        $region44: #{cnn_forward.4} parent=31 // pred_fallthru
          _
      $region32: #{cnn_forward.4} parent=5 // pred_fallthru
        _
      %p784 = scmp.le.s32.totalorder 2, %s11
      // Predicated region
      $region45: #{cnn_forward.4} parent=5 // pred_check
        %p785 = pneg %p784
      $region46: #{cnn_forward.4} parent=5 // pred_check_branch
        %787 = sbr.rel (%p785) target = $region48
      $region47: #{cnn_forward.4} parent=5 // pred_region
        %s788 = ssub.s32 %s11, 2
        // Predicated region
        $region49: #{cnn_forward.4} parent=47 // pred_check
          %p789 = pneg %p132
        $region50: #{cnn_forward.4} parent=47 // pred_check_branch
          %791 = sbr.rel (%p789) target = $region52
        $region51: #{cnn_forward.4} parent=47 // pred_region
          %s792 = smul.u32 32, %s22
          %p793 = scmp.lt.s32.totalorder %s792, 63
          %s794 = scalar_select %p793, %s792, 63
          %p795 = scmp.lt.s32.totalorder %s23, 0
          %s796 = scalar_select %p795, %s23, 0
          %s797 = sadd.s32 %s796, %s794
          %s798 = smul.addr %s797, 4
          %s799 = scalar_lea.vmem %s3, %s798
        $region52: #{cnn_forward.4} parent=47 // pred_fallthru
          _
      $region48: #{cnn_forward.4} parent=5 // pred_fallthru
        _
    $region6: #{cnn_forward.4} parent=1 // loop_footer
      %s15 = sadd.s32 1, %s11
    $region7: #{cnn_forward.4} parent=1 // loop_footer_branch
      %10 = sbr.rel target = $region3
    $region8: #{cnn_forward.4} parent=1 // loop_exit
      _
    %800 = vsyncpa [#allocation3], 1
    %s801 = scalar_lea.sflag [#allocation3], 1
    %802 = vsyncpa %s801, 1
    %803 = vsyncpa [#allocation5], 1

// kernel: cnn_forward.5
$region0: #{cnn_forward.5}
  #allocation0 [shape = 'u32[]', space=smem, size = 0x4, offset = 0x4, fixed_abs, tag = 'smem constant byte address 0x4 - core index']
  #allocation1 [shape = 'u32[144,128]{1,0:T(1,128)}', space=vmem, size = 0x12000, scoped, tag = 'internal scratch']
  %s0 = inlined_call_operand.vmem [shape: bf16[112,1152], index: 0, kind: input, shape index: {}]
  %s1 = inlined_call_operand.hbm [shape: bf16[1152,128], index: 1, kind: input, shape index: {}]
  %s2 = inlined_call_operand.hbm [shape: f32[1,128], index: 2, kind: input, shape index: {}]
  %s3 = inlined_call_operand.vmem [shape: bf16[112,128], index: 3, kind: output, shape index: {}]
  %s4 = sld [smem:[#allocation0]]
  $region30: #{cnn_forward.5} parent=0
    _
  %s6 = ssub.s32 1, %s4
  %s7 = scalar_select 0, %s6, %s4
  $region1: #{cnn_forward.5} parent=0
    #allocation2 [shape = 'u8[294912]{0}', space=vmem, size = 0x48000, scoped, tag = 'input window, operand 1, single buffered']
    #allocation3 [shape = 's32[1]{0}', space=sflag, size = 0x4, scoped, tag = 'scoped memory for cnn_forward.5']
    #allocation4 [shape = 'u8[512]{0}', space=vmem, size = 0x400, scoped, tag = 'input window, operand 2, single buffered']
    #allocation5 [shape = 's32[1]{0}', space=sflag, size = 0x4, scoped, tag = 'scoped memory for cnn_forward.5']
    %8 = vsyncpa [#allocation3], 0
    %9 = vsyncpa [#allocation5], 0
    // Predicated region
    $region2: #{cnn_forward.5} parent=1 // pred_check
      _
    $region3: #{cnn_forward.5} parent=1 // pred_check_branch
      %11 = sbr.rel (0) target = $region5
    $region4: #{cnn_forward.5} parent=1 // pred_region
      _
    $region5: #{cnn_forward.5} parent=1 // pred_fallthru
      _
    // Predicated region
    $region6: #{cnn_forward.5} parent=1 // pred_check
      _
    $region7: #{cnn_forward.5} parent=1 // pred_check_branch
      %13 = sbr.rel (0) target = $region9
    $region8: #{cnn_forward.5} parent=1 // pred_region
      %s15 = ssub.s32 9216, 9216
      %16 = vsyncadd [#allocation3], %s15
      %s17 = sshll.u32 [#allocation2], 4
      %s18 = int_to_ptr.vmem [resolvable:$true] %s17
      %23 = dma.hbm_to_vmem [thread:$0]  %s1, 9216, %s18, [#allocation3], 64, 64, 4
    $region9: #{cnn_forward.5} parent=1 // pred_fallthru
      _
    // Predicated region
    $region10: #{cnn_forward.5} parent=1 // pred_check
      _
    $region11: #{cnn_forward.5} parent=1 // pred_check_branch
      %25 = sbr.rel (0) target = $region13
    $region12: #{cnn_forward.5} parent=1 // pred_region
      %s27 = ssub.s32 16, 16
      %28 = vsyncadd [#allocation5], %s27
      %s30 = sshll.u32 [#allocation4], 4
      %s31 = int_to_ptr.vmem [resolvable:$true] %s30
      %33 = dma.hbm_to_vmem [thread:$0]  %s2, 16, %s31, [#allocation5]
    $region13: #{cnn_forward.5} parent=1 // pred_fallthru
      _
    // Predicated region
    $region14: #{cnn_forward.5} parent=1 // pred_check
      _
    $region15: #{cnn_forward.5} parent=1 // pred_check_branch
      %35 = sbr.rel (0) target = $region17
    $region16: #{cnn_forward.5} parent=1 // pred_region
      %36 = dma.done [#allocation3], 9216
    $region17: #{cnn_forward.5} parent=1 // pred_fallthru
      _
    // Predicated region
    $region18: #{cnn_forward.5} parent=1 // pred_check
      _
    $region19: #{cnn_forward.5} parent=1 // pred_check_branch
      %38 = sbr.rel (0) target = $region21
    $region20: #{cnn_forward.5} parent=1 // pred_region
      %39 = dma.done [#allocation5], 16
    $region21: #{cnn_forward.5} parent=1 // pred_fallthru
      _
    %v41 = vld [vmem:[%s0] sm:$0xff]
    %v42 = vld [vmem:[%s0 + $0x8] sm:$0xff]
    %v43 = vld [vmem:[%s0 + $0x10] sm:$0xff]
    %v44 = vld [vmem:[%s0 + $0x18] sm:$0xff]
    %v45 = vld [vmem:[%s0 + $0x20] sm:$0xf]
    %v46 = vld [vmem:[%s0 + $0x24] sm:$0xff]
    %v47 = vld [vmem:[%s0 + $0x2c] sm:$0xff]
    %v48 = vld [vmem:[%s0 + $0x34] sm:$0xff]
    %v49 = vld [vmem:[%s0 + $0x3c] sm:$0xff]
    %v50 = vld [vmem:[%s0 + $0x44] sm:$0xf]
    %v51 = vld [vmem:[%s0 + $0x48] sm:$0xff]
    %v52 = vld [vmem:[%s0 + $0x50] sm:$0xff]
    %v53 = vld [vmem:[%s0 + $0x58] sm:$0xff]
    %v54 = vld [vmem:[%s0 + $0x60] sm:$0xff]
    %v55 = vld [vmem:[%s0 + $0x68] sm:$0xf]
    %v56 = vld [vmem:[%s0 + $0x6c] sm:$0xff]
    %v57 = vld [vmem:[%s0 + $0x74] sm:$0xff]
    %v58 = vld [vmem:[%s0 + $0x7c] sm:$0xff]
    %v59 = vld [vmem:[%s0 + $0x84] sm:$0xff]
    %v60 = vld [vmem:[%s0 + $0x8c] sm:$0xf]
    %v61 = vld [vmem:[%s0 + $0x90] sm:$0xff]
    %v62 = vld [vmem:[%s0 + $0x98] sm:$0xff]
    %v63 = vld [vmem:[%s0 + $0xa0] sm:$0xff]
    %v64 = vld [vmem:[%s0 + $0xa8] sm:$0xff]
    %v65 = vld [vmem:[%s0 + $0xb0] sm:$0xf]
    %v66 = vld [vmem:[%s0 + $0xb4] sm:$0xff]
    %v67 = vld [vmem:[%s0 + $0xbc] sm:$0xff]
    %v68 = vld [vmem:[%s0 + $0xc4] sm:$0xff]
    %v69 = vld [vmem:[%s0 + $0xcc] sm:$0xff]
    %v70 = vld [vmem:[%s0 + $0xd4] sm:$0xf]
    %v71 = vld [vmem:[%s0 + $0xd8] sm:$0xff]
    %v72 = vld [vmem:[%s0 + $0xe0] sm:$0xff]
    %v73 = vld [vmem:[%s0 + $0xe8] sm:$0xff]
    %v74 = vld [vmem:[%s0 + $0xf0] sm:$0xff]
    %v75 = vld [vmem:[%s0 + $0xf8] sm:$0xf]
    %v76 = vld [vmem:[%s0 + $0xfc] sm:$0xff]
    %v77 = vld [vmem:[%s0 + $0x104] sm:$0xff]
    %v78 = vld [vmem:[%s0 + $0x10c] sm:$0xff]
    %v79 = vld [vmem:[%s0 + $0x114] sm:$0xff]
    %v80 = vld [vmem:[%s0 + $0x11c] sm:$0xf]
    %v81 = vld [vmem:[%s0 + $0x120] sm:$0xff]
    %v82 = vld [vmem:[%s0 + $0x128] sm:$0xff]
    %v83 = vld [vmem:[%s0 + $0x130] sm:$0xff]
    %v84 = vld [vmem:[%s0 + $0x138] sm:$0xff]
    %v85 = vld [vmem:[%s0 + $0x140] sm:$0xf]
    %v86 = vld [vmem:[%s0 + $0x144] sm:$0xff]
    %v87 = vld [vmem:[%s0 + $0x14c] sm:$0xff]
    %v88 = vld [vmem:[%s0 + $0x154] sm:$0xff]
    %v89 = vld [vmem:[%s0 + $0x15c] sm:$0xff]
    %v90 = vld [vmem:[%s0 + $0x164] sm:$0xf]
    %v91 = vld [vmem:[%s0 + $0x168] sm:$0xff]
    %v92 = vld [vmem:[%s0 + $0x170] sm:$0xff]
    %v93 = vld [vmem:[%s0 + $0x178] sm:$0xff]
    %v94 = vld [vmem:[%s0 + $0x180] sm:$0xff]
    %v95 = vld [vmem:[%s0 + $0x188] sm:$0xf]
    %v96 = vld [vmem:[%s0 + $0x18c] sm:$0xff]
    %v97 = vld [vmem:[%s0 + $0x194] sm:$0xff]
    %v98 = vld [vmem:[%s0 + $0x19c] sm:$0xff]
    %v99 = vld [vmem:[%s0 + $0x1a4] sm:$0xff]
    %v100 = vld [vmem:[%s0 + $0x1ac] sm:$0xf]
    %v101 = vld [vmem:[%s0 + $0x1b0] sm:$0xff]
    %v102 = vld [vmem:[%s0 + $0x1b8] sm:$0xff]
    %v103 = vld [vmem:[%s0 + $0x1c0] sm:$0xff]
    %v104 = vld [vmem:[%s0 + $0x1c8] sm:$0xff]
    %v105 = vld [vmem:[%s0 + $0x1d0] sm:$0xf]
    %v106 = vld [vmem:[%s0 + $0x1d4] sm:$0xff]
    %v107 = vld [vmem:[%s0 + $0x1dc] sm:$0xff]
    %v108 = vld [vmem:[%s0 + $0x1e4] sm:$0xff]
    %v109 = vld [vmem:[%s0 + $0x1ec] sm:$0xff]
    %v110 = vld [vmem:[%s0 + $0x1f4] sm:$0xf]
    %v111 = vld [vmem:[#allocation2] sm:$0xf]
    %v112 = vld [vmem:[#allocation2 + $0x4] sm:$0xf]
    %v113 = vld [vmem:[#allocation2 + $0x8] sm:$0xf]
    %v114 = vld [vmem:[#allocation2 + $0xc] sm:$0xf]
    %v115 = vld [vmem:[#allocation2 + $0x10] sm:$0xf]
    %v116 = vld [vmem:[#allocation2 + $0x14] sm:$0xf]
    %v117 = vld [vmem:[#allocation2 + $0x18] sm:$0xf]
    %v118 = vld [vmem:[#allocation2 + $0x1c] sm:$0xf]
    %v119 = vld [vmem:[#allocation2 + $0x20] sm:$0xf]
    %v120 = vld [vmem:[#allocation2 + $0x24] sm:$0xf]
    %v121 = vld [vmem:[#allocation2 + $0x28] sm:$0xf]
    %v122 = vld [vmem:[#allocation2 + $0x2c] sm:$0xf]
    %v123 = vld [vmem:[#allocation2 + $0x30] sm:$0xf]
    %v124 = vld [vmem:[#allocation2 + $0x34] sm:$0xf]
    %v125 = vld [vmem:[#allocation2 + $0x38] sm:$0xf]
    %v126 = vld [vmem:[#allocation2 + $0x3c] sm:$0xf]
    %v127 = vld [vmem:[#allocation2 + $0x40] sm:$0xf]
    %v128 = vld [vmem:[#allocation2 + $0x44] sm:$0xf]
    %v129 = vld [vmem:[#allocation2 + $0x48] sm:$0xf]
    %v130 = vld [vmem:[#allocation2 + $0x4c] sm:$0xf]
    %v131 = vld [vmem:[#allocation2 + $0x50] sm:$0xf]
    %v132 = vld [vmem:[#allocation2 + $0x54] sm:$0xf]
    %v133 = vld [vmem:[#allocation2 + $0x58] sm:$0xf]
    %v134 = vld [vmem:[#allocation2 + $0x5c] sm:$0xf]
    %v135 = vld [vmem:[#allocation2 + $0x60] sm:$0xf]
    %v136 = vld [vmem:[#allocation2 + $0x64] sm:$0xf]
    %v137 = vld [vmem:[#allocation2 + $0x68] sm:$0xf]
    %v138 = vld [vmem:[#allocation2 + $0x6c] sm:$0xf]
    %v139 = vld [vmem:[#allocation2 + $0x70] sm:$0xf]
    %v140 = vld [vmem:[#allocation2 + $0x74] sm:$0xf]
    %v141 = vld [vmem:[#allocation2 + $0x78] sm:$0xf]
    %v142 = vld [vmem:[#allocation2 + $0x7c] sm:$0xf]
    %v143 = vld [vmem:[#allocation2 + $0x80] sm:$0xf]
    %v144 = vld [vmem:[#allocation2 + $0x84] sm:$0xf]
    %v145 = vld [vmem:[#allocation2 + $0x88] sm:$0xf]
    %v146 = vld [vmem:[#allocation2 + $0x8c] sm:$0xf]
    %v147 = vld [vmem:[#allocation2 + $0x90] sm:$0xf]
    %v148 = vld [vmem:[#allocation2 + $0x94] sm:$0xf]
    %v149 = vld [vmem:[#allocation2 + $0x98] sm:$0xf]
    %v150 = vld [vmem:[#allocation2 + $0x9c] sm:$0xf]
    %v151 = vld [vmem:[#allocation2 + $0xa0] sm:$0xf]
    %v152 = vld [vmem:[#allocation2 + $0xa4] sm:$0xf]
    %v153 = vld [vmem:[#allocation2 + $0xa8] sm:$0xf]
    %v154 = vld [vmem:[#allocation2 + $0xac] sm:$0xf]
    %v155 = vld [vmem:[#allocation2 + $0xb0] sm:$0xf]
    %v156 = vld [vmem:[#allocation2 + $0xb4] sm:$0xf]
    %v157 = vld [vmem:[#allocation2 + $0xb8] sm:$0xf]
    %v158 = vld [vmem:[#allocation2 + $0xbc] sm:$0xf]
    %v159 = vld [vmem:[#allocation2 + $0xc0] sm:$0xf]
    %v160 = vld [vmem:[#allocation2 + $0xc4] sm:$0xf]
    %v161 = vld [vmem:[#allocation2 + $0xc8] sm:$0xf]
    %v162 = vld [vmem:[#allocation2 + $0xcc] sm:$0xf]
    %v163 = vld [vmem:[#allocation2 + $0xd0] sm:$0xf]
    %v164 = vld [vmem:[#allocation2 + $0xd4] sm:$0xf]
    %v165 = vld [vmem:[#allocation2 + $0xd8] sm:$0xf]
    %v166 = vld [vmem:[#allocation2 + $0xdc] sm:$0xf]
    %v167 = vld [vmem:[#allocation2 + $0xe0] sm:$0xf]
    %v168 = vld [vmem:[#allocation2 + $0xe4] sm:$0xf]
    %v169 = vld [vmem:[#allocation2 + $0xe8] sm:$0xf]
    %v170 = vld [vmem:[#allocation2 + $0xec] sm:$0xf]
    %v171 = vld [vmem:[#allocation2 + $0xf0] sm:$0xf]
    %v172 = vld [vmem:[#allocation2 + $0xf4] sm:$0xf]
    %v173 = vld [vmem:[#allocation2 + $0xf8] sm:$0xf]
    %v174 = vld [vmem:[#allocation2 + $0xfc] sm:$0xf]
    %v175 = vld [vmem:[#allocation2 + $0x100] sm:$0xf]
    %v176 = vld [vmem:[#allocation2 + $0x104] sm:$0xf]
    %v177 = vld [vmem:[#allocation2 + $0x108] sm:$0xf]
    %v178 = vld [vmem:[#allocation2 + $0x10c] sm:$0xf]
    %v179 = vld [vmem:[#allocation2 + $0x110] sm:$0xf]
    %v180 = vld [vmem:[#allocation2 + $0x114] sm:$0xf]
    %v181 = vld [vmem:[#allocation2 + $0x118] sm:$0xf]
    %v182 = vld [vmem:[#allocation2 + $0x11c] sm:$0xf]
    %v183 = vld [vmem:[#allocation2 + $0x120] sm:$0xf]
    %v184 = vld [vmem:[#allocation2 + $0x124] sm:$0xf]
    %v185 = vld [vmem:[#allocation2 + $0x128] sm:$0xf]
    %v186 = vld [vmem:[#allocation2 + $0x12c] sm:$0xf]
    %v187 = vld [vmem:[#allocation2 + $0x130] sm:$0xf]
    %v188 = vld [vmem:[#allocation2 + $0x134] sm:$0xf]
    %v189 = vld [vmem:[#allocation2 + $0x138] sm:$0xf]
    %v190 = vld [vmem:[#allocation2 + $0x13c] sm:$0xf]
    %v191 = vld [vmem:[#allocation2 + $0x140] sm:$0xf]
    %v192 = vld [vmem:[#allocation2 + $0x144] sm:$0xf]
    %v193 = vld [vmem:[#allocation2 + $0x148] sm:$0xf]
    %v194 = vld [vmem:[#allocation2 + $0x14c] sm:$0xf]
    %v195 = vld [vmem:[#allocation2 + $0x150] sm:$0xf]
    %v196 = vld [vmem:[#allocation2 + $0x154] sm:$0xf]
    %v197 = vld [vmem:[#allocation2 + $0x158] sm:$0xf]
    %v198 = vld [vmem:[#allocation2 + $0x15c] sm:$0xf]
    %v199 = vld [vmem:[#allocation2 + $0x160] sm:$0xf]
    %v200 = vld [vmem:[#allocation2 + $0x164] sm:$0xf]
    %v201 = vld [vmem:[#allocation2 + $0x168] sm:$0xf]
    %v202 = vld [vmem:[#allocation2 + $0x16c] sm:$0xf]
    %v203 = vld [vmem:[#allocation2 + $0x170] sm:$0xf]
    %v204 = vld [vmem:[#allocation2 + $0x174] sm:$0xf]
    %v205 = vld [vmem:[#allocation2 + $0x178] sm:$0xf]
    %v206 = vld [vmem:[#allocation2 + $0x17c] sm:$0xf]
    %v207 = vld [vmem:[#allocation2 + $0x180] sm:$0xf]
    %v208 = vld [vmem:[#allocation2 + $0x184] sm:$0xf]
    %v209 = vld [vmem:[#allocation2 + $0x188] sm:$0xf]
    %v210 = vld [vmem:[#allocation2 + $0x18c] sm:$0xf]
    %v211 = vld [vmem:[#allocation2 + $0x190] sm:$0xf]
    %v212 = vld [vmem:[#allocation2 + $0x194] sm:$0xf]
    %v213 = vld [vmem:[#allocation2 + $0x198] sm:$0xf]
    %v214 = vld [vmem:[#allocation2 + $0x19c] sm:$0xf]
    %v215 = vld [vmem:[#allocation2 + $0x1a0] sm:$0xf]
    %v216 = vld [vmem:[#allocation2 + $0x1a4] sm:$0xf]
    %v217 = vld [vmem:[#allocation2 + $0x1a8] sm:$0xf]
    %v218 = vld [vmem:[#allocation2 + $0x1ac] sm:$0xf]
    %v219 = vld [vmem:[#allocation2 + $0x1b0] sm:$0xf]
    %v220 = vld [vmem:[#allocation2 + $0x1b4] sm:$0xf]
    %v221 = vld [vmem:[#allocation2 + $0x1b8] sm:$0xf]
    %v222 = vld [vmem:[#allocation2 + $0x1bc] sm:$0xf]
    %v223 = vld [vmem:[#allocation2 + $0x1c0] sm:$0xf]
    %v224 = vld [vmem:[#allocation2 + $0x1c4] sm:$0xf]
    %v225 = vld [vmem:[#allocation2 + $0x1c8] sm:$0xf]
    %v226 = vld [vmem:[#allocation2 + $0x1cc] sm:$0xf]
    %v227 = vld [vmem:[#allocation2 + $0x1d0] sm:$0xf]
    %v228 = vld [vmem:[#allocation2 + $0x1d4] sm:$0xf]
    %v229 = vld [vmem:[#allocation2 + $0x1d8] sm:$0xf]
    %v230 = vld [vmem:[#allocation2 + $0x1dc] sm:$0xf]
    %v231 = vld [vmem:[#allocation2 + $0x1e0] sm:$0xf]
    %v232 = vld [vmem:[#allocation2 + $0x1e4] sm:$0xf]
    %v233 = vld [vmem:[#allocation2 + $0x1e8] sm:$0xf]
    %v234 = vld [vmem:[#allocation2 + $0x1ec] sm:$0xf]
    %v235 = vld [vmem:[#allocation2 + $0x1f0] sm:$0xf]
    %v236 = vld [vmem:[#allocation2 + $0x1f4] sm:$0xf]
    %v237 = vld [vmem:[#allocation2 + $0x1f8] sm:$0xf]
    %v238 = vld [vmem:[#allocation2 + $0x1fc] sm:$0xf]
    %v239 = vld [vmem:[#allocation2 + $0x200] sm:$0xf]
    %v240 = vld [vmem:[#allocation2 + $0x204] sm:$0xf]
    %v241 = vld [vmem:[#allocation2 + $0x208] sm:$0xf]
    %v242 = vld [vmem:[#allocation2 + $0x20c] sm:$0xf]
    %v243 = vld [vmem:[#allocation2 + $0x210] sm:$0xf]
    %v244 = vld [vmem:[#allocation2 + $0x214] sm:$0xf]
    %v245 = vld [vmem:[#allocation2 + $0x218] sm:$0xf]
    %v246 = vld [vmem:[#allocation2 + $0x21c] sm:$0xf]
    %v247 = vld [vmem:[#allocation2 + $0x220] sm:$0xf]
    %v248 = vld [vmem:[#allocation2 + $0x224] sm:$0xf]
    %v249 = vld [vmem:[#allocation2 + $0x228] sm:$0xf]
    %v250 = vld [vmem:[#allocation2 + $0x22c] sm:$0xf]
    %v251 = vld [vmem:[#allocation2 + $0x230] sm:$0xf]
    %v252 = vld [vmem:[#allocation2 + $0x234] sm:$0xf]
    %v253 = vld [vmem:[#allocation2 + $0x238] sm:$0xf]
    %v254 = vld [vmem:[#allocation2 + $0x23c] sm:$0xf]
    %v255 = vld [vmem:[#allocation4] sm:$0x1]
    %v257 = vlaneseq
    %v258 = vshrl.u32 %v257, 7
    %v259 = vsub.s32 0, %v258
    %v260 = vrot.slane %v255, %v259
    %v332 = vunpack.c.l.b16 %v41
    %v333 = vunpack.c.h.b16 %v41
    %v334 = vunpack.c.l.b16 %v42
    %v335 = vunpack.c.h.b16 %v42
    %v336 = vunpack.c.l.b16 %v43
    %v337 = vunpack.c.h.b16 %v43
    %v338 = vunpack.c.l.b16 %v44
    %v339 = vunpack.c.h.b16 %v44
    %v340 = vunpack.c.l.b16 %v45
    %v341 = vunpack.c.l.b16 %v46
    %v342 = vunpack.c.h.b16 %v46
    %v343 = vunpack.c.l.b16 %v47
    %v344 = vunpack.c.h.b16 %v47
    %v345 = vunpack.c.l.b16 %v48
    %v346 = vunpack.c.h.b16 %v48
    %v347 = vunpack.c.l.b16 %v49
    %v348 = vunpack.c.h.b16 %v49
    %v349 = vunpack.c.l.b16 %v50
    %v350 = vunpack.c.l.b16 %v51
    %v351 = vunpack.c.h.b16 %v51
    %v352 = vunpack.c.l.b16 %v52
    %v353 = vunpack.c.h.b16 %v52
    %v354 = vunpack.c.l.b16 %v53
    %v355 = vunpack.c.h.b16 %v53
    %v356 = vunpack.c.l.b16 %v54
    %v357 = vunpack.c.h.b16 %v54
    %v358 = vunpack.c.l.b16 %v55
    %v359 = vunpack.c.l.b16 %v56
    %v360 = vunpack.c.h.b16 %v56
    %v361 = vunpack.c.l.b16 %v57
    %v362 = vunpack.c.h.b16 %v57
    %v363 = vunpack.c.l.b16 %v58
    %v364 = vunpack.c.h.b16 %v58
    %v365 = vunpack.c.l.b16 %v59
    %v366 = vunpack.c.h.b16 %v59
    %v367 = vunpack.c.l.b16 %v60
    %v368 = vunpack.c.l.b16 %v61
    %v369 = vunpack.c.h.b16 %v61
    %v370 = vunpack.c.l.b16 %v62
    %v371 = vunpack.c.h.b16 %v62
    %v372 = vunpack.c.l.b16 %v63
    %v373 = vunpack.c.h.b16 %v63
    %v374 = vunpack.c.l.b16 %v64
    %v375 = vunpack.c.h.b16 %v64
    %v376 = vunpack.c.l.b16 %v65
    %v377 = vunpack.c.l.b16 %v66
    %v378 = vunpack.c.h.b16 %v66
    %v379 = vunpack.c.l.b16 %v67
    %v380 = vunpack.c.h.b16 %v67
    %v381 = vunpack.c.l.b16 %v68
    %v382 = vunpack.c.h.b16 %v68
    %v383 = vunpack.c.l.b16 %v69
    %v384 = vunpack.c.h.b16 %v69
    %v385 = vunpack.c.l.b16 %v70
    %v386 = vunpack.c.l.b16 %v71
    %v387 = vunpack.c.h.b16 %v71
    %v388 = vunpack.c.l.b16 %v72
    %v389 = vunpack.c.h.b16 %v72
    %v390 = vunpack.c.l.b16 %v73
    %v391 = vunpack.c.h.b16 %v73
    %v392 = vunpack.c.l.b16 %v74
    %v393 = vunpack.c.h.b16 %v74
    %v394 = vunpack.c.l.b16 %v75
    %v395 = vunpack.c.l.b16 %v76
    %v396 = vunpack.c.h.b16 %v76
    %v397 = vunpack.c.l.b16 %v77
    %v398 = vunpack.c.h.b16 %v77
    %v399 = vunpack.c.l.b16 %v78
    %v400 = vunpack.c.h.b16 %v78
    %v401 = vunpack.c.l.b16 %v79
    %v402 = vunpack.c.h.b16 %v79
    %v403 = vunpack.c.l.b16 %v80
    %v404 = vunpack.c.l.b16 %v81
    %v405 = vunpack.c.h.b16 %v81
    %v406 = vunpack.c.l.b16 %v82
    %v407 = vunpack.c.h.b16 %v82
    %v408 = vunpack.c.l.b16 %v83
    %v409 = vunpack.c.h.b16 %v83
    %v410 = vunpack.c.l.b16 %v84
    %v411 = vunpack.c.h.b16 %v84
    %v412 = vunpack.c.l.b16 %v85
    %v413 = vunpack.c.l.b16 %v86
    %v414 = vunpack.c.h.b16 %v86
    %v415 = vunpack.c.l.b16 %v87
    %v416 = vunpack.c.h.b16 %v87
    %v417 = vunpack.c.l.b16 %v88
    %v418 = vunpack.c.h.b16 %v88
    %v419 = vunpack.c.l.b16 %v89
    %v420 = vunpack.c.h.b16 %v89
    %v421 = vunpack.c.l.b16 %v90
    %v422 = vunpack.c.l.b16 %v91
    %v423 = vunpack.c.h.b16 %v91
    %v424 = vunpack.c.l.b16 %v92
    %v425 = vunpack.c.h.b16 %v92
    %v426 = vunpack.c.l.b16 %v93
    %v427 = vunpack.c.h.b16 %v93
    %v428 = vunpack.c.l.b16 %v94
    %v429 = vunpack.c.h.b16 %v94
    %v430 = vunpack.c.l.b16 %v95
    %v431 = vunpack.c.l.b16 %v96
    %v432 = vunpack.c.h.b16 %v96
    %v433 = vunpack.c.l.b16 %v97
    %v434 = vunpack.c.h.b16 %v97
    %v435 = vunpack.c.l.b16 %v98
    %v436 = vunpack.c.h.b16 %v98
    %v437 = vunpack.c.l.b16 %v99
    %v438 = vunpack.c.h.b16 %v99
    %v439 = vunpack.c.l.b16 %v100
    %v440 = vunpack.c.l.b16 %v101
    %v441 = vunpack.c.h.b16 %v101
    %v442 = vunpack.c.l.b16 %v102
    %v443 = vunpack.c.h.b16 %v102
    %v444 = vunpack.c.l.b16 %v103
    %v445 = vunpack.c.h.b16 %v103
    %v446 = vunpack.c.l.b16 %v104
    %v447 = vunpack.c.h.b16 %v104
    %v448 = vunpack.c.l.b16 %v105
    %v449 = vunpack.c.l.b16 %v106
    %v450 = vunpack.c.h.b16 %v106
    %v451 = vunpack.c.l.b16 %v107
    %v452 = vunpack.c.h.b16 %v107
    %v453 = vunpack.c.l.b16 %v108
    %v454 = vunpack.c.h.b16 %v108
    %v455 = vunpack.c.l.b16 %v109
    %v456 = vunpack.c.h.b16 %v109
    %v457 = vunpack.c.l.b16 %v110
    %v458 = vpack.c.b16 %v341, %v332
    %v459 = vpack.c.b16 %v342, %v333
    %v460 = vpack.c.b16 %v343, %v334
    %v461 = vpack.c.b16 %v344, %v335
    %v462 = vpack.c.b16 %v345, %v336
    %v463 = vpack.c.b16 %v346, %v337
    %v464 = vpack.c.b16 %v347, %v338
    %v465 = vpack.c.b16 %v348, %v339
    %v466 = vpack.c.b16 %v349, %v340
    %v467 = vpack.c.b16 %v359, %v350
    %v468 = vpack.c.b16 %v360, %v351
    %v469 = vpack.c.b16 %v361, %v352
    %v470 = vpack.c.b16 %v362, %v353
    %v471 = vpack.c.b16 %v363, %v354
    %v472 = vpack.c.b16 %v364, %v355
    %v473 = vpack.c.b16 %v365, %v356
    %v474 = vpack.c.b16 %v366, %v357
    %v475 = vpack.c.b16 %v367, %v358
    %v476 = vpack.c.b16 %v377, %v368
    %v477 = vpack.c.b16 %v378, %v369
    %v478 = vpack.c.b16 %v379, %v370
    %v479 = vpack.c.b16 %v380, %v371
    %v480 = vpack.c.b16 %v381, %v372
    %v481 = vpack.c.b16 %v382, %v373
    %v482 = vpack.c.b16 %v383, %v374
    %v483 = vpack.c.b16 %v384, %v375
    %v484 = vpack.c.b16 %v385, %v376
    %v485 = vpack.c.b16 %v395, %v386
    %v486 = vpack.c.b16 %v396, %v387
    %v487 = vpack.c.b16 %v397, %v388
    %v488 = vpack.c.b16 %v398, %v389
    %v489 = vpack.c.b16 %v399, %v390
    %v490 = vpack.c.b16 %v400, %v391
    %v491 = vpack.c.b16 %v401, %v392
    %v492 = vpack.c.b16 %v402, %v393
    %v493 = vpack.c.b16 %v403, %v394
    %v494 = vpack.c.b16 %v413, %v404
    %v495 = vpack.c.b16 %v414, %v405
    %v496 = vpack.c.b16 %v415, %v406
    %v497 = vpack.c.b16 %v416, %v407
    %v498 = vpack.c.b16 %v417, %v408
    %v499 = vpack.c.b16 %v418, %v409
    %v500 = vpack.c.b16 %v419, %v410
    %v501 = vpack.c.b16 %v420, %v411
    %v502 = vpack.c.b16 %v421, %v412
    %v503 = vpack.c.b16 %v431, %v422
    %v504 = vpack.c.b16 %v432, %v423
    %v505 = vpack.c.b16 %v433, %v424
    %v506 = vpack.c.b16 %v434, %v425
    %v507 = vpack.c.b16 %v435, %v426
    %v508 = vpack.c.b16 %v436, %v427
    %v509 = vpack.c.b16 %v437, %v428
    %v510 = vpack.c.b16 %v438, %v429
    %v511 = vpack.c.b16 %v439, %v430
    %v512 = vpack.c.b16 %v449, %v440
    %v513 = vpack.c.b16 %v450, %v441
    %v514 = vpack.c.b16 %v451, %v442
    %v515 = vpack.c.b16 %v452, %v443
    %v516 = vpack.c.b16 %v453, %v444
    %v517 = vpack.c.b16 %v454, %v445
    %v518 = vpack.c.b16 %v455, %v446
    %v519 = vpack.c.b16 %v456, %v447
    %v520 = vpack.c.b16 %v457, %v448
    %v728 = vunpack.c.l.b16 %v111
    %v729 = vunpack.c.l.b16 %v112
    %v730 = vunpack.c.l.b16 %v113
    %v731 = vunpack.c.l.b16 %v114
    %v732 = vunpack.c.l.b16 %v115
    %v733 = vunpack.c.l.b16 %v116
    %v734 = vunpack.c.l.b16 %v117
    %v735 = vunpack.c.l.b16 %v118
    %v736 = vunpack.c.l.b16 %v119
    %v737 = vunpack.c.l.b16 %v120
    %v738 = vunpack.c.l.b16 %v121
    %v739 = vunpack.c.l.b16 %v122
    %v740 = vunpack.c.l.b16 %v123
    %v741 = vunpack.c.l.b16 %v124
    %v742 = vunpack.c.l.b16 %v125
    %v743 = vunpack.c.l.b16 %v126
    %v744 = vunpack.c.l.b16 %v127
    %v745 = vunpack.c.l.b16 %v128
    %v746 = vunpack.c.l.b16 %v129
    %v747 = vunpack.c.l.b16 %v130
    %v748 = vunpack.c.l.b16 %v131
    %v749 = vunpack.c.l.b16 %v132
    %v750 = vunpack.c.l.b16 %v133
    %v751 = vunpack.c.l.b16 %v134
    %v752 = vunpack.c.l.b16 %v135
    %v753 = vunpack.c.l.b16 %v136
    %v754 = vunpack.c.l.b16 %v137
    %v755 = vunpack.c.l.b16 %v138
    %v756 = vunpack.c.l.b16 %v139
    %v757 = vunpack.c.l.b16 %v140
    %v758 = vunpack.c.l.b16 %v141
    %v759 = vunpack.c.l.b16 %v142
    %v760 = vunpack.c.l.b16 %v143
    %v761 = vunpack.c.l.b16 %v144
    %v762 = vunpack.c.l.b16 %v145
    %v763 = vunpack.c.l.b16 %v146
    %v764 = vunpack.c.l.b16 %v147
    %v765 = vunpack.c.l.b16 %v148
    %v766 = vunpack.c.l.b16 %v149
    %v767 = vunpack.c.l.b16 %v150
    %v768 = vunpack.c.l.b16 %v151
    %v769 = vunpack.c.l.b16 %v152
    %v770 = vunpack.c.l.b16 %v153
    %v771 = vunpack.c.l.b16 %v154
    %v772 = vunpack.c.l.b16 %v155
    %v773 = vunpack.c.l.b16 %v156
    %v774 = vunpack.c.l.b16 %v157
    %v775 = vunpack.c.l.b16 %v158
    %v776 = vunpack.c.l.b16 %v159
    %v777 = vunpack.c.l.b16 %v160
    %v778 = vunpack.c.l.b16 %v161
    %v779 = vunpack.c.l.b16 %v162
    %v780 = vunpack.c.l.b16 %v163
    %v781 = vunpack.c.l.b16 %v164
    %v782 = vunpack.c.l.b16 %v165
    %v783 = vunpack.c.l.b16 %v166
    %v784 = vunpack.c.l.b16 %v167
    %v785 = vunpack.c.l.b16 %v168
    %v786 = vunpack.c.l.b16 %v169
    %v787 = vunpack.c.l.b16 %v170
    %v788 = vunpack.c.l.b16 %v171
    %v789 = vunpack.c.l.b16 %v172
    %v790 = vunpack.c.l.b16 %v173
    %v791 = vunpack.c.l.b16 %v174
    %v792 = vunpack.c.l.b16 %v175
    %v793 = vunpack.c.l.b16 %v176
    %v794 = vunpack.c.l.b16 %v177
    %v795 = vunpack.c.l.b16 %v178
    %v796 = vunpack.c.l.b16 %v179
    %v797 = vunpack.c.l.b16 %v180
    %v798 = vunpack.c.l.b16 %v181
    %v799 = vunpack.c.l.b16 %v182
    %v800 = vunpack.c.l.b16 %v183
    %v801 = vunpack.c.l.b16 %v184
    %v802 = vunpack.c.l.b16 %v185
    %v803 = vunpack.c.l.b16 %v186
    %v804 = vunpack.c.l.b16 %v187
    %v805 = vunpack.c.l.b16 %v188
    %v806 = vunpack.c.l.b16 %v189
    %v807 = vunpack.c.l.b16 %v190
    %v808 = vunpack.c.l.b16 %v191
    %v809 = vunpack.c.l.b16 %v192
    %v810 = vunpack.c.l.b16 %v193
    %v811 = vunpack.c.l.b16 %v194
    %v812 = vunpack.c.l.b16 %v195
    %v813 = vunpack.c.l.b16 %v196
    %v814 = vunpack.c.l.b16 %v197
    %v815 = vunpack.c.l.b16 %v198
    %v816 = vunpack.c.l.b16 %v199
    %v817 = vunpack.c.l.b16 %v200
    %v818 = vunpack.c.l.b16 %v201
    %v819 = vunpack.c.l.b16 %v202
    %v820 = vunpack.c.l.b16 %v203
    %v821 = vunpack.c.l.b16 %v204
    %v822 = vunpack.c.l.b16 %v205
    %v823 = vunpack.c.l.b16 %v206
    %v824 = vunpack.c.l.b16 %v207
    %v825 = vunpack.c.l.b16 %v208
    %v826 = vunpack.c.l.b16 %v209
    %v827 = vunpack.c.l.b16 %v210
    %v828 = vunpack.c.l.b16 %v211
    %v829 = vunpack.c.l.b16 %v212
    %v830 = vunpack.c.l.b16 %v213
    %v831 = vunpack.c.l.b16 %v214
    %v832 = vunpack.c.l.b16 %v215
    %v833 = vunpack.c.l.b16 %v216
    %v834 = vunpack.c.l.b16 %v217
    %v835 = vunpack.c.l.b16 %v218
    %v836 = vunpack.c.l.b16 %v219
    %v837 = vunpack.c.l.b16 %v220
    %v838 = vunpack.c.l.b16 %v221
    %v839 = vunpack.c.l.b16 %v222
    %v840 = vunpack.c.l.b16 %v223
    %v841 = vunpack.c.l.b16 %v224
    %v842 = vunpack.c.l.b16 %v225
    %v843 = vunpack.c.l.b16 %v226
    %v844 = vunpack.c.l.b16 %v227
    %v845 = vunpack.c.l.b16 %v228
    %v846 = vunpack.c.l.b16 %v229
    %v847 = vunpack.c.l.b16 %v230
    %v848 = vunpack.c.l.b16 %v231
    %v849 = vunpack.c.l.b16 %v232
    %v850 = vunpack.c.l.b16 %v233
    %v851 = vunpack.c.l.b16 %v234
    %v852 = vunpack.c.l.b16 %v235
    %v853 = vunpack.c.l.b16 %v236
    %v854 = vunpack.c.l.b16 %v237
    %v855 = vunpack.c.l.b16 %v238
    %v856 = vunpack.c.l.b16 %v239
    %v857 = vunpack.c.l.b16 %v240
    %v858 = vunpack.c.l.b16 %v241
    %v859 = vunpack.c.l.b16 %v242
    %v860 = vunpack.c.l.b16 %v243
    %v861 = vunpack.c.l.b16 %v244
    %v862 = vunpack.c.l.b16 %v245
    %v863 = vunpack.c.l.b16 %v246
    %v864 = vunpack.c.l.b16 %v247
    %v865 = vunpack.c.l.b16 %v248
    %v866 = vunpack.c.l.b16 %v249
    %v867 = vunpack.c.l.b16 %v250
    %v868 = vunpack.c.l.b16 %v251
    %v869 = vunpack.c.l.b16 %v252
    %v870 = vunpack.c.l.b16 %v253
    %v871 = vunpack.c.l.b16 %v254
    %v872 = vpack.c.b16 %v729, %v728
    %v873 = vpack.c.b16 %v731, %v730
    %v874 = vpack.c.b16 %v733, %v732
    %v875 = vpack.c.b16 %v735, %v734
    %v876 = vpack.c.b16 %v737, %v736
    %v877 = vpack.c.b16 %v739, %v738
    %v878 = vpack.c.b16 %v741, %v740
    %v879 = vpack.c.b16 %v743, %v742
    %v880 = vpack.c.b16 %v745, %v744
    %v881 = vpack.c.b16 %v747, %v746
    %v882 = vpack.c.b16 %v749, %v748
    %v883 = vpack.c.b16 %v751, %v750
    %v884 = vpack.c.b16 %v753, %v752
    %v885 = vpack.c.b16 %v755, %v754
    %v886 = vpack.c.b16 %v757, %v756
    %v887 = vpack.c.b16 %v759, %v758
    %v888 = vpack.c.b16 %v761, %v760
    %v889 = vpack.c.b16 %v763, %v762
    %v890 = vpack.c.b16 %v765, %v764
    %v891 = vpack.c.b16 %v767, %v766
    %v892 = vpack.c.b16 %v769, %v768
    %v893 = vpack.c.b16 %v771, %v770
    %v894 = vpack.c.b16 %v773, %v772
    %v895 = vpack.c.b16 %v775, %v774
    %v896 = vpack.c.b16 %v777, %v776
    %v897 = vpack.c.b16 %v779, %v778
    %v898 = vpack.c.b16 %v781, %v780
    %v899 = vpack.c.b16 %v783, %v782
    %v900 = vpack.c.b16 %v785, %v784
    %v901 = vpack.c.b16 %v787, %v786
    %v902 = vpack.c.b16 %v789, %v788
    %v903 = vpack.c.b16 %v791, %v790
    %v904 = vpack.c.b16 %v793, %v792
    %v905 = vpack.c.b16 %v795, %v794
    %v906 = vpack.c.b16 %v797, %v796
    %v907 = vpack.c.b16 %v799, %v798
    %v908 = vpack.c.b16 %v801, %v800
    %v909 = vpack.c.b16 %v803, %v802
    %v910 = vpack.c.b16 %v805, %v804
    %v911 = vpack.c.b16 %v807, %v806
    %v912 = vpack.c.b16 %v809, %v808
    %v913 = vpack.c.b16 %v811, %v810
    %v914 = vpack.c.b16 %v813, %v812
    %v915 = vpack.c.b16 %v815, %v814
    %v916 = vpack.c.b16 %v817, %v816
    %v917 = vpack.c.b16 %v819, %v818
    %v918 = vpack.c.b16 %v821, %v820
    %v919 = vpack.c.b16 %v823, %v822
    %v920 = vpack.c.b16 %v825, %v824
    %v921 = vpack.c.b16 %v827, %v826
    %v922 = vpack.c.b16 %v829, %v828
    %v923 = vpack.c.b16 %v831, %v830
    %v924 = vpack.c.b16 %v833, %v832
    %v925 = vpack.c.b16 %v835, %v834
    %v926 = vpack.c.b16 %v837, %v836
    %v927 = vpack.c.b16 %v839, %v838
    %v928 = vpack.c.b16 %v841, %v840
    %v929 = vpack.c.b16 %v843, %v842
    %v930 = vpack.c.b16 %v845, %v844
    %v931 = vpack.c.b16 %v847, %v846
    %v932 = vpack.c.b16 %v849, %v848
    %v933 = vpack.c.b16 %v851, %v850
    %v934 = vpack.c.b16 %v853, %v852
    %v935 = vpack.c.b16 %v855, %v854
    %v936 = vpack.c.b16 %v857, %v856
    %v937 = vpack.c.b16 %v859, %v858
    %v938 = vpack.c.b16 %v861, %v860
    %v939 = vpack.c.b16 %v863, %v862
    %v940 = vpack.c.b16 %v865, %v864
    %v941 = vpack.c.b16 %v867, %v866
    %v942 = vpack.c.b16 %v869, %v868
    %v943 = vpack.c.b16 %v871, %v870
    %1016 = vmatprep.subr.bf16.mxu0 0
    %1017 = vmatpush1.bf16.msra.mxu0 %v879
    %1018 = vmatprep.subr.bf16.mxu0 0
    %1019 = vmatpush1.bf16.msra.mxu0 %v878
    %1020 = vmatprep.subr.bf16.mxu0 0
    %1021 = vmatpush1.bf16.msra.mxu0 %v877
    %1022 = vmatprep.subr.bf16.mxu0 0
    %1023 = vmatpush1.bf16.msra.mxu0 %v876
    %1024 = vmatprep.subr.bf16.mxu0 0
    %1025 = vmatpush1.bf16.msra.mxu0 %v875
    %1026 = vmatprep.subr.bf16.mxu0 0
    %1027 = vmatpush1.bf16.msra.mxu0 %v874
    %1028 = vmatprep.subr.bf16.mxu0 0
    %1029 = vmatpush1.bf16.msra.mxu0 %v873
    %1030 = vmatprep.subr.bf16.mxu0 0
    %1031 = vmatpush1.bf16.msra.mxu0 %v872
    %1032 = vmatprep.subr.bf16.mxu0 0
    %1033 = vmatpush2.bf16.msra.mxu0 %v887
    %1034 = vmatprep.subr.bf16.mxu0 0
    %1035 = vmatpush2.bf16.msra.mxu0 %v886
    %1036 = vmatprep.subr.bf16.mxu0 0
    %1037 = vmatpush2.bf16.msra.mxu0 %v885
    %1038 = vmatprep.subr.bf16.mxu0 0
    %1039 = vmatpush2.bf16.msra.mxu0 %v884
    %1040 = vmatprep.subr.bf16.mxu0 0
    %1041 = vmatpush2.bf16.msra.mxu0 %v883
    %1042 = vmatprep.subr.bf16.mxu0 0
    %1043 = vmatpush2.bf16.msra.mxu0 %v882
    %1044 = vmatprep.subr.bf16.mxu0 0
    %1045 = vmatpush2.bf16.msra.mxu0 %v881
    %1046 = vmatprep.subr.bf16.mxu0 0
    %1047 = vmatpush2.bf16.msra.mxu0 %v880
    %1048 = vmatprep.mubr.bf16.mxu0 %v459
    %1049 = vmatmul.mubr.bf16.gmra.mxu0 %v458
    %v1050 = vpop.f32.mrf.mxu0
    %v1051 = vadd.f32 %v260, %v1050
    %v1052 = vpop.f32.mrf.mxu0
    %v1053 = vpop.f32.mrf.mxu0
    %v1054 = vadd.f32 %v260, %v1053
    %v1055 = vpop.f32.mrf.mxu0
    %1056 = vmatprep.mubr.bf16.mxu0 %v468
    %1057 = vmatmul.mubr.bf16.gmra.mxu0 %v467
    %v1058 = vpop.f32.mrf.mxu0
    %v1059 = vadd.f32 %v260, %v1058
    %v1060 = vpop.f32.mrf.mxu0
    %v1061 = vpop.f32.mrf.mxu0
    %v1062 = vadd.f32 %v260, %v1061
    %v1063 = vpop.f32.mrf.mxu0
    %1064 = vmatprep.mubr.bf16.mxu0 %v477
    %1065 = vmatmul.mubr.bf16.gmra.mxu0 %v476
    %v1066 = vpop.f32.mrf.mxu0
    %v1067 = vadd.f32 %v260, %v1066
    %v1068 = vpop.f32.mrf.mxu0
    %v1069 = vpop.f32.mrf.mxu0
    %v1070 = vadd.f32 %v260, %v1069
    %v1071 = vpop.f32.mrf.mxu0
    %1072 = vmatprep.mubr.bf16.mxu0 %v486
    %1073 = vmatmul.mubr.bf16.gmra.mxu0 %v485
    %v1074 = vpop.f32.mrf.mxu0
    %v1075 = vadd.f32 %v260, %v1074
    %v1076 = vpop.f32.mrf.mxu0
    %v1077 = vpop.f32.mrf.mxu0
    %v1078 = vadd.f32 %v260, %v1077
    %v1079 = vpop.f32.mrf.mxu0
    %1080 = vmatprep.mubr.bf16.mxu0 %v495
    %1081 = vmatmul.mubr.bf16.gmra.mxu0 %v494
    %v1082 = vpop.f32.mrf.mxu0
    %v1083 = vadd.f32 %v260, %v1082
    %v1084 = vpop.f32.mrf.mxu0
    %v1085 = vpop.f32.mrf.mxu0
    %v1086 = vadd.f32 %v260, %v1085
    %v1087 = vpop.f32.mrf.mxu0
    %1088 = vmatprep.mubr.bf16.mxu0 %v504
    %1089 = vmatmul.mubr.bf16.gmra.mxu0 %v503
    %v1090 = vpop.f32.mrf.mxu0
    %v1091 = vadd.f32 %v260, %v1090
    %v1092 = vpop.f32.mrf.mxu0
    %v1093 = vpop.f32.mrf.mxu0
    %v1094 = vadd.f32 %v260, %v1093
    %v1095 = vpop.f32.mrf.mxu0
    %1096 = vmatprep.mubr.bf16.mxu0 %v513
    %1097 = vmatmul.mubr.bf16.gmra.mxu0 %v512
    %v1098 = vpop.f32.mrf.mxu0
    %v1099 = vadd.f32 %v260, %v1098
    %v1100 = vpop.f32.mrf.mxu0
    %v1101 = vpop.f32.mrf.mxu0
    %v1102 = vadd.f32 %v260, %v1101
    %v1103 = vpop.f32.mrf.mxu0
    %1104 = vdwg.mxu0
    %1105 = vmatprep.subr.bf16.mxu0 0
    %1106 = vmatpush1.bf16.msra.mxu0 %v895
    %1107 = vmatprep.subr.bf16.mxu0 0
    %1108 = vmatpush1.bf16.msra.mxu0 %v894
    %1109 = vmatprep.subr.bf16.mxu0 0
    %1110 = vmatpush1.bf16.msra.mxu0 %v893
    %1111 = vmatprep.subr.bf16.mxu0 0
    %1112 = vmatpush1.bf16.msra.mxu0 %v892
    %1113 = vmatprep.subr.bf16.mxu0 0
    %1114 = vmatpush1.bf16.msra.mxu0 %v891
    %1115 = vmatprep.subr.bf16.mxu0 0
    %1116 = vmatpush1.bf16.msra.mxu0 %v890
    %1117 = vmatprep.subr.bf16.mxu0 0
    %1118 = vmatpush1.bf16.msra.mxu0 %v889
    %1119 = vmatprep.subr.bf16.mxu0 0
    %1120 = vmatpush1.bf16.msra.mxu0 %v888
    %1121 = vmatprep.subr.bf16.mxu0 0
    %1122 = vmatpush2.bf16.msra.mxu0 %v903
    %1123 = vmatprep.subr.bf16.mxu0 0
    %1124 = vmatpush2.bf16.msra.mxu0 %v902
    %1125 = vmatprep.subr.bf16.mxu0 0
    %1126 = vmatpush2.bf16.msra.mxu0 %v901
    %1127 = vmatprep.subr.bf16.mxu0 0
    %1128 = vmatpush2.bf16.msra.mxu0 %v900
    %1129 = vmatprep.subr.bf16.mxu0 0
    %1130 = vmatpush2.bf16.msra.mxu0 %v899
    %1131 = vmatprep.subr.bf16.mxu0 0
    %1132 = vmatpush2.bf16.msra.mxu0 %v898
    %1133 = vmatprep.subr.bf16.mxu0 0
    %1134 = vmatpush2.bf16.msra.mxu0 %v897
    %1135 = vmatprep.subr.bf16.mxu0 0
    %1136 = vmatpush2.bf16.msra.mxu0 %v896
    %1137 = vmatprep.mubr.bf16.mxu0 %v461
    %1138 = vmatmul.mubr.bf16.gmra.mxu0 %v460
    %v1139 = vpop.f32.mrf.mxu0
    %v1140 = vadd.f32 %v1051, %v1139
    %v1141 = vpop.f32.mrf.mxu0
    %v1142 = vpop.f32.mrf.mxu0
    %v1143 = vadd.f32 %v1054, %v1142
    %v1144 = vpop.f32.mrf.mxu0
    %1145 = vmatprep.mubr.bf16.mxu0 %v470
    %1146 = vmatmul.mubr.bf16.gmra.mxu0 %v469
    %v1147 = vpop.f32.mrf.mxu0
    %v1148 = vadd.f32 %v1059, %v1147
    %v1149 = vpop.f32.mrf.mxu0
    %v1150 = vpop.f32.mrf.mxu0
    %v1151 = vadd.f32 %v1062, %v1150
    %v1152 = vpop.f32.mrf.mxu0
    %1153 = vmatprep.mubr.bf16.mxu0 %v479
    %1154 = vmatmul.mubr.bf16.gmra.mxu0 %v478
    %v1155 = vpop.f32.mrf.mxu0
    %v1156 = vadd.f32 %v1067, %v1155
    %v1157 = vpop.f32.mrf.mxu0
    %v1158 = vpop.f32.mrf.mxu0
    %v1159 = vadd.f32 %v1070, %v1158
    %v1160 = vpop.f32.mrf.mxu0
    %1161 = vmatprep.mubr.bf16.mxu0 %v488
    %1162 = vmatmul.mubr.bf16.gmra.mxu0 %v487
    %v1163 = vpop.f32.mrf.mxu0
    %v1164 = vadd.f32 %v1075, %v1163
    %v1165 = vpop.f32.mrf.mxu0
    %v1166 = vpop.f32.mrf.mxu0
    %v1167 = vadd.f32 %v1078, %v1166
    %v1168 = vpop.f32.mrf.mxu0
    %1169 = vmatprep.mubr.bf16.mxu0 %v497
    %1170 = vmatmul.mubr.bf16.gmra.mxu0 %v496
    %v1171 = vpop.f32.mrf.mxu0
    %v1172 = vadd.f32 %v1083, %v1171
    %v1173 = vpop.f32.mrf.mxu0
    %v1174 = vpop.f32.mrf.mxu0
    %v1175 = vadd.f32 %v1086, %v1174
    %v1176 = vpop.f32.mrf.mxu0
    %1177 = vmatprep.mubr.bf16.mxu0 %v506
    %1178 = vmatmul.mubr.bf16.gmra.mxu0 %v505
    %v1179 = vpop.f32.mrf.mxu0
    %v1180 = vadd.f32 %v1091, %v1179
    %v1181 = vpop.f32.mrf.mxu0
    %v1182 = vpop.f32.mrf.mxu0
    %v1183 = vadd.f32 %v1094, %v1182
    %v1184 = vpop.f32.mrf.mxu0
    %1185 = vmatprep.mubr.bf16.mxu0 %v515
    %1186 = vmatmul.mubr.bf16.gmra.mxu0 %v514
    %v1187 = vpop.f32.mrf.mxu0
    %v1188 = vadd.f32 %v1099, %v1187
    %v1189 = vpop.f32.mrf.mxu0
    %v1190 = vpop.f32.mrf.mxu0
    %v1191 = vadd.f32 %v1102, %v1190
    %v1192 = vpop.f32.mrf.mxu0
    %1193 = vdwg.mxu0
    %1194 = vmatprep.subr.bf16.mxu0 0
    %1195 = vmatpush1.bf16.msra.mxu0 %v911
    %1196 = vmatprep.subr.bf16.mxu0 0
    %1197 = vmatpush1.bf16.msra.mxu0 %v910
    %1198 = vmatprep.subr.bf16.mxu0 0
    %1199 = vmatpush1.bf16.msra.mxu0 %v909
    %1200 = vmatprep.subr.bf16.mxu0 0
    %1201 = vmatpush1.bf16.msra.mxu0 %v908
    %1202 = vmatprep.subr.bf16.mxu0 0
    %1203 = vmatpush1.bf16.msra.mxu0 %v907
    %1204 = vmatprep.subr.bf16.mxu0 0
    %1205 = vmatpush1.bf16.msra.mxu0 %v906
    %1206 = vmatprep.subr.bf16.mxu0 0
    %1207 = vmatpush1.bf16.msra.mxu0 %v905
    %1208 = vmatprep.subr.bf16.mxu0 0
    %1209 = vmatpush1.bf16.msra.mxu0 %v904
    %1210 = vmatprep.subr.bf16.mxu0 0
    %1211 = vmatpush2.bf16.msra.mxu0 %v919
    %1212 = vmatprep.subr.bf16.mxu0 0
    %1213 = vmatpush2.bf16.msra.mxu0 %v918
    %1214 = vmatprep.subr.bf16.mxu0 0
    %1215 = vmatpush2.bf16.msra.mxu0 %v917
    %1216 = vmatprep.subr.bf16.mxu0 0
    %1217 = vmatpush2.bf16.msra.mxu0 %v916
    %1218 = vmatprep.subr.bf16.mxu0 0
    %1219 = vmatpush2.bf16.msra.mxu0 %v915
    %1220 = vmatprep.subr.bf16.mxu0 0
    %1221 = vmatpush2.bf16.msra.mxu0 %v914
    %1222 = vmatprep.subr.bf16.mxu0 0
    %1223 = vmatpush2.bf16.msra.mxu0 %v913
    %1224 = vmatprep.subr.bf16.mxu0 0
    %1225 = vmatpush2.bf16.msra.mxu0 %v912
    %1226 = vmatprep.mubr.bf16.mxu0 %v463
    %1227 = vmatmul.mubr.bf16.gmra.mxu0 %v462
    %v1228 = vpop.f32.mrf.mxu0
    %v1229 = vadd.f32 %v1140, %v1228
    %v1230 = vpop.f32.mrf.mxu0
    %v1231 = vpop.f32.mrf.mxu0
    %v1232 = vadd.f32 %v1143, %v1231
    %v1233 = vpop.f32.mrf.mxu0
    %1234 = vmatprep.mubr.bf16.mxu0 %v472
    %1235 = vmatmul.mubr.bf16.gmra.mxu0 %v471
    %v1236 = vpop.f32.mrf.mxu0
    %v1237 = vadd.f32 %v1148, %v1236
    %v1238 = vpop.f32.mrf.mxu0
    %v1239 = vpop.f32.mrf.mxu0
    %v1240 = vadd.f32 %v1151, %v1239
    %v1241 = vpop.f32.mrf.mxu0
    %1242 = vmatprep.mubr.bf16.mxu0 %v481
    %1243 = vmatmul.mubr.bf16.gmra.mxu0 %v480
    %v1244 = vpop.f32.mrf.mxu0
    %v1245 = vadd.f32 %v1156, %v1244
    %v1246 = vpop.f32.mrf.mxu0
    %v1247 = vpop.f32.mrf.mxu0
    %v1248 = vadd.f32 %v1159, %v1247
    %v1249 = vpop.f32.mrf.mxu0
    %1250 = vmatprep.mubr.bf16.mxu0 %v490
    %1251 = vmatmul.mubr.bf16.gmra.mxu0 %v489
    %v1252 = vpop.f32.mrf.mxu0
    %v1253 = vadd.f32 %v1164, %v1252
    %v1254 = vpop.f32.mrf.mxu0
    %v1255 = vpop.f32.mrf.mxu0
    %v1256 = vadd.f32 %v1167, %v1255
    %v1257 = vpop.f32.mrf.mxu0
    %1258 = vmatprep.mubr.bf16.mxu0 %v499
    %1259 = vmatmul.mubr.bf16.gmra.mxu0 %v498
    %v1260 = vpop.f32.mrf.mxu0
    %v1261 = vadd.f32 %v1172, %v1260
    %v1262 = vpop.f32.mrf.mxu0
    %v1263 = vpop.f32.mrf.mxu0
    %v1264 = vadd.f32 %v1175, %v1263
    %v1265 = vpop.f32.mrf.mxu0
    %1266 = vmatprep.mubr.bf16.mxu0 %v508
    %1267 = vmatmul.mubr.bf16.gmra.mxu0 %v507
    %v1268 = vpop.f32.mrf.mxu0
    %v1269 = vadd.f32 %v1180, %v1268
    %v1270 = vpop.f32.mrf.mxu0
    %v1271 = vpop.f32.mrf.mxu0
    %v1272 = vadd.f32 %v1183, %v1271
    %v1273 = vpop.f32.mrf.mxu0
    %1274 = vmatprep.mubr.bf16.mxu0 %v517
    %1275 = vmatmul.mubr.bf16.gmra.mxu0 %v516
    %v1276 = vpop.f32.mrf.mxu0
    %v1277 = vadd.f32 %v1188, %v1276
    %v1278 = vpop.f32.mrf.mxu0
    %v1279 = vpop.f32.mrf.mxu0
    %v1280 = vadd.f32 %v1191, %v1279
    %v1281 = vpop.f32.mrf.mxu0
    %1282 = vdwg.mxu0
    %1283 = vmatprep.subr.bf16.mxu0 0
    %1284 = vmatpush1.bf16.msra.mxu0 %v927
    %1285 = vmatprep.subr.bf16.mxu0 0
    %1286 = vmatpush1.bf16.msra.mxu0 %v926
    %1287 = vmatprep.subr.bf16.mxu0 0
    %1288 = vmatpush1.bf16.msra.mxu0 %v925
    %1289 = vmatprep.subr.bf16.mxu0 0
    %1290 = vmatpush1.bf16.msra.mxu0 %v924
    %1291 = vmatprep.subr.bf16.mxu0 0
    %1292 = vmatpush1.bf16.msra.mxu0 %v923
    %1293 = vmatprep.subr.bf16.mxu0 0
    %1294 = vmatpush1.bf16.msra.mxu0 %v922
    %1295 = vmatprep.subr.bf16.mxu0 0
    %1296 = vmatpush1.bf16.msra.mxu0 %v921
    %1297 = vmatprep.subr.bf16.mxu0 0
    %1298 = vmatpush1.bf16.msra.mxu0 %v920
    %1299 = vmatprep.subr.bf16.mxu0 0
    %1300 = vmatpush2.bf16.msra.mxu0 %v935
    %1301 = vmatprep.subr.bf16.mxu0 0
    %1302 = vmatpush2.bf16.msra.mxu0 %v934
    %1303 = vmatprep.subr.bf16.mxu0 0
    %1304 = vmatpush2.bf16.msra.mxu0 %v933
    %1305 = vmatprep.subr.bf16.mxu0 0
    %1306 = vmatpush2.bf16.msra.mxu0 %v932
    %1307 = vmatprep.subr.bf16.mxu0 0
    %1308 = vmatpush2.bf16.msra.mxu0 %v931
    %1309 = vmatprep.subr.bf16.mxu0 0
    %1310 = vmatpush2.bf16.msra.mxu0 %v930
    %1311 = vmatprep.subr.bf16.mxu0 0
    %1312 = vmatpush2.bf16.msra.mxu0 %v929
    %1313 = vmatprep.subr.bf16.mxu0 0
    %1314 = vmatpush2.bf16.msra.mxu0 %v928
    %1315 = vmatprep.mubr.bf16.mxu0 %v465
    %1316 = vmatmul.mubr.bf16.gmra.mxu0 %v464
    %v1317 = vpop.f32.mrf.mxu0
    %v1318 = vadd.f32 %v1229, %v1317
    %v1319 = vpop.f32.mrf.mxu0
    %v1320 = vpop.f32.mrf.mxu0
    %v1321 = vadd.f32 %v1232, %v1320
    %v1322 = vpop.f32.mrf.mxu0
    %1323 = vmatprep.mubr.bf16.mxu0 %v474
    %1324 = vmatmul.mubr.bf16.gmra.mxu0 %v473
    %v1325 = vpop.f32.mrf.mxu0
    %v1326 = vadd.f32 %v1237, %v1325
    %v1327 = vpop.f32.mrf.mxu0
    %v1328 = vpop.f32.mrf.mxu0
    %v1329 = vadd.f32 %v1240, %v1328
    %v1330 = vpop.f32.mrf.mxu0
    %1331 = vmatprep.mubr.bf16.mxu0 %v483
    %1332 = vmatmul.mubr.bf16.gmra.mxu0 %v482
    %v1333 = vpop.f32.mrf.mxu0
    %v1334 = vadd.f32 %v1245, %v1333
    %v1335 = vpop.f32.mrf.mxu0
    %v1336 = vpop.f32.mrf.mxu0
    %v1337 = vadd.f32 %v1248, %v1336
    %v1338 = vpop.f32.mrf.mxu0
    %1339 = vmatprep.mubr.bf16.mxu0 %v492
    %1340 = vmatmul.mubr.bf16.gmra.mxu0 %v491
    %v1341 = vpop.f32.mrf.mxu0
    %v1342 = vadd.f32 %v1253, %v1341
    %v1343 = vpop.f32.mrf.mxu0
    %v1344 = vpop.f32.mrf.mxu0
    %v1345 = vadd.f32 %v1256, %v1344
    %v1346 = vpop.f32.mrf.mxu0
    %1347 = vmatprep.mubr.bf16.mxu0 %v501
    %1348 = vmatmul.mubr.bf16.gmra.mxu0 %v500
    %v1349 = vpop.f32.mrf.mxu0
    %v1350 = vadd.f32 %v1261, %v1349
    %v1351 = vpop.f32.mrf.mxu0
    %v1352 = vpop.f32.mrf.mxu0
    %v1353 = vadd.f32 %v1264, %v1352
    %v1354 = vpop.f32.mrf.mxu0
    %1355 = vmatprep.mubr.bf16.mxu0 %v510
    %1356 = vmatmul.mubr.bf16.gmra.mxu0 %v509
    %v1357 = vpop.f32.mrf.mxu0
    %v1358 = vadd.f32 %v1269, %v1357
    %v1359 = vpop.f32.mrf.mxu0
    %v1360 = vpop.f32.mrf.mxu0
    %v1361 = vadd.f32 %v1272, %v1360
    %v1362 = vpop.f32.mrf.mxu0
    %1363 = vmatprep.mubr.bf16.mxu0 %v519
    %1364 = vmatmul.mubr.bf16.gmra.mxu0 %v518
    %v1365 = vpop.f32.mrf.mxu0
    %v1366 = vadd.f32 %v1277, %v1365
    %v1367 = vpop.f32.mrf.mxu0
    %v1368 = vpop.f32.mrf.mxu0
    %v1369 = vadd.f32 %v1280, %v1368
    %v1370 = vpop.f32.mrf.mxu0
    %1371 = vdwg.mxu0
    %1372 = vmatprep.subr.bf16.mxu0 0
    %1373 = vmatpush1.bf16.msra.mxu0 %v943
    %1374 = vmatprep.subr.bf16.mxu0 0
    %1375 = vmatpush1.bf16.msra.mxu0 %v942
    %1376 = vmatprep.subr.bf16.mxu0 0
    %1377 = vmatpush1.bf16.msra.mxu0 %v941
    %1378 = vmatprep.subr.bf16.mxu0 0
    %1379 = vmatpush1.bf16.msra.mxu0 %v940
    %1380 = vmatprep.subr.bf16.mxu0 0
    %1381 = vmatpush1.bf16.msra.mxu0 %v939
    %1382 = vmatprep.subr.bf16.mxu0 0
    %1383 = vmatpush1.bf16.msra.mxu0 %v938
    %1384 = vmatprep.subr.bf16.mxu0 0
    %1385 = vmatpush1.bf16.msra.mxu0 %v937
    %1386 = vmatprep.subr.bf16.mxu0 0
    %1387 = vmatpush1.bf16.msra.mxu0 %v936
    %1388 = vmatprep.subr.bf16.mxu0 0
    %1389 = vmatpush2.bf16.msra.mxu0 0
    %1390 = vmatprep.subr.bf16.mxu0 0
    %1391 = vmatpush2.bf16.msra.mxu0 0
    %1392 = vmatprep.subr.bf16.mxu0 0
    %1393 = vmatpush2.bf16.msra.mxu0 0
    %1394 = vmatprep.subr.bf16.mxu0 0
    %1395 = vmatpush2.bf16.msra.mxu0 0
    %1396 = vmatprep.subr.bf16.mxu0 0
    %1397 = vmatpush2.bf16.msra.mxu0 0
    %1398 = vmatprep.subr.bf16.mxu0 0
    %1399 = vmatpush2.bf16.msra.mxu0 0
    %1400 = vmatprep.subr.bf16.mxu0 0
    %1401 = vmatpush2.bf16.msra.mxu0 0
    %1402 = vmatprep.subr.bf16.mxu0 0
    %1403 = vmatpush2.bf16.msra.mxu0 0
    %1404 = vmatprep.mubr.bf16.mxu0 0
    %1405 = vmatmul.mubr.bf16.gmra.mxu0 %v466
    %v1406 = vpop.f32.mrf.mxu0
    %v1407 = vadd.f32 %v1318, %v1406
    %v1408 = vpop.f32.mrf.mxu0
    %v1409 = vpop.f32.mrf.mxu0
    %v1410 = vadd.f32 %v1321, %v1409
    %v1411 = vpop.f32.mrf.mxu0
    %1412 = vmatprep.mubr.bf16.mxu0 0
    %1413 = vmatmul.mubr.bf16.gmra.mxu0 %v475
    %v1414 = vpop.f32.mrf.mxu0
    %v1415 = vadd.f32 %v1326, %v1414
    %v1416 = vpop.f32.mrf.mxu0
    %v1417 = vpop.f32.mrf.mxu0
    %v1418 = vadd.f32 %v1329, %v1417
    %v1419 = vpop.f32.mrf.mxu0
    %1420 = vmatprep.mubr.bf16.mxu0 0
    %1421 = vmatmul.mubr.bf16.gmra.mxu0 %v484
    %v1422 = vpop.f32.mrf.mxu0
    %v1423 = vadd.f32 %v1334, %v1422
    %v1424 = vpop.f32.mrf.mxu0
    %v1425 = vpop.f32.mrf.mxu0
    %v1426 = vadd.f32 %v1337, %v1425
    %v1427 = vpop.f32.mrf.mxu0
    %1428 = vmatprep.mubr.bf16.mxu0 0
    %1429 = vmatmul.mubr.bf16.gmra.mxu0 %v493
    %v1430 = vpop.f32.mrf.mxu0
    %v1431 = vadd.f32 %v1342, %v1430
    %v1432 = vpop.f32.mrf.mxu0
    %v1433 = vpop.f32.mrf.mxu0
    %v1434 = vadd.f32 %v1345, %v1433
    %v1435 = vpop.f32.mrf.mxu0
    %1436 = vmatprep.mubr.bf16.mxu0 0
    %1437 = vmatmul.mubr.bf16.gmra.mxu0 %v502
    %v1438 = vpop.f32.mrf.mxu0
    %v1439 = vadd.f32 %v1350, %v1438
    %v1440 = vpop.f32.mrf.mxu0
    %v1441 = vpop.f32.mrf.mxu0
    %v1442 = vadd.f32 %v1353, %v1441
    %v1443 = vpop.f32.mrf.mxu0
    %1444 = vmatprep.mubr.bf16.mxu0 0
    %1445 = vmatmul.mubr.bf16.gmra.mxu0 %v511
    %v1446 = vpop.f32.mrf.mxu0
    %v1447 = vadd.f32 %v1358, %v1446
    %v1448 = vpop.f32.mrf.mxu0
    %v1449 = vpop.f32.mrf.mxu0
    %v1450 = vadd.f32 %v1361, %v1449
    %v1451 = vpop.f32.mrf.mxu0
    %1452 = vmatprep.mubr.bf16.mxu0 0
    %1453 = vmatmul.mubr.bf16.gmra.mxu0 %v520
    %v1454 = vpop.f32.mrf.mxu0
    %v1455 = vadd.f32 %v1366, %v1454
    %v1456 = vpop.f32.mrf.mxu0
    %v1457 = vpop.f32.mrf.mxu0
    %v1458 = vadd.f32 %v1369, %v1457
    %v1459 = vpop.f32.mrf.mxu0
    %1460 = vdwg.mxu0
    %v1461 = vmax.f32 %v1407, 0.0
    %v1462 = vmax.f32 %v1410, 0.0
    %v1463 = vmax.f32 %v1415, 0.0
    %v1464 = vmax.f32 %v1418, 0.0
    %v1465 = vmax.f32 %v1423, 0.0
    %v1466 = vmax.f32 %v1426, 0.0
    %v1467 = vmax.f32 %v1431, 0.0
    %v1468 = vmax.f32 %v1434, 0.0
    %v1469 = vmax.f32 %v1439, 0.0
    %v1470 = vmax.f32 %v1442, 0.0
    %v1471 = vmax.f32 %v1447, 0.0
    %v1472 = vmax.f32 %v1450, 0.0
    %v1473 = vmax.f32 %v1455, 0.0
    %v1474 = vmax.f32 %v1458, 0.0
    %v1475 = vpack.c.bf16 %v1462, %v1461
    %v1476 = vpack.c.bf16 %v1464, %v1463
    %v1477 = vpack.c.bf16 %v1466, %v1465
    %v1478 = vpack.c.bf16 %v1468, %v1467
    %v1479 = vpack.c.bf16 %v1470, %v1469
    %v1480 = vpack.c.bf16 %v1472, %v1471
    %v1481 = vpack.c.bf16 %v1474, %v1473
    %v1489 = vunpack.c.l.b16 %v1475
    %v1490 = vunpack.c.h.b16 %v1475
    %v1491 = vunpack.c.l.b16 %v1476
    %v1492 = vunpack.c.h.b16 %v1476
    %v1493 = vunpack.c.l.b16 %v1477
    %v1494 = vunpack.c.h.b16 %v1477
    %v1495 = vunpack.c.l.b16 %v1478
    %v1496 = vunpack.c.h.b16 %v1478
    %v1497 = vunpack.c.l.b16 %v1479
    %v1498 = vunpack.c.h.b16 %v1479
    %v1499 = vunpack.c.l.b16 %v1480
    %v1500 = vunpack.c.h.b16 %v1480
    %v1501 = vunpack.c.l.b16 %v1481
    %v1502 = vunpack.c.h.b16 %v1481
    %v1503 = vpack.c.b16 %v1489, %v1489
    %v1504 = vpack.c.b16 %v1490, %v1490
    %v1505 = vpack.c.b16 %v1491, %v1491
    %v1506 = vpack.c.b16 %v1492, %v1492
    %v1507 = vpack.c.b16 %v1493, %v1493
    %v1508 = vpack.c.b16 %v1494, %v1494
    %v1509 = vpack.c.b16 %v1495, %v1495
    %v1510 = vpack.c.b16 %v1496, %v1496
    %v1511 = vpack.c.b16 %v1497, %v1497
    %v1512 = vpack.c.b16 %v1498, %v1498
    %v1513 = vpack.c.b16 %v1499, %v1499
    %v1514 = vpack.c.b16 %v1500, %v1500
    %v1515 = vpack.c.b16 %v1501, %v1501
    %v1516 = vpack.c.b16 %v1502, %v1502
    %1531 = vst [vmem:[%s3] sm:$0xf] %v1503
    %1532 = vst [vmem:[%s3 + $0x4] sm:$0xf] %v1504
    %1533 = vst [vmem:[%s3 + $0x8] sm:$0xf] %v1505
    %1534 = vst [vmem:[%s3 + $0xc] sm:$0xf] %v1506
    %1535 = vst [vmem:[%s3 + $0x10] sm:$0xf] %v1507
    %1536 = vst [vmem:[%s3 + $0x14] sm:$0xf] %v1508
    %1537 = vst [vmem:[%s3 + $0x18] sm:$0xf] %v1509
    %1538 = vst [vmem:[%s3 + $0x1c] sm:$0xf] %v1510
    %1539 = vst [vmem:[%s3 + $0x20] sm:$0xf] %v1511
    %1540 = vst [vmem:[%s3 + $0x24] sm:$0xf] %v1512
    %1541 = vst [vmem:[%s3 + $0x28] sm:$0xf] %v1513
    %1542 = vst [vmem:[%s3 + $0x2c] sm:$0xf] %v1514
    %1543 = vst [vmem:[%s3 + $0x30] sm:$0xf] %v1515
    %1544 = vst [vmem:[%s3 + $0x34] sm:$0xf] %v1516
    // Predicated region
    $region22: #{cnn_forward.5} parent=1 // pred_check
      _
    $region23: #{cnn_forward.5} parent=1 // pred_check_branch
      %1546 = sbr.rel (0) target = $region25
    $region24: #{cnn_forward.5} parent=1 // pred_region
      _
    $region25: #{cnn_forward.5} parent=1 // pred_fallthru
      _
    // Predicated region
    $region26: #{cnn_forward.5} parent=1 // pred_check
      _
    $region27: #{cnn_forward.5} parent=1 // pred_check_branch
      %1548 = sbr.rel (0) target = $region29
    $region28: #{cnn_forward.5} parent=1 // pred_region
      _
    $region29: #{cnn_forward.5} parent=1 // pred_fallthru
      _
    %1549 = vsyncpa [#allocation3], 1
    %1550 = vsyncpa [#allocation5], 1

// kernel: cnn_forward.6
$region0: #{cnn_forward.6}
  #allocation0 [shape = 'u32[]', space=smem, size = 0x4, offset = 0x4, fixed_abs, tag = 'smem constant byte address 0x4 - core index']
  #allocation1 [shape = 'u32[144,128]{1,0:T(1,128)}', space=vmem, size = 0x12000, scoped, tag = 'internal scratch']
  %s0 = inlined_call_operand.vmem [shape: bf16[64,1152], index: 0, kind: input, shape index: {}]
  %s1 = inlined_call_operand.hbm [shape: bf16[1152,256], index: 1, kind: input, shape index: {}]
  %s2 = inlined_call_operand.hbm [shape: f32[1,256], index: 2, kind: input, shape index: {}]
  %s3 = inlined_call_operand.vmem [shape: bf16[64,256], index: 3, kind: output, shape index: {}]
  %s4 = sld [smem:[#allocation0]]
  $region30: #{cnn_forward.6} parent=0
    _
  %s6 = ssub.s32 1, %s4
  %s7 = scalar_select 0, %s6, %s4
  $region1: #{cnn_forward.6} parent=0
    #allocation2 [shape = 'u8[589824]{0}', space=vmem, size = 0x90000, scoped, tag = 'input window, operand 1, single buffered']
    #allocation3 [shape = 's32[1]{0}', space=sflag, size = 0x4, scoped, tag = 'scoped memory for cnn_forward.6']
    #allocation4 [shape = 'u8[1024]{0}', space=vmem, size = 0x400, scoped, tag = 'input window, operand 2, single buffered']
    #allocation5 [shape = 's32[1]{0}', space=sflag, size = 0x4, scoped, tag = 'scoped memory for cnn_forward.6']
    %8 = vsyncpa [#allocation3], 0
    %9 = vsyncpa [#allocation5], 0
    // Predicated region
    $region2: #{cnn_forward.6} parent=1 // pred_check
      _
    $region3: #{cnn_forward.6} parent=1 // pred_check_branch
      %11 = sbr.rel (0) target = $region5
    $region4: #{cnn_forward.6} parent=1 // pred_region
      _
    $region5: #{cnn_forward.6} parent=1 // pred_fallthru
      _
    // Predicated region
    $region6: #{cnn_forward.6} parent=1 // pred_check
      _
    $region7: #{cnn_forward.6} parent=1 // pred_check_branch
      %13 = sbr.rel (0) target = $region9
    $region8: #{cnn_forward.6} parent=1 // pred_region
      %s15 = ssub.s32 18432, 18432
      %16 = vsyncadd [#allocation3], %s15
      %s17 = sshll.u32 [#allocation2], 4
      %s18 = int_to_ptr.vmem [resolvable:$true] %s17
      %23 = dma.hbm_to_vmem [thread:$0]  %s1, 18432, %s18, [#allocation3], 128, 128, 8
    $region9: #{cnn_forward.6} parent=1 // pred_fallthru
      _
    // Predicated region
    $region10: #{cnn_forward.6} parent=1 // pred_check
      _
    $region11: #{cnn_forward.6} parent=1 // pred_check_branch
      %25 = sbr.rel (0) target = $region13
    $region12: #{cnn_forward.6} parent=1 // pred_region
      %s27 = ssub.s32 32, 32
      %28 = vsyncadd [#allocation5], %s27
      %s30 = sshll.u32 [#allocation4], 4
      %s31 = int_to_ptr.vmem [resolvable:$true] %s30
      %33 = dma.hbm_to_vmem [thread:$0]  %s2, 32, %s31, [#allocation5]
    $region13: #{cnn_forward.6} parent=1 // pred_fallthru
      _
    // Predicated region
    $region14: #{cnn_forward.6} parent=1 // pred_check
      _
    $region15: #{cnn_forward.6} parent=1 // pred_check_branch
      %35 = sbr.rel (0) target = $region17
    $region16: #{cnn_forward.6} parent=1 // pred_region
      %36 = dma.done [#allocation3], 18432
    $region17: #{cnn_forward.6} parent=1 // pred_fallthru
      _
    // Predicated region
    $region18: #{cnn_forward.6} parent=1 // pred_check
      _
    $region19: #{cnn_forward.6} parent=1 // pred_check_branch
      %38 = sbr.rel (0) target = $region21
    $region20: #{cnn_forward.6} parent=1 // pred_region
      %39 = dma.done [#allocation5], 32
    $region21: #{cnn_forward.6} parent=1 // pred_fallthru
      _
    %v41 = vld [vmem:[%s0] sm:$0xff]
    %v42 = vld [vmem:[%s0 + $0x8] sm:$0xff]
    %v43 = vld [vmem:[%s0 + $0x10] sm:$0xff]
    %v44 = vld [vmem:[%s0 + $0x18] sm:$0xff]
    %v45 = vld [vmem:[%s0 + $0x20] sm:$0xf]
    %v46 = vld [vmem:[%s0 + $0x24] sm:$0xff]
    %v47 = vld [vmem:[%s0 + $0x2c] sm:$0xff]
    %v48 = vld [vmem:[%s0 + $0x34] sm:$0xff]
    %v49 = vld [vmem:[%s0 + $0x3c] sm:$0xff]
    %v50 = vld [vmem:[%s0 + $0x44] sm:$0xf]
    %v51 = vld [vmem:[%s0 + $0x48] sm:$0xff]
    %v52 = vld [vmem:[%s0 + $0x50] sm:$0xff]
    %v53 = vld [vmem:[%s0 + $0x58] sm:$0xff]
    %v54 = vld [vmem:[%s0 + $0x60] sm:$0xff]
    %v55 = vld [vmem:[%s0 + $0x68] sm:$0xf]
    %v56 = vld [vmem:[%s0 + $0x6c] sm:$0xff]
    %v57 = vld [vmem:[%s0 + $0x74] sm:$0xff]
    %v58 = vld [vmem:[%s0 + $0x7c] sm:$0xff]
    %v59 = vld [vmem:[%s0 + $0x84] sm:$0xff]
    %v60 = vld [vmem:[%s0 + $0x8c] sm:$0xf]
    %v61 = vld [vmem:[%s0 + $0x90] sm:$0xff]
    %v62 = vld [vmem:[%s0 + $0x98] sm:$0xff]
    %v63 = vld [vmem:[%s0 + $0xa0] sm:$0xff]
    %v64 = vld [vmem:[%s0 + $0xa8] sm:$0xff]
    %v65 = vld [vmem:[%s0 + $0xb0] sm:$0xf]
    %v66 = vld [vmem:[%s0 + $0xb4] sm:$0xff]
    %v67 = vld [vmem:[%s0 + $0xbc] sm:$0xff]
    %v68 = vld [vmem:[%s0 + $0xc4] sm:$0xff]
    %v69 = vld [vmem:[%s0 + $0xcc] sm:$0xff]
    %v70 = vld [vmem:[%s0 + $0xd4] sm:$0xf]
    %v71 = vld [vmem:[%s0 + $0xd8] sm:$0xff]
    %v72 = vld [vmem:[%s0 + $0xe0] sm:$0xff]
    %v73 = vld [vmem:[%s0 + $0xe8] sm:$0xff]
    %v74 = vld [vmem:[%s0 + $0xf0] sm:$0xff]
    %v75 = vld [vmem:[%s0 + $0xf8] sm:$0xf]
    %v76 = vld [vmem:[%s0 + $0xfc] sm:$0xff]
    %v77 = vld [vmem:[%s0 + $0x104] sm:$0xff]
    %v78 = vld [vmem:[%s0 + $0x10c] sm:$0xff]
    %v79 = vld [vmem:[%s0 + $0x114] sm:$0xff]
    %v80 = vld [vmem:[%s0 + $0x11c] sm:$0xf]
    %v81 = vld [vmem:[#allocation2] sm:$0xff]
    %v82 = vld [vmem:[#allocation2 + $0x8] sm:$0xff]
    %v83 = vld [vmem:[#allocation2 + $0x10] sm:$0xff]
    %v84 = vld [vmem:[#allocation2 + $0x18] sm:$0xff]
    %v85 = vld [vmem:[#allocation2 + $0x20] sm:$0xff]
    %v86 = vld [vmem:[#allocation2 + $0x28] sm:$0xff]
    %v87 = vld [vmem:[#allocation2 + $0x30] sm:$0xff]
    %v88 = vld [vmem:[#allocation2 + $0x38] sm:$0xff]
    %v89 = vld [vmem:[#allocation2 + $0x40] sm:$0xff]
    %v90 = vld [vmem:[#allocation2 + $0x48] sm:$0xff]
    %v91 = vld [vmem:[#allocation2 + $0x50] sm:$0xff]
    %v92 = vld [vmem:[#allocation2 + $0x58] sm:$0xff]
    %v93 = vld [vmem:[#allocation2 + $0x60] sm:$0xff]
    %v94 = vld [vmem:[#allocation2 + $0x68] sm:$0xff]
    %v95 = vld [vmem:[#allocation2 + $0x70] sm:$0xff]
    %v96 = vld [vmem:[#allocation2 + $0x78] sm:$0xff]
    %v97 = vld [vmem:[#allocation2 + $0x80] sm:$0xff]
    %v98 = vld [vmem:[#allocation2 + $0x88] sm:$0xff]
    %v99 = vld [vmem:[#allocation2 + $0x90] sm:$0xff]
    %v100 = vld [vmem:[#allocation2 + $0x98] sm:$0xff]
    %v101 = vld [vmem:[#allocation2 + $0xa0] sm:$0xff]
    %v102 = vld [vmem:[#allocation2 + $0xa8] sm:$0xff]
    %v103 = vld [vmem:[#allocation2 + $0xb0] sm:$0xff]
    %v104 = vld [vmem:[#allocation2 + $0xb8] sm:$0xff]
    %v105 = vld [vmem:[#allocation2 + $0xc0] sm:$0xff]
    %v106 = vld [vmem:[#allocation2 + $0xc8] sm:$0xff]
    %v107 = vld [vmem:[#allocation2 + $0xd0] sm:$0xff]
    %v108 = vld [vmem:[#allocation2 + $0xd8] sm:$0xff]
    %v109 = vld [vmem:[#allocation2 + $0xe0] sm:$0xff]
    %v110 = vld [vmem:[#allocation2 + $0xe8] sm:$0xff]
    %v111 = vld [vmem:[#allocation2 + $0xf0] sm:$0xff]
    %v112 = vld [vmem:[#allocation2 + $0xf8] sm:$0xff]
    %v113 = vld [vmem:[#allocation2 + $0x100] sm:$0xff]
    %v114 = vld [vmem:[#allocation2 + $0x108] sm:$0xff]
    %v115 = vld [vmem:[#allocation2 + $0x110] sm:$0xff]
    %v116 = vld [vmem:[#allocation2 + $0x118] sm:$0xff]
    %v117 = vld [vmem:[#allocation2 + $0x120] sm:$0xff]
    %v118 = vld [vmem:[#allocation2 + $0x128] sm:$0xff]
    %v119 = vld [vmem:[#allocation2 + $0x130] sm:$0xff]
    %v120 = vld [vmem:[#allocation2 + $0x138] sm:$0xff]
    %v121 = vld [vmem:[#allocation2 + $0x140] sm:$0xff]
    %v122 = vld [vmem:[#allocation2 + $0x148] sm:$0xff]
    %v123 = vld [vmem:[#allocation2 + $0x150] sm:$0xff]
    %v124 = vld [vmem:[#allocation2 + $0x158] sm:$0xff]
    %v125 = vld [vmem:[#allocation2 + $0x160] sm:$0xff]
    %v126 = vld [vmem:[#allocation2 + $0x168] sm:$0xff]
    %v127 = vld [vmem:[#allocation2 + $0x170] sm:$0xff]
    %v128 = vld [vmem:[#allocation2 + $0x178] sm:$0xff]
    %v129 = vld [vmem:[#allocation2 + $0x180] sm:$0xff]
    %v130 = vld [vmem:[#allocation2 + $0x188] sm:$0xff]
    %v131 = vld [vmem:[#allocation2 + $0x190] sm:$0xff]
    %v132 = vld [vmem:[#allocation2 + $0x198] sm:$0xff]
    %v133 = vld [vmem:[#allocation2 + $0x1a0] sm:$0xff]
    %v134 = vld [vmem:[#allocation2 + $0x1a8] sm:$0xff]
    %v135 = vld [vmem:[#allocation2 + $0x1b0] sm:$0xff]
    %v136 = vld [vmem:[#allocation2 + $0x1b8] sm:$0xff]
    %v137 = vld [vmem:[#allocation2 + $0x1c0] sm:$0xff]
    %v138 = vld [vmem:[#allocation2 + $0x1c8] sm:$0xff]
    %v139 = vld [vmem:[#allocation2 + $0x1d0] sm:$0xff]
    %v140 = vld [vmem:[#allocation2 + $0x1d8] sm:$0xff]
    %v141 = vld [vmem:[#allocation2 + $0x1e0] sm:$0xff]
    %v142 = vld [vmem:[#allocation2 + $0x1e8] sm:$0xff]
    %v143 = vld [vmem:[#allocation2 + $0x1f0] sm:$0xff]
    %v144 = vld [vmem:[#allocation2 + $0x1f8] sm:$0xff]
    %v145 = vld [vmem:[#allocation2 + $0x200] sm:$0xff]
    %v146 = vld [vmem:[#allocation2 + $0x208] sm:$0xff]
    %v147 = vld [vmem:[#allocation2 + $0x210] sm:$0xff]
    %v148 = vld [vmem:[#allocation2 + $0x218] sm:$0xff]
    %v149 = vld [vmem:[#allocation2 + $0x220] sm:$0xff]
    %v150 = vld [vmem:[#allocation2 + $0x228] sm:$0xff]
    %v151 = vld [vmem:[#allocation2 + $0x230] sm:$0xff]
    %v152 = vld [vmem:[#allocation2 + $0x238] sm:$0xff]
    %v153 = vld [vmem:[#allocation2 + $0x240] sm:$0xff]
    %v154 = vld [vmem:[#allocation2 + $0x248] sm:$0xff]
    %v155 = vld [vmem:[#allocation2 + $0x250] sm:$0xff]
    %v156 = vld [vmem:[#allocation2 + $0x258] sm:$0xff]
    %v157 = vld [vmem:[#allocation2 + $0x260] sm:$0xff]
    %v158 = vld [vmem:[#allocation2 + $0x268] sm:$0xff]
    %v159 = vld [vmem:[#allocation2 + $0x270] sm:$0xff]
    %v160 = vld [vmem:[#allocation2 + $0x278] sm:$0xff]
    %v161 = vld [vmem:[#allocation2 + $0x280] sm:$0xff]
    %v162 = vld [vmem:[#allocation2 + $0x288] sm:$0xff]
    %v163 = vld [vmem:[#allocation2 + $0x290] sm:$0xff]
    %v164 = vld [vmem:[#allocation2 + $0x298] sm:$0xff]
    %v165 = vld [vmem:[#allocation2 + $0x2a0] sm:$0xff]
    %v166 = vld [vmem:[#allocation2 + $0x2a8] sm:$0xff]
    %v167 = vld [vmem:[#allocation2 + $0x2b0] sm:$0xff]
    %v168 = vld [vmem:[#allocation2 + $0x2b8] sm:$0xff]
    %v169 = vld [vmem:[#allocation2 + $0x2c0] sm:$0xff]
    %v170 = vld [vmem:[#allocation2 + $0x2c8] sm:$0xff]
    %v171 = vld [vmem:[#allocation2 + $0x2d0] sm:$0xff]
    %v172 = vld [vmem:[#allocation2 + $0x2d8] sm:$0xff]
    %v173 = vld [vmem:[#allocation2 + $0x2e0] sm:$0xff]
    %v174 = vld [vmem:[#allocation2 + $0x2e8] sm:$0xff]
    %v175 = vld [vmem:[#allocation2 + $0x2f0] sm:$0xff]
    %v176 = vld [vmem:[#allocation2 + $0x2f8] sm:$0xff]
    %v177 = vld [vmem:[#allocation2 + $0x300] sm:$0xff]
    %v178 = vld [vmem:[#allocation2 + $0x308] sm:$0xff]
    %v179 = vld [vmem:[#allocation2 + $0x310] sm:$0xff]
    %v180 = vld [vmem:[#allocation2 + $0x318] sm:$0xff]
    %v181 = vld [vmem:[#allocation2 + $0x320] sm:$0xff]
    %v182 = vld [vmem:[#allocation2 + $0x328] sm:$0xff]
    %v183 = vld [vmem:[#allocation2 + $0x330] sm:$0xff]
    %v184 = vld [vmem:[#allocation2 + $0x338] sm:$0xff]
    %v185 = vld [vmem:[#allocation2 + $0x340] sm:$0xff]
    %v186 = vld [vmem:[#allocation2 + $0x348] sm:$0xff]
    %v187 = vld [vmem:[#allocation2 + $0x350] sm:$0xff]
    %v188 = vld [vmem:[#allocation2 + $0x358] sm:$0xff]
    %v189 = vld [vmem:[#allocation2 + $0x360] sm:$0xff]
    %v190 = vld [vmem:[#allocation2 + $0x368] sm:$0xff]
    %v191 = vld [vmem:[#allocation2 + $0x370] sm:$0xff]
    %v192 = vld [vmem:[#allocation2 + $0x378] sm:$0xff]
    %v193 = vld [vmem:[#allocation2 + $0x380] sm:$0xff]
    %v194 = vld [vmem:[#allocation2 + $0x388] sm:$0xff]
    %v195 = vld [vmem:[#allocation2 + $0x390] sm:$0xff]
    %v196 = vld [vmem:[#allocation2 + $0x398] sm:$0xff]
    %v197 = vld [vmem:[#allocation2 + $0x3a0] sm:$0xff]
    %v198 = vld [vmem:[#allocation2 + $0x3a8] sm:$0xff]
    %v199 = vld [vmem:[#allocation2 + $0x3b0] sm:$0xff]
    %v200 = vld [vmem:[#allocation2 + $0x3b8] sm:$0xff]
    %v201 = vld [vmem:[#allocation2 + $0x3c0] sm:$0xff]
    %v202 = vld [vmem:[#allocation2 + $0x3c8] sm:$0xff]
    %v203 = vld [vmem:[#allocation2 + $0x3d0] sm:$0xff]
    %v204 = vld [vmem:[#allocation2 + $0x3d8] sm:$0xff]
    %v205 = vld [vmem:[#allocation2 + $0x3e0] sm:$0xff]
    %v206 = vld [vmem:[#allocation2 + $0x3e8] sm:$0xff]
    %v207 = vld [vmem:[#allocation2 + $0x3f0] sm:$0xff]
    %v208 = vld [vmem:[#allocation2 + $0x3f8] sm:$0xff]
    %v209 = vld [vmem:[#allocation2 + $0x400] sm:$0xff]
    %v210 = vld [vmem:[#allocation2 + $0x408] sm:$0xff]
    %v211 = vld [vmem:[#allocation2 + $0x410] sm:$0xff]
    %v212 = vld [vmem:[#allocation2 + $0x418] sm:$0xff]
    %v213 = vld [vmem:[#allocation2 + $0x420] sm:$0xff]
    %v214 = vld [vmem:[#allocation2 + $0x428] sm:$0xff]
    %v215 = vld [vmem:[#allocation2 + $0x430] sm:$0xff]
    %v216 = vld [vmem:[#allocation2 + $0x438] sm:$0xff]
    %v217 = vld [vmem:[#allocation2 + $0x440] sm:$0xff]
    %v218 = vld [vmem:[#allocation2 + $0x448] sm:$0xff]
    %v219 = vld [vmem:[#allocation2 + $0x450] sm:$0xff]
    %v220 = vld [vmem:[#allocation2 + $0x458] sm:$0xff]
    %v221 = vld [vmem:[#allocation2 + $0x460] sm:$0xff]
    %v222 = vld [vmem:[#allocation2 + $0x468] sm:$0xff]
    %v223 = vld [vmem:[#allocation2 + $0x470] sm:$0xff]
    %v224 = vld [vmem:[#allocation2 + $0x478] sm:$0xff]
    %v225 = vld [vmem:[#allocation4] sm:$0x3]
    %v227 = vlaneseq
    %v228 = vshrl.u32 %v227, 7
    %v229 = vsub.s32 0, %v228
    %v230 = vrot.slane %v225, %v229
    %v231 = vlaneseq
    %v232 = vshrl.u32 %v231, 7
    %v233 = vsub.s32 1, %v232
    %v234 = vrot.slane %v225, %v233
    %v277 = vunpack.c.l.b16 %v41
    %v278 = vunpack.c.h.b16 %v41
    %v279 = vunpack.c.l.b16 %v42
    %v280 = vunpack.c.h.b16 %v42
    %v281 = vunpack.c.l.b16 %v43
    %v282 = vunpack.c.h.b16 %v43
    %v283 = vunpack.c.l.b16 %v44
    %v284 = vunpack.c.h.b16 %v44
    %v285 = vunpack.c.l.b16 %v45
    %v286 = vunpack.c.l.b16 %v46
    %v287 = vunpack.c.h.b16 %v46
    %v288 = vunpack.c.l.b16 %v47
    %v289 = vunpack.c.h.b16 %v47
    %v290 = vunpack.c.l.b16 %v48
    %v291 = vunpack.c.h.b16 %v48
    %v292 = vunpack.c.l.b16 %v49
    %v293 = vunpack.c.h.b16 %v49
    %v294 = vunpack.c.l.b16 %v50
    %v295 = vunpack.c.l.b16 %v51
    %v296 = vunpack.c.h.b16 %v51
    %v297 = vunpack.c.l.b16 %v52
    %v298 = vunpack.c.h.b16 %v52
    %v299 = vunpack.c.l.b16 %v53
    %v300 = vunpack.c.h.b16 %v53
    %v301 = vunpack.c.l.b16 %v54
    %v302 = vunpack.c.h.b16 %v54
    %v303 = vunpack.c.l.b16 %v55
    %v304 = vunpack.c.l.b16 %v56
    %v305 = vunpack.c.h.b16 %v56
    %v306 = vunpack.c.l.b16 %v57
    %v307 = vunpack.c.h.b16 %v57
    %v308 = vunpack.c.l.b16 %v58
    %v309 = vunpack.c.h.b16 %v58
    %v310 = vunpack.c.l.b16 %v59
    %v311 = vunpack.c.h.b16 %v59
    %v312 = vunpack.c.l.b16 %v60
    %v313 = vunpack.c.l.b16 %v61
    %v314 = vunpack.c.h.b16 %v61
    %v315 = vunpack.c.l.b16 %v62
    %v316 = vunpack.c.h.b16 %v62
    %v317 = vunpack.c.l.b16 %v63
    %v318 = vunpack.c.h.b16 %v63
    %v319 = vunpack.c.l.b16 %v64
    %v320 = vunpack.c.h.b16 %v64
    %v321 = vunpack.c.l.b16 %v65
    %v322 = vunpack.c.l.b16 %v66
    %v323 = vunpack.c.h.b16 %v66
    %v324 = vunpack.c.l.b16 %v67
    %v325 = vunpack.c.h.b16 %v67
    %v326 = vunpack.c.l.b16 %v68
    %v327 = vunpack.c.h.b16 %v68
    %v328 = vunpack.c.l.b16 %v69
    %v329 = vunpack.c.h.b16 %v69
    %v330 = vunpack.c.l.b16 %v70
    %v331 = vunpack.c.l.b16 %v71
    %v332 = vunpack.c.h.b16 %v71
    %v333 = vunpack.c.l.b16 %v72
    %v334 = vunpack.c.h.b16 %v72
    %v335 = vunpack.c.l.b16 %v73
    %v336 = vunpack.c.h.b16 %v73
    %v337 = vunpack.c.l.b16 %v74
    %v338 = vunpack.c.h.b16 %v74
    %v339 = vunpack.c.l.b16 %v75
    %v340 = vunpack.c.l.b16 %v76
    %v341 = vunpack.c.h.b16 %v76
    %v342 = vunpack.c.l.b16 %v77
    %v343 = vunpack.c.h.b16 %v77
    %v344 = vunpack.c.l.b16 %v78
    %v345 = vunpack.c.h.b16 %v78
    %v346 = vunpack.c.l.b16 %v79
    %v347 = vunpack.c.h.b16 %v79
    %v348 = vunpack.c.l.b16 %v80
    %v349 = vpack.c.b16 %v286, %v277
    %v350 = vpack.c.b16 %v287, %v278
    %v351 = vpack.c.b16 %v288, %v279
    %v352 = vpack.c.b16 %v289, %v280
    %v353 = vpack.c.b16 %v290, %v281
    %v354 = vpack.c.b16 %v291, %v282
    %v355 = vpack.c.b16 %v292, %v283
    %v356 = vpack.c.b16 %v293, %v284
    %v357 = vpack.c.b16 %v294, %v285
    %v358 = vpack.c.b16 %v304, %v295
    %v359 = vpack.c.b16 %v305, %v296
    %v360 = vpack.c.b16 %v306, %v297
    %v361 = vpack.c.b16 %v307, %v298
    %v362 = vpack.c.b16 %v308, %v299
    %v363 = vpack.c.b16 %v309, %v300
    %v364 = vpack.c.b16 %v310, %v301
    %v365 = vpack.c.b16 %v311, %v302
    %v366 = vpack.c.b16 %v312, %v303
    %v367 = vpack.c.b16 %v322, %v313
    %v368 = vpack.c.b16 %v323, %v314
    %v369 = vpack.c.b16 %v324, %v315
    %v370 = vpack.c.b16 %v325, %v316
    %v371 = vpack.c.b16 %v326, %v317
    %v372 = vpack.c.b16 %v327, %v318
    %v373 = vpack.c.b16 %v328, %v319
    %v374 = vpack.c.b16 %v329, %v320
    %v375 = vpack.c.b16 %v330, %v321
    %v376 = vpack.c.b16 %v340, %v331
    %v377 = vpack.c.b16 %v341, %v332
    %v378 = vpack.c.b16 %v342, %v333
    %v379 = vpack.c.b16 %v343, %v334
    %v380 = vpack.c.b16 %v344, %v335
    %v381 = vpack.c.b16 %v345, %v336
    %v382 = vpack.c.b16 %v346, %v337
    %v383 = vpack.c.b16 %v347, %v338
    %v384 = vpack.c.b16 %v348, %v339
    %v565 = vunpack.c.l.b16 %v81
    %v566 = vunpack.c.h.b16 %v81
    %v567 = vunpack.c.l.b16 %v82
    %v568 = vunpack.c.h.b16 %v82
    %v569 = vunpack.c.l.b16 %v83
    %v570 = vunpack.c.h.b16 %v83
    %v571 = vunpack.c.l.b16 %v84
    %v572 = vunpack.c.h.b16 %v84
    %v573 = vunpack.c.l.b16 %v85
    %v574 = vunpack.c.h.b16 %v85
    %v575 = vunpack.c.l.b16 %v86
    %v576 = vunpack.c.h.b16 %v86
    %v577 = vunpack.c.l.b16 %v87
    %v578 = vunpack.c.h.b16 %v87
    %v579 = vunpack.c.l.b16 %v88
    %v580 = vunpack.c.h.b16 %v88
    %v581 = vunpack.c.l.b16 %v89
    %v582 = vunpack.c.h.b16 %v89
    %v583 = vunpack.c.l.b16 %v90
    %v584 = vunpack.c.h.b16 %v90
    %v585 = vunpack.c.l.b16 %v91
    %v586 = vunpack.c.h.b16 %v91
    %v587 = vunpack.c.l.b16 %v92
    %v588 = vunpack.c.h.b16 %v92
    %v589 = vunpack.c.l.b16 %v93
    %v590 = vunpack.c.h.b16 %v93
    %v591 = vunpack.c.l.b16 %v94
    %v592 = vunpack.c.h.b16 %v94
    %v593 = vunpack.c.l.b16 %v95
    %v594 = vunpack.c.h.b16 %v95
    %v595 = vunpack.c.l.b16 %v96
    %v596 = vunpack.c.h.b16 %v96
    %v597 = vunpack.c.l.b16 %v97
    %v598 = vunpack.c.h.b16 %v97
    %v599 = vunpack.c.l.b16 %v98
    %v600 = vunpack.c.h.b16 %v98
    %v601 = vunpack.c.l.b16 %v99
    %v602 = vunpack.c.h.b16 %v99
    %v603 = vunpack.c.l.b16 %v100
    %v604 = vunpack.c.h.b16 %v100
    %v605 = vunpack.c.l.b16 %v101
    %v606 = vunpack.c.h.b16 %v101
    %v607 = vunpack.c.l.b16 %v102
    %v608 = vunpack.c.h.b16 %v102
    %v609 = vunpack.c.l.b16 %v103
    %v610 = vunpack.c.h.b16 %v103
    %v611 = vunpack.c.l.b16 %v104
    %v612 = vunpack.c.h.b16 %v104
    %v613 = vunpack.c.l.b16 %v105
    %v614 = vunpack.c.h.b16 %v105
    %v615 = vunpack.c.l.b16 %v106
    %v616 = vunpack.c.h.b16 %v106
    %v617 = vunpack.c.l.b16 %v107
    %v618 = vunpack.c.h.b16 %v107
    %v619 = vunpack.c.l.b16 %v108
    %v620 = vunpack.c.h.b16 %v108
    %v621 = vunpack.c.l.b16 %v109
    %v622 = vunpack.c.h.b16 %v109
    %v623 = vunpack.c.l.b16 %v110
    %v624 = vunpack.c.h.b16 %v110
    %v625 = vunpack.c.l.b16 %v111
    %v626 = vunpack.c.h.b16 %v111
    %v627 = vunpack.c.l.b16 %v112
    %v628 = vunpack.c.h.b16 %v112
    %v629 = vunpack.c.l.b16 %v113
    %v630 = vunpack.c.h.b16 %v113
    %v631 = vunpack.c.l.b16 %v114
    %v632 = vunpack.c.h.b16 %v114
    %v633 = vunpack.c.l.b16 %v115
    %v634 = vunpack.c.h.b16 %v115
    %v635 = vunpack.c.l.b16 %v116
    %v636 = vunpack.c.h.b16 %v116
    %v637 = vunpack.c.l.b16 %v117
    %v638 = vunpack.c.h.b16 %v117
    %v639 = vunpack.c.l.b16 %v118
    %v640 = vunpack.c.h.b16 %v118
    %v641 = vunpack.c.l.b16 %v119
    %v642 = vunpack.c.h.b16 %v119
    %v643 = vunpack.c.l.b16 %v120
    %v644 = vunpack.c.h.b16 %v120
    %v645 = vunpack.c.l.b16 %v121
    %v646 = vunpack.c.h.b16 %v121
    %v647 = vunpack.c.l.b16 %v122
    %v648 = vunpack.c.h.b16 %v122
    %v649 = vunpack.c.l.b16 %v123
    %v650 = vunpack.c.h.b16 %v123
    %v651 = vunpack.c.l.b16 %v124
    %v652 = vunpack.c.h.b16 %v124
    %v653 = vunpack.c.l.b16 %v125
    %v654 = vunpack.c.h.b16 %v125
    %v655 = vunpack.c.l.b16 %v126
    %v656 = vunpack.c.h.b16 %v126
    %v657 = vunpack.c.l.b16 %v127
    %v658 = vunpack.c.h.b16 %v127
    %v659 = vunpack.c.l.b16 %v128
    %v660 = vunpack.c.h.b16 %v128
    %v661 = vunpack.c.l.b16 %v129
    %v662 = vunpack.c.h.b16 %v129
    %v663 = vunpack.c.l.b16 %v130
    %v664 = vunpack.c.h.b16 %v130
    %v665 = vunpack.c.l.b16 %v131
    %v666 = vunpack.c.h.b16 %v131
    %v667 = vunpack.c.l.b16 %v132
    %v668 = vunpack.c.h.b16 %v132
    %v669 = vunpack.c.l.b16 %v133
    %v670 = vunpack.c.h.b16 %v133
    %v671 = vunpack.c.l.b16 %v134
    %v672 = vunpack.c.h.b16 %v134
    %v673 = vunpack.c.l.b16 %v135
    %v674 = vunpack.c.h.b16 %v135
    %v675 = vunpack.c.l.b16 %v136
    %v676 = vunpack.c.h.b16 %v136
    %v677 = vunpack.c.l.b16 %v137
    %v678 = vunpack.c.h.b16 %v137
    %v679 = vunpack.c.l.b16 %v138
    %v680 = vunpack.c.h.b16 %v138
    %v681 = vunpack.c.l.b16 %v139
    %v682 = vunpack.c.h.b16 %v139
    %v683 = vunpack.c.l.b16 %v140
    %v684 = vunpack.c.h.b16 %v140
    %v685 = vunpack.c.l.b16 %v141
    %v686 = vunpack.c.h.b16 %v141
    %v687 = vunpack.c.l.b16 %v142
    %v688 = vunpack.c.h.b16 %v142
    %v689 = vunpack.c.l.b16 %v143
    %v690 = vunpack.c.h.b16 %v143
    %v691 = vunpack.c.l.b16 %v144
    %v692 = vunpack.c.h.b16 %v144
    %v693 = vunpack.c.l.b16 %v145
    %v694 = vunpack.c.h.b16 %v145
    %v695 = vunpack.c.l.b16 %v146
    %v696 = vunpack.c.h.b16 %v146
    %v697 = vunpack.c.l.b16 %v147
    %v698 = vunpack.c.h.b16 %v147
    %v699 = vunpack.c.l.b16 %v148
    %v700 = vunpack.c.h.b16 %v148
    %v701 = vunpack.c.l.b16 %v149
    %v702 = vunpack.c.h.b16 %v149
    %v703 = vunpack.c.l.b16 %v150
    %v704 = vunpack.c.h.b16 %v150
    %v705 = vunpack.c.l.b16 %v151
    %v706 = vunpack.c.h.b16 %v151
    %v707 = vunpack.c.l.b16 %v152
    %v708 = vunpack.c.h.b16 %v152
    %v709 = vunpack.c.l.b16 %v153
    %v710 = vunpack.c.h.b16 %v153
    %v711 = vunpack.c.l.b16 %v154
    %v712 = vunpack.c.h.b16 %v154
    %v713 = vunpack.c.l.b16 %v155
    %v714 = vunpack.c.h.b16 %v155
    %v715 = vunpack.c.l.b16 %v156
    %v716 = vunpack.c.h.b16 %v156
    %v717 = vunpack.c.l.b16 %v157
    %v718 = vunpack.c.h.b16 %v157
    %v719 = vunpack.c.l.b16 %v158
    %v720 = vunpack.c.h.b16 %v158
    %v721 = vunpack.c.l.b16 %v159
    %v722 = vunpack.c.h.b16 %v159
    %v723 = vunpack.c.l.b16 %v160
    %v724 = vunpack.c.h.b16 %v160
    %v725 = vunpack.c.l.b16 %v161
    %v726 = vunpack.c.h.b16 %v161
    %v727 = vunpack.c.l.b16 %v162
    %v728 = vunpack.c.h.b16 %v162
    %v729 = vunpack.c.l.b16 %v163
    %v730 = vunpack.c.h.b16 %v163
    %v731 = vunpack.c.l.b16 %v164
    %v732 = vunpack.c.h.b16 %v164
    %v733 = vunpack.c.l.b16 %v165
    %v734 = vunpack.c.h.b16 %v165
    %v735 = vunpack.c.l.b16 %v166
    %v736 = vunpack.c.h.b16 %v166
    %v737 = vunpack.c.l.b16 %v167
    %v738 = vunpack.c.h.b16 %v167
    %v739 = vunpack.c.l.b16 %v168
    %v740 = vunpack.c.h.b16 %v168
    %v741 = vunpack.c.l.b16 %v169
    %v742 = vunpack.c.h.b16 %v169
    %v743 = vunpack.c.l.b16 %v170
    %v744 = vunpack.c.h.b16 %v170
    %v745 = vunpack.c.l.b16 %v171
    %v746 = vunpack.c.h.b16 %v171
    %v747 = vunpack.c.l.b16 %v172
    %v748 = vunpack.c.h.b16 %v172
    %v749 = vunpack.c.l.b16 %v173
    %v750 = vunpack.c.h.b16 %v173
    %v751 = vunpack.c.l.b16 %v174
    %v752 = vunpack.c.h.b16 %v174
    %v753 = vunpack.c.l.b16 %v175
    %v754 = vunpack.c.h.b16 %v175
    %v755 = vunpack.c.l.b16 %v176
    %v756 = vunpack.c.h.b16 %v176
    %v757 = vunpack.c.l.b16 %v177
    %v758 = vunpack.c.h.b16 %v177
    %v759 = vunpack.c.l.b16 %v178
    %v760 = vunpack.c.h.b16 %v178
    %v761 = vunpack.c.l.b16 %v179
    %v762 = vunpack.c.h.b16 %v179
    %v763 = vunpack.c.l.b16 %v180
    %v764 = vunpack.c.h.b16 %v180
    %v765 = vunpack.c.l.b16 %v181
    %v766 = vunpack.c.h.b16 %v181
    %v767 = vunpack.c.l.b16 %v182
    %v768 = vunpack.c.h.b16 %v182
    %v769 = vunpack.c.l.b16 %v183
    %v770 = vunpack.c.h.b16 %v183
    %v771 = vunpack.c.l.b16 %v184
    %v772 = vunpack.c.h.b16 %v184
    %v773 = vunpack.c.l.b16 %v185
    %v774 = vunpack.c.h.b16 %v185
    %v775 = vunpack.c.l.b16 %v186
    %v776 = vunpack.c.h.b16 %v186
    %v777 = vunpack.c.l.b16 %v187
    %v778 = vunpack.c.h.b16 %v187
    %v779 = vunpack.c.l.b16 %v188
    %v780 = vunpack.c.h.b16 %v188
    %v781 = vunpack.c.l.b16 %v189
    %v782 = vunpack.c.h.b16 %v189
    %v783 = vunpack.c.l.b16 %v190
    %v784 = vunpack.c.h.b16 %v190
    %v785 = vunpack.c.l.b16 %v191
    %v786 = vunpack.c.h.b16 %v191
    %v787 = vunpack.c.l.b16 %v192
    %v788 = vunpack.c.h.b16 %v192
    %v789 = vunpack.c.l.b16 %v193
    %v790 = vunpack.c.h.b16 %v193
    %v791 = vunpack.c.l.b16 %v194
    %v792 = vunpack.c.h.b16 %v194
    %v793 = vunpack.c.l.b16 %v195
    %v794 = vunpack.c.h.b16 %v195
    %v795 = vunpack.c.l.b16 %v196
    %v796 = vunpack.c.h.b16 %v196
    %v797 = vunpack.c.l.b16 %v197
    %v798 = vunpack.c.h.b16 %v197
    %v799 = vunpack.c.l.b16 %v198
    %v800 = vunpack.c.h.b16 %v198
    %v801 = vunpack.c.l.b16 %v199
    %v802 = vunpack.c.h.b16 %v199
    %v803 = vunpack.c.l.b16 %v200
    %v804 = vunpack.c.h.b16 %v200
    %v805 = vunpack.c.l.b16 %v201
    %v806 = vunpack.c.h.b16 %v201
    %v807 = vunpack.c.l.b16 %v202
    %v808 = vunpack.c.h.b16 %v202
    %v809 = vunpack.c.l.b16 %v203
    %v810 = vunpack.c.h.b16 %v203
    %v811 = vunpack.c.l.b16 %v204
    %v812 = vunpack.c.h.b16 %v204
    %v813 = vunpack.c.l.b16 %v205
    %v814 = vunpack.c.h.b16 %v205
    %v815 = vunpack.c.l.b16 %v206
    %v816 = vunpack.c.h.b16 %v206
    %v817 = vunpack.c.l.b16 %v207
    %v818 = vunpack.c.h.b16 %v207
    %v819 = vunpack.c.l.b16 %v208
    %v820 = vunpack.c.h.b16 %v208
    %v821 = vunpack.c.l.b16 %v209
    %v822 = vunpack.c.h.b16 %v209
    %v823 = vunpack.c.l.b16 %v210
    %v824 = vunpack.c.h.b16 %v210
    %v825 = vunpack.c.l.b16 %v211
    %v826 = vunpack.c.h.b16 %v211
    %v827 = vunpack.c.l.b16 %v212
    %v828 = vunpack.c.h.b16 %v212
    %v829 = vunpack.c.l.b16 %v213
    %v830 = vunpack.c.h.b16 %v213
    %v831 = vunpack.c.l.b16 %v214
    %v832 = vunpack.c.h.b16 %v214
    %v833 = vunpack.c.l.b16 %v215
    %v834 = vunpack.c.h.b16 %v215
    %v835 = vunpack.c.l.b16 %v216
    %v836 = vunpack.c.h.b16 %v216
    %v837 = vunpack.c.l.b16 %v217
    %v838 = vunpack.c.h.b16 %v217
    %v839 = vunpack.c.l.b16 %v218
    %v840 = vunpack.c.h.b16 %v218
    %v841 = vunpack.c.l.b16 %v219
    %v842 = vunpack.c.h.b16 %v219
    %v843 = vunpack.c.l.b16 %v220
    %v844 = vunpack.c.h.b16 %v220
    %v845 = vunpack.c.l.b16 %v221
    %v846 = vunpack.c.h.b16 %v221
    %v847 = vunpack.c.l.b16 %v222
    %v848 = vunpack.c.h.b16 %v222
    %v849 = vunpack.c.l.b16 %v223
    %v850 = vunpack.c.h.b16 %v223
    %v851 = vunpack.c.l.b16 %v224
    %v852 = vunpack.c.h.b16 %v224
    %v853 = vpack.c.b16 %v567, %v565
    %v854 = vpack.c.b16 %v568, %v566
    %v855 = vpack.c.b16 %v571, %v569
    %v856 = vpack.c.b16 %v572, %v570
    %v857 = vpack.c.b16 %v575, %v573
    %v858 = vpack.c.b16 %v576, %v574
    %v859 = vpack.c.b16 %v579, %v577
    %v860 = vpack.c.b16 %v580, %v578
    %v861 = vpack.c.b16 %v583, %v581
    %v862 = vpack.c.b16 %v584, %v582
    %v863 = vpack.c.b16 %v587, %v585
    %v864 = vpack.c.b16 %v588, %v586
    %v865 = vpack.c.b16 %v591, %v589
    %v866 = vpack.c.b16 %v592, %v590
    %v867 = vpack.c.b16 %v595, %v593
    %v868 = vpack.c.b16 %v596, %v594
    %v869 = vpack.c.b16 %v599, %v597
    %v870 = vpack.c.b16 %v600, %v598
    %v871 = vpack.c.b16 %v603, %v601
    %v872 = vpack.c.b16 %v604, %v602
    %v873 = vpack.c.b16 %v607, %v605
    %v874 = vpack.c.b16 %v608, %v606
    %v875 = vpack.c.b16 %v611, %v609
    %v876 = vpack.c.b16 %v612, %v610
    %v877 = vpack.c.b16 %v615, %v613
    %v878 = vpack.c.b16 %v616, %v614
    %v879 = vpack.c.b16 %v619, %v617
    %v880 = vpack.c.b16 %v620, %v618
    %v881 = vpack.c.b16 %v623, %v621
    %v882 = vpack.c.b16 %v624, %v622
    %v883 = vpack.c.b16 %v627, %v625
    %v884 = vpack.c.b16 %v628, %v626
    %v885 = vpack.c.b16 %v631, %v629
    %v886 = vpack.c.b16 %v632, %v630
    %v887 = vpack.c.b16 %v635, %v633
    %v888 = vpack.c.b16 %v636, %v634
    %v889 = vpack.c.b16 %v639, %v637
    %v890 = vpack.c.b16 %v640, %v638
    %v891 = vpack.c.b16 %v643, %v641
    %v892 = vpack.c.b16 %v644, %v642
    %v893 = vpack.c.b16 %v647, %v645
    %v894 = vpack.c.b16 %v648, %v646
    %v895 = vpack.c.b16 %v651, %v649
    %v896 = vpack.c.b16 %v652, %v650
    %v897 = vpack.c.b16 %v655, %v653
    %v898 = vpack.c.b16 %v656, %v654
    %v899 = vpack.c.b16 %v659, %v657
    %v900 = vpack.c.b16 %v660, %v658
    %v901 = vpack.c.b16 %v663, %v661
    %v902 = vpack.c.b16 %v664, %v662
    %v903 = vpack.c.b16 %v667, %v665
    %v904 = vpack.c.b16 %v668, %v666
    %v905 = vpack.c.b16 %v671, %v669
    %v906 = vpack.c.b16 %v672, %v670
    %v907 = vpack.c.b16 %v675, %v673
    %v908 = vpack.c.b16 %v676, %v674
    %v909 = vpack.c.b16 %v679, %v677
    %v910 = vpack.c.b16 %v680, %v678
    %v911 = vpack.c.b16 %v683, %v681
    %v912 = vpack.c.b16 %v684, %v682
    %v913 = vpack.c.b16 %v687, %v685
    %v914 = vpack.c.b16 %v688, %v686
    %v915 = vpack.c.b16 %v691, %v689
    %v916 = vpack.c.b16 %v692, %v690
    %v917 = vpack.c.b16 %v695, %v693
    %v918 = vpack.c.b16 %v696, %v694
    %v919 = vpack.c.b16 %v699, %v697
    %v920 = vpack.c.b16 %v700, %v698
    %v921 = vpack.c.b16 %v703, %v701
    %v922 = vpack.c.b16 %v704, %v702
    %v923 = vpack.c.b16 %v707, %v705
    %v924 = vpack.c.b16 %v708, %v706
    %v925 = vpack.c.b16 %v711, %v709
    %v926 = vpack.c.b16 %v712, %v710
    %v927 = vpack.c.b16 %v715, %v713
    %v928 = vpack.c.b16 %v716, %v714
    %v929 = vpack.c.b16 %v719, %v717
    %v930 = vpack.c.b16 %v720, %v718
    %v931 = vpack.c.b16 %v723, %v721
    %v932 = vpack.c.b16 %v724, %v722
    %v933 = vpack.c.b16 %v727, %v725
    %v934 = vpack.c.b16 %v728, %v726
    %v935 = vpack.c.b16 %v731, %v729
    %v936 = vpack.c.b16 %v732, %v730
    %v937 = vpack.c.b16 %v735, %v733
    %v938 = vpack.c.b16 %v736, %v734
    %v939 = vpack.c.b16 %v739, %v737
    %v940 = vpack.c.b16 %v740, %v738
    %v941 = vpack.c.b16 %v743, %v741
    %v942 = vpack.c.b16 %v744, %v742
    %v943 = vpack.c.b16 %v747, %v745
    %v944 = vpack.c.b16 %v748, %v746
    %v945 = vpack.c.b16 %v751, %v749
    %v946 = vpack.c.b16 %v752, %v750
    %v947 = vpack.c.b16 %v755, %v753
    %v948 = vpack.c.b16 %v756, %v754
    %v949 = vpack.c.b16 %v759, %v757
    %v950 = vpack.c.b16 %v760, %v758
    %v951 = vpack.c.b16 %v763, %v761
    %v952 = vpack.c.b16 %v764, %v762
    %v953 = vpack.c.b16 %v767, %v765
    %v954 = vpack.c.b16 %v768, %v766
    %v955 = vpack.c.b16 %v771, %v769
    %v956 = vpack.c.b16 %v772, %v770
    %v957 = vpack.c.b16 %v775, %v773
    %v958 = vpack.c.b16 %v776, %v774
    %v959 = vpack.c.b16 %v779, %v777
    %v960 = vpack.c.b16 %v780, %v778
    %v961 = vpack.c.b16 %v783, %v781
    %v962 = vpack.c.b16 %v784, %v782
    %v963 = vpack.c.b16 %v787, %v785
    %v964 = vpack.c.b16 %v788, %v786
    %v965 = vpack.c.b16 %v791, %v789
    %v966 = vpack.c.b16 %v792, %v790
    %v967 = vpack.c.b16 %v795, %v793
    %v968 = vpack.c.b16 %v796, %v794
    %v969 = vpack.c.b16 %v799, %v797
    %v970 = vpack.c.b16 %v800, %v798
    %v971 = vpack.c.b16 %v803, %v801
    %v972 = vpack.c.b16 %v804, %v802
    %v973 = vpack.c.b16 %v807, %v805
    %v974 = vpack.c.b16 %v808, %v806
    %v975 = vpack.c.b16 %v811, %v809
    %v976 = vpack.c.b16 %v812, %v810
    %v977 = vpack.c.b16 %v815, %v813
    %v978 = vpack.c.b16 %v816, %v814
    %v979 = vpack.c.b16 %v819, %v817
    %v980 = vpack.c.b16 %v820, %v818
    %v981 = vpack.c.b16 %v823, %v821
    %v982 = vpack.c.b16 %v824, %v822
    %v983 = vpack.c.b16 %v827, %v825
    %v984 = vpack.c.b16 %v828, %v826
    %v985 = vpack.c.b16 %v831, %v829
    %v986 = vpack.c.b16 %v832, %v830
    %v987 = vpack.c.b16 %v835, %v833
    %v988 = vpack.c.b16 %v836, %v834
    %v989 = vpack.c.b16 %v839, %v837
    %v990 = vpack.c.b16 %v840, %v838
    %v991 = vpack.c.b16 %v843, %v841
    %v992 = vpack.c.b16 %v844, %v842
    %v993 = vpack.c.b16 %v847, %v845
    %v994 = vpack.c.b16 %v848, %v846
    %v995 = vpack.c.b16 %v851, %v849
    %v996 = vpack.c.b16 %v852, %v850
    %1141 = vmatprep.subr.bf16.mxu0 %v868
    %1142 = vmatpush1.bf16.msra.mxu0 %v867
    %1143 = vmatprep.subr.bf16.mxu0 %v866
    %1144 = vmatpush1.bf16.msra.mxu0 %v865
    %1145 = vmatprep.subr.bf16.mxu0 %v864
    %1146 = vmatpush1.bf16.msra.mxu0 %v863
    %1147 = vmatprep.subr.bf16.mxu0 %v862
    %1148 = vmatpush1.bf16.msra.mxu0 %v861
    %1149 = vmatprep.subr.bf16.mxu0 %v860
    %1150 = vmatpush1.bf16.msra.mxu0 %v859
    %1151 = vmatprep.subr.bf16.mxu0 %v858
    %1152 = vmatpush1.bf16.msra.mxu0 %v857
    %1153 = vmatprep.subr.bf16.mxu0 %v856
    %1154 = vmatpush1.bf16.msra.mxu0 %v855
    %1155 = vmatprep.subr.bf16.mxu0 %v854
    %1156 = vmatpush1.bf16.msra.mxu0 %v853
    %1157 = vmatprep.subr.bf16.mxu0 %v884
    %1158 = vmatpush2.bf16.msra.mxu0 %v883
    %1159 = vmatprep.subr.bf16.mxu0 %v882
    %1160 = vmatpush2.bf16.msra.mxu0 %v881
    %1161 = vmatprep.subr.bf16.mxu0 %v880
    %1162 = vmatpush2.bf16.msra.mxu0 %v879
    %1163 = vmatprep.subr.bf16.mxu0 %v878
    %1164 = vmatpush2.bf16.msra.mxu0 %v877
    %1165 = vmatprep.subr.bf16.mxu0 %v876
    %1166 = vmatpush2.bf16.msra.mxu0 %v875
    %1167 = vmatprep.subr.bf16.mxu0 %v874
    %1168 = vmatpush2.bf16.msra.mxu0 %v873
    %1169 = vmatprep.subr.bf16.mxu0 %v872
    %1170 = vmatpush2.bf16.msra.mxu0 %v871
    %1171 = vmatprep.subr.bf16.mxu0 %v870
    %1172 = vmatpush2.bf16.msra.mxu0 %v869
    %1173 = vmatprep.mubr.bf16.mxu0 %v350
    %1174 = vmatmul.mubr.bf16.gmra.mxu0 %v349
    %v1175 = vpop.f32.mrf.mxu0
    %v1176 = vadd.f32 %v230, %v1175
    %v1177 = vpop.f32.mrf.mxu0
    %v1178 = vadd.f32 %v234, %v1177
    %v1179 = vpop.f32.mrf.mxu0
    %v1180 = vadd.f32 %v230, %v1179
    %v1181 = vpop.f32.mrf.mxu0
    %v1182 = vadd.f32 %v234, %v1181
    %1183 = vmatprep.mubr.bf16.mxu0 %v359
    %1184 = vmatmul.mubr.bf16.gmra.mxu0 %v358
    %v1185 = vpop.f32.mrf.mxu0
    %v1186 = vadd.f32 %v230, %v1185
    %v1187 = vpop.f32.mrf.mxu0
    %v1188 = vadd.f32 %v234, %v1187
    %v1189 = vpop.f32.mrf.mxu0
    %v1190 = vadd.f32 %v230, %v1189
    %v1191 = vpop.f32.mrf.mxu0
    %v1192 = vadd.f32 %v234, %v1191
    %1193 = vmatprep.mubr.bf16.mxu0 %v368
    %1194 = vmatmul.mubr.bf16.gmra.mxu0 %v367
    %v1195 = vpop.f32.mrf.mxu0
    %v1196 = vadd.f32 %v230, %v1195
    %v1197 = vpop.f32.mrf.mxu0
    %v1198 = vadd.f32 %v234, %v1197
    %v1199 = vpop.f32.mrf.mxu0
    %v1200 = vadd.f32 %v230, %v1199
    %v1201 = vpop.f32.mrf.mxu0
    %v1202 = vadd.f32 %v234, %v1201
    %1203 = vmatprep.mubr.bf16.mxu0 %v377
    %1204 = vmatmul.mubr.bf16.gmra.mxu0 %v376
    %v1205 = vpop.f32.mrf.mxu0
    %v1206 = vadd.f32 %v230, %v1205
    %v1207 = vpop.f32.mrf.mxu0
    %v1208 = vadd.f32 %v234, %v1207
    %v1209 = vpop.f32.mrf.mxu0
    %v1210 = vadd.f32 %v230, %v1209
    %v1211 = vpop.f32.mrf.mxu0
    %v1212 = vadd.f32 %v234, %v1211
    %1213 = vdwg.mxu0
    %1214 = vmatprep.subr.bf16.mxu0 %v900
    %1215 = vmatpush1.bf16.msra.mxu0 %v899
    %1216 = vmatprep.subr.bf16.mxu0 %v898
    %1217 = vmatpush1.bf16.msra.mxu0 %v897
    %1218 = vmatprep.subr.bf16.mxu0 %v896
    %1219 = vmatpush1.bf16.msra.mxu0 %v895
    %1220 = vmatprep.subr.bf16.mxu0 %v894
    %1221 = vmatpush1.bf16.msra.mxu0 %v893
    %1222 = vmatprep.subr.bf16.mxu0 %v892
    %1223 = vmatpush1.bf16.msra.mxu0 %v891
    %1224 = vmatprep.subr.bf16.mxu0 %v890
    %1225 = vmatpush1.bf16.msra.mxu0 %v889
    %1226 = vmatprep.subr.bf16.mxu0 %v888
    %1227 = vmatpush1.bf16.msra.mxu0 %v887
    %1228 = vmatprep.subr.bf16.mxu0 %v886
    %1229 = vmatpush1.bf16.msra.mxu0 %v885
    %1230 = vmatprep.subr.bf16.mxu0 %v916
    %1231 = vmatpush2.bf16.msra.mxu0 %v915
    %1232 = vmatprep.subr.bf16.mxu0 %v914
    %1233 = vmatpush2.bf16.msra.mxu0 %v913
    %1234 = vmatprep.subr.bf16.mxu0 %v912
    %1235 = vmatpush2.bf16.msra.mxu0 %v911
    %1236 = vmatprep.subr.bf16.mxu0 %v910
    %1237 = vmatpush2.bf16.msra.mxu0 %v909
    %1238 = vmatprep.subr.bf16.mxu0 %v908
    %1239 = vmatpush2.bf16.msra.mxu0 %v907
    %1240 = vmatprep.subr.bf16.mxu0 %v906
    %1241 = vmatpush2.bf16.msra.mxu0 %v905
    %1242 = vmatprep.subr.bf16.mxu0 %v904
    %1243 = vmatpush2.bf16.msra.mxu0 %v903
    %1244 = vmatprep.subr.bf16.mxu0 %v902
    %1245 = vmatpush2.bf16.msra.mxu0 %v901
    %1246 = vmatprep.mubr.bf16.mxu0 %v352
    %1247 = vmatmul.mubr.bf16.gmra.mxu0 %v351
    %v1248 = vpop.f32.mrf.mxu0
    %v1249 = vadd.f32 %v1176, %v1248
    %v1250 = vpop.f32.mrf.mxu0
    %v1251 = vadd.f32 %v1178, %v1250
    %v1252 = vpop.f32.mrf.mxu0
    %v1253 = vadd.f32 %v1180, %v1252
    %v1254 = vpop.f32.mrf.mxu0
    %v1255 = vadd.f32 %v1182, %v1254
    %1256 = vmatprep.mubr.bf16.mxu0 %v361
    %1257 = vmatmul.mubr.bf16.gmra.mxu0 %v360
    %v1258 = vpop.f32.mrf.mxu0
    %v1259 = vadd.f32 %v1186, %v1258
    %v1260 = vpop.f32.mrf.mxu0
    %v1261 = vadd.f32 %v1188, %v1260
    %v1262 = vpop.f32.mrf.mxu0
    %v1263 = vadd.f32 %v1190, %v1262
    %v1264 = vpop.f32.mrf.mxu0
    %v1265 = vadd.f32 %v1192, %v1264
    %1266 = vmatprep.mubr.bf16.mxu0 %v370
    %1267 = vmatmul.mubr.bf16.gmra.mxu0 %v369
    %v1268 = vpop.f32.mrf.mxu0
    %v1269 = vadd.f32 %v1196, %v1268
    %v1270 = vpop.f32.mrf.mxu0
    %v1271 = vadd.f32 %v1198, %v1270
    %v1272 = vpop.f32.mrf.mxu0
    %v1273 = vadd.f32 %v1200, %v1272
    %v1274 = vpop.f32.mrf.mxu0
    %v1275 = vadd.f32 %v1202, %v1274
    %1276 = vmatprep.mubr.bf16.mxu0 %v379
    %1277 = vmatmul.mubr.bf16.gmra.mxu0 %v378
    %v1278 = vpop.f32.mrf.mxu0
    %v1279 = vadd.f32 %v1206, %v1278
    %v1280 = vpop.f32.mrf.mxu0
    %v1281 = vadd.f32 %v1208, %v1280
    %v1282 = vpop.f32.mrf.mxu0
    %v1283 = vadd.f32 %v1210, %v1282
    %v1284 = vpop.f32.mrf.mxu0
    %v1285 = vadd.f32 %v1212, %v1284
    %1286 = vdwg.mxu0
    %1287 = vmatprep.subr.bf16.mxu0 %v932
    %1288 = vmatpush1.bf16.msra.mxu0 %v931
    %1289 = vmatprep.subr.bf16.mxu0 %v930
    %1290 = vmatpush1.bf16.msra.mxu0 %v929
    %1291 = vmatprep.subr.bf16.mxu0 %v928
    %1292 = vmatpush1.bf16.msra.mxu0 %v927
    %1293 = vmatprep.subr.bf16.mxu0 %v926
    %1294 = vmatpush1.bf16.msra.mxu0 %v925
    %1295 = vmatprep.subr.bf16.mxu0 %v924
    %1296 = vmatpush1.bf16.msra.mxu0 %v923
    %1297 = vmatprep.subr.bf16.mxu0 %v922
    %1298 = vmatpush1.bf16.msra.mxu0 %v921
    %1299 = vmatprep.subr.bf16.mxu0 %v920
    %1300 = vmatpush1.bf16.msra.mxu0 %v919
    %1301 = vmatprep.subr.bf16.mxu0 %v918
    %1302 = vmatpush1.bf16.msra.mxu0 %v917
    %1303 = vmatprep.subr.bf16.mxu0 %v948
    %1304 = vmatpush2.bf16.msra.mxu0 %v947
    %1305 = vmatprep.subr.bf16.mxu0 %v946
    %1306 = vmatpush2.bf16.msra.mxu0 %v945
    %1307 = vmatprep.subr.bf16.mxu0 %v944
    %1308 = vmatpush2.bf16.msra.mxu0 %v943
    %1309 = vmatprep.subr.bf16.mxu0 %v942
    %1310 = vmatpush2.bf16.msra.mxu0 %v941
    %1311 = vmatprep.subr.bf16.mxu0 %v940
    %1312 = vmatpush2.bf16.msra.mxu0 %v939
    %1313 = vmatprep.subr.bf16.mxu0 %v938
    %1314 = vmatpush2.bf16.msra.mxu0 %v937
    %1315 = vmatprep.subr.bf16.mxu0 %v936
    %1316 = vmatpush2.bf16.msra.mxu0 %v935
    %1317 = vmatprep.subr.bf16.mxu0 %v934
    %1318 = vmatpush2.bf16.msra.mxu0 %v933
    %1319 = vmatprep.mubr.bf16.mxu0 %v354
    %1320 = vmatmul.mubr.bf16.gmra.mxu0 %v353
    %v1321 = vpop.f32.mrf.mxu0
    %v1322 = vadd.f32 %v1249, %v1321
    %v1323 = vpop.f32.mrf.mxu0
    %v1324 = vadd.f32 %v1251, %v1323
    %v1325 = vpop.f32.mrf.mxu0
    %v1326 = vadd.f32 %v1253, %v1325
    %v1327 = vpop.f32.mrf.mxu0
    %v1328 = vadd.f32 %v1255, %v1327
    %1329 = vmatprep.mubr.bf16.mxu0 %v363
    %1330 = vmatmul.mubr.bf16.gmra.mxu0 %v362
    %v1331 = vpop.f32.mrf.mxu0
    %v1332 = vadd.f32 %v1259, %v1331
    %v1333 = vpop.f32.mrf.mxu0
    %v1334 = vadd.f32 %v1261, %v1333
    %v1335 = vpop.f32.mrf.mxu0
    %v1336 = vadd.f32 %v1263, %v1335
    %v1337 = vpop.f32.mrf.mxu0
    %v1338 = vadd.f32 %v1265, %v1337
    %1339 = vmatprep.mubr.bf16.mxu0 %v372
    %1340 = vmatmul.mubr.bf16.gmra.mxu0 %v371
    %v1341 = vpop.f32.mrf.mxu0
    %v1342 = vadd.f32 %v1269, %v1341
    %v1343 = vpop.f32.mrf.mxu0
    %v1344 = vadd.f32 %v1271, %v1343
    %v1345 = vpop.f32.mrf.mxu0
    %v1346 = vadd.f32 %v1273, %v1345
    %v1347 = vpop.f32.mrf.mxu0
    %v1348 = vadd.f32 %v1275, %v1347
    %1349 = vmatprep.mubr.bf16.mxu0 %v381
    %1350 = vmatmul.mubr.bf16.gmra.mxu0 %v380
    %v1351 = vpop.f32.mrf.mxu0
    %v1352 = vadd.f32 %v1279, %v1351
    %v1353 = vpop.f32.mrf.mxu0
    %v1354 = vadd.f32 %v1281, %v1353
    %v1355 = vpop.f32.mrf.mxu0
    %v1356 = vadd.f32 %v1283, %v1355
    %v1357 = vpop.f32.mrf.mxu0
    %v1358 = vadd.f32 %v1285, %v1357
    %1359 = vdwg.mxu0
    %1360 = vmatprep.subr.bf16.mxu0 %v964
    %1361 = vmatpush1.bf16.msra.mxu0 %v963
    %1362 = vmatprep.subr.bf16.mxu0 %v962
    %1363 = vmatpush1.bf16.msra.mxu0 %v961
    %1364 = vmatprep.subr.bf16.mxu0 %v960
    %1365 = vmatpush1.bf16.msra.mxu0 %v959
    %1366 = vmatprep.subr.bf16.mxu0 %v958
    %1367 = vmatpush1.bf16.msra.mxu0 %v957
    %1368 = vmatprep.subr.bf16.mxu0 %v956
    %1369 = vmatpush1.bf16.msra.mxu0 %v955
    %1370 = vmatprep.subr.bf16.mxu0 %v954
    %1371 = vmatpush1.bf16.msra.mxu0 %v953
    %1372 = vmatprep.subr.bf16.mxu0 %v952
    %1373 = vmatpush1.bf16.msra.mxu0 %v951
    %1374 = vmatprep.subr.bf16.mxu0 %v950
    %1375 = vmatpush1.bf16.msra.mxu0 %v949
    %1376 = vmatprep.subr.bf16.mxu0 %v980
    %1377 = vmatpush2.bf16.msra.mxu0 %v979
    %1378 = vmatprep.subr.bf16.mxu0 %v978
    %1379 = vmatpush2.bf16.msra.mxu0 %v977
    %1380 = vmatprep.subr.bf16.mxu0 %v976
    %1381 = vmatpush2.bf16.msra.mxu0 %v975
    %1382 = vmatprep.subr.bf16.mxu0 %v974
    %1383 = vmatpush2.bf16.msra.mxu0 %v973
    %1384 = vmatprep.subr.bf16.mxu0 %v972
    %1385 = vmatpush2.bf16.msra.mxu0 %v971
    %1386 = vmatprep.subr.bf16.mxu0 %v970
    %1387 = vmatpush2.bf16.msra.mxu0 %v969
    %1388 = vmatprep.subr.bf16.mxu0 %v968
    %1389 = vmatpush2.bf16.msra.mxu0 %v967
    %1390 = vmatprep.subr.bf16.mxu0 %v966
    %1391 = vmatpush2.bf16.msra.mxu0 %v965
    %1392 = vmatprep.mubr.bf16.mxu0 %v356
    %1393 = vmatmul.mubr.bf16.gmra.mxu0 %v355
    %v1394 = vpop.f32.mrf.mxu0
    %v1395 = vadd.f32 %v1322, %v1394
    %v1396 = vpop.f32.mrf.mxu0
    %v1397 = vadd.f32 %v1324, %v1396
    %v1398 = vpop.f32.mrf.mxu0
    %v1399 = vadd.f32 %v1326, %v1398
    %v1400 = vpop.f32.mrf.mxu0
    %v1401 = vadd.f32 %v1328, %v1400
    %1402 = vmatprep.mubr.bf16.mxu0 %v365
    %1403 = vmatmul.mubr.bf16.gmra.mxu0 %v364
    %v1404 = vpop.f32.mrf.mxu0
    %v1405 = vadd.f32 %v1332, %v1404
    %v1406 = vpop.f32.mrf.mxu0
    %v1407 = vadd.f32 %v1334, %v1406
    %v1408 = vpop.f32.mrf.mxu0
    %v1409 = vadd.f32 %v1336, %v1408
    %v1410 = vpop.f32.mrf.mxu0
    %v1411 = vadd.f32 %v1338, %v1410
    %1412 = vmatprep.mubr.bf16.mxu0 %v374
    %1413 = vmatmul.mubr.bf16.gmra.mxu0 %v373
    %v1414 = vpop.f32.mrf.mxu0
    %v1415 = vadd.f32 %v1342, %v1414
    %v1416 = vpop.f32.mrf.mxu0
    %v1417 = vadd.f32 %v1344, %v1416
    %v1418 = vpop.f32.mrf.mxu0
    %v1419 = vadd.f32 %v1346, %v1418
    %v1420 = vpop.f32.mrf.mxu0
    %v1421 = vadd.f32 %v1348, %v1420
    %1422 = vmatprep.mubr.bf16.mxu0 %v383
    %1423 = vmatmul.mubr.bf16.gmra.mxu0 %v382
    %v1424 = vpop.f32.mrf.mxu0
    %v1425 = vadd.f32 %v1352, %v1424
    %v1426 = vpop.f32.mrf.mxu0
    %v1427 = vadd.f32 %v1354, %v1426
    %v1428 = vpop.f32.mrf.mxu0
    %v1429 = vadd.f32 %v1356, %v1428
    %v1430 = vpop.f32.mrf.mxu0
    %v1431 = vadd.f32 %v1358, %v1430
    %1432 = vdwg.mxu0
    %1433 = vmatprep.subr.bf16.mxu0 %v996
    %1434 = vmatpush1.bf16.msra.mxu0 %v995
    %1435 = vmatprep.subr.bf16.mxu0 %v994
    %1436 = vmatpush1.bf16.msra.mxu0 %v993
    %1437 = vmatprep.subr.bf16.mxu0 %v992
    %1438 = vmatpush1.bf16.msra.mxu0 %v991
    %1439 = vmatprep.subr.bf16.mxu0 %v990
    %1440 = vmatpush1.bf16.msra.mxu0 %v989
    %1441 = vmatprep.subr.bf16.mxu0 %v988
    %1442 = vmatpush1.bf16.msra.mxu0 %v987
    %1443 = vmatprep.subr.bf16.mxu0 %v986
    %1444 = vmatpush1.bf16.msra.mxu0 %v985
    %1445 = vmatprep.subr.bf16.mxu0 %v984
    %1446 = vmatpush1.bf16.msra.mxu0 %v983
    %1447 = vmatprep.subr.bf16.mxu0 %v982
    %1448 = vmatpush1.bf16.msra.mxu0 %v981
    %1449 = vmatprep.subr.bf16.mxu0 0
    %1450 = vmatpush2.bf16.msra.mxu0 0
    %1451 = vmatprep.subr.bf16.mxu0 0
    %1452 = vmatpush2.bf16.msra.mxu0 0
    %1453 = vmatprep.subr.bf16.mxu0 0
    %1454 = vmatpush2.bf16.msra.mxu0 0
    %1455 = vmatprep.subr.bf16.mxu0 0
    %1456 = vmatpush2.bf16.msra.mxu0 0
    %1457 = vmatprep.subr.bf16.mxu0 0
    %1458 = vmatpush2.bf16.msra.mxu0 0
    %1459 = vmatprep.subr.bf16.mxu0 0
    %1460 = vmatpush2.bf16.msra.mxu0 0
    %1461 = vmatprep.subr.bf16.mxu0 0
    %1462 = vmatpush2.bf16.msra.mxu0 0
    %1463 = vmatprep.subr.bf16.mxu0 0
    %1464 = vmatpush2.bf16.msra.mxu0 0
    %1465 = vmatprep.mubr.bf16.mxu0 0
    %1466 = vmatmul.mubr.bf16.gmra.mxu0 %v357
    %v1467 = vpop.f32.mrf.mxu0
    %v1468 = vadd.f32 %v1395, %v1467
    %v1469 = vpop.f32.mrf.mxu0
    %v1470 = vadd.f32 %v1397, %v1469
    %v1471 = vpop.f32.mrf.mxu0
    %v1472 = vadd.f32 %v1399, %v1471
    %v1473 = vpop.f32.mrf.mxu0
    %v1474 = vadd.f32 %v1401, %v1473
    %1475 = vmatprep.mubr.bf16.mxu0 0
    %1476 = vmatmul.mubr.bf16.gmra.mxu0 %v366
    %v1477 = vpop.f32.mrf.mxu0
    %v1478 = vadd.f32 %v1405, %v1477
    %v1479 = vpop.f32.mrf.mxu0
    %v1480 = vadd.f32 %v1407, %v1479
    %v1481 = vpop.f32.mrf.mxu0
    %v1482 = vadd.f32 %v1409, %v1481
    %v1483 = vpop.f32.mrf.mxu0
    %v1484 = vadd.f32 %v1411, %v1483
    %1485 = vmatprep.mubr.bf16.mxu0 0
    %1486 = vmatmul.mubr.bf16.gmra.mxu0 %v375
    %v1487 = vpop.f32.mrf.mxu0
    %v1488 = vadd.f32 %v1415, %v1487
    %v1489 = vpop.f32.mrf.mxu0
    %v1490 = vadd.f32 %v1417, %v1489
    %v1491 = vpop.f32.mrf.mxu0
    %v1492 = vadd.f32 %v1419, %v1491
    %v1493 = vpop.f32.mrf.mxu0
    %v1494 = vadd.f32 %v1421, %v1493
    %1495 = vmatprep.mubr.bf16.mxu0 0
    %1496 = vmatmul.mubr.bf16.gmra.mxu0 %v384
    %v1497 = vpop.f32.mrf.mxu0
    %v1498 = vadd.f32 %v1425, %v1497
    %v1499 = vpop.f32.mrf.mxu0
    %v1500 = vadd.f32 %v1427, %v1499
    %v1501 = vpop.f32.mrf.mxu0
    %v1502 = vadd.f32 %v1429, %v1501
    %v1503 = vpop.f32.mrf.mxu0
    %v1504 = vadd.f32 %v1431, %v1503
    %1505 = vdwg.mxu0
    %v1506 = vmax.f32 %v1468, 0.0
    %v1507 = vmax.f32 %v1470, 0.0
    %v1508 = vmax.f32 %v1472, 0.0
    %v1509 = vmax.f32 %v1474, 0.0
    %v1510 = vmax.f32 %v1478, 0.0
    %v1511 = vmax.f32 %v1480, 0.0
    %v1512 = vmax.f32 %v1482, 0.0
    %v1513 = vmax.f32 %v1484, 0.0
    %v1514 = vmax.f32 %v1488, 0.0
    %v1515 = vmax.f32 %v1490, 0.0
    %v1516 = vmax.f32 %v1492, 0.0
    %v1517 = vmax.f32 %v1494, 0.0
    %v1518 = vmax.f32 %v1498, 0.0
    %v1519 = vmax.f32 %v1500, 0.0
    %v1520 = vmax.f32 %v1502, 0.0
    %v1521 = vmax.f32 %v1504, 0.0
    %v1522 = vpack.c.bf16 %v1508, %v1506
    %v1523 = vpack.c.bf16 %v1509, %v1507
    %v1524 = vpack.c.bf16 %v1512, %v1510
    %v1525 = vpack.c.bf16 %v1513, %v1511
    %v1526 = vpack.c.bf16 %v1516, %v1514
    %v1527 = vpack.c.bf16 %v1517, %v1515
    %v1528 = vpack.c.bf16 %v1520, %v1518
    %v1529 = vpack.c.bf16 %v1521, %v1519
    %v1538 = vunpack.c.l.b16 %v1522
    %v1539 = vunpack.c.l.b16 %v1523
    %v1540 = vunpack.c.h.b16 %v1522
    %v1541 = vunpack.c.h.b16 %v1523
    %v1542 = vunpack.c.l.b16 %v1524
    %v1543 = vunpack.c.l.b16 %v1525
    %v1544 = vunpack.c.h.b16 %v1524
    %v1545 = vunpack.c.h.b16 %v1525
    %v1546 = vunpack.c.l.b16 %v1526
    %v1547 = vunpack.c.l.b16 %v1527
    %v1548 = vunpack.c.h.b16 %v1526
    %v1549 = vunpack.c.h.b16 %v1527
    %v1550 = vunpack.c.l.b16 %v1528
    %v1551 = vunpack.c.l.b16 %v1529
    %v1552 = vunpack.c.h.b16 %v1528
    %v1553 = vunpack.c.h.b16 %v1529
    %v1554 = vpack.c.b16 %v1539, %v1538
    %v1555 = vpack.c.b16 %v1541, %v1540
    %v1556 = vpack.c.b16 %v1543, %v1542
    %v1557 = vpack.c.b16 %v1545, %v1544
    %v1558 = vpack.c.b16 %v1547, %v1546
    %v1559 = vpack.c.b16 %v1549, %v1548
    %v1560 = vpack.c.b16 %v1551, %v1550
    %v1561 = vpack.c.b16 %v1553, %v1552
    %1570 = vst [vmem:[%s3] sm:$0xff] %v1554
    %1571 = vst [vmem:[%s3 + $0x8] sm:$0xff] %v1555
    %1572 = vst [vmem:[%s3 + $0x10] sm:$0xff] %v1556
    %1573 = vst [vmem:[%s3 + $0x18] sm:$0xff] %v1557
    %1574 = vst [vmem:[%s3 + $0x20] sm:$0xff] %v1558
    %1575 = vst [vmem:[%s3 + $0x28] sm:$0xff] %v1559
    %1576 = vst [vmem:[%s3 + $0x30] sm:$0xff] %v1560
    %1577 = vst [vmem:[%s3 + $0x38] sm:$0xff] %v1561
    // Predicated region
    $region22: #{cnn_forward.6} parent=1 // pred_check
      _
    $region23: #{cnn_forward.6} parent=1 // pred_check_branch
      %1579 = sbr.rel (0) target = $region25
    $region24: #{cnn_forward.6} parent=1 // pred_region
      _
    $region25: #{cnn_forward.6} parent=1 // pred_fallthru
      _
    // Predicated region
    $region26: #{cnn_forward.6} parent=1 // pred_check
      _
    $region27: #{cnn_forward.6} parent=1 // pred_check_branch
      %1581 = sbr.rel (0) target = $region29
    $region28: #{cnn_forward.6} parent=1 // pred_region
      _
    $region29: #{cnn_forward.6} parent=1 // pred_fallthru
      _
    %1582 = vsyncpa [#allocation3], 1
    %1583 = vsyncpa [#allocation5], 1

// kernel: cnn_forward.7
$region0: #{cnn_forward.7}
  #allocation0 [shape = 'u32[]', space=smem, size = 0x4, offset = 0x4, fixed_abs, tag = 'smem constant byte address 0x4 - core index']
  #allocation1 [shape = 'u32[144,128]{1,0:T(1,128)}', space=vmem, size = 0x12000, scoped, tag = 'internal scratch']
  #allocation2 [shape = 'f32[16,512]{1,0:T(8,128)}', space=vmem, size = 0x8000, scoped, tag = 'scratch operand']
  %s0 = inlined_call_operand.vmem [shape: bf16[16,6400], index: 0, kind: input, shape index: {}]
  %s1 = inlined_call_operand.hbm [shape: bf16[6400,1024], index: 1, kind: input, shape index: {}]
  %s2 = inlined_call_operand.hbm [shape: f32[1,1024], index: 2, kind: input, shape index: {}]
  %s3 = inlined_call_operand.hbm [shape: bf16[1024,128], index: 3, kind: input, shape index: {}]
  %s4 = inlined_call_operand.vmem [shape: f32[2,16,128], index: 4, kind: output, shape index: {}]
  %s5 = sld [smem:[#allocation0]]
  $region92: #{cnn_forward.7} parent=0
    _
  %s7 = ssub.s32 1, %s5
  %s8 = scalar_select 0, %s7, %s5
  $region1: #{cnn_forward.7} parent=0
    #allocation3 [shape = 'u8[81920]{0}', space=vmem, size = 0x14000, scoped, tag = 'input window, operand 0']
    #allocation4 [shape = 'u8[2621440]{0}', space=vmem, size = 0x280000, scoped, tag = 'input window, operand 1']
    #allocation5 [shape = 's32[2]{0}', space=sflag, size = 0x8, scoped, tag = 'scoped memory for cnn_forward.7']
    #allocation6 [shape = 'u8[4096]{0}', space=vmem, size = 0x1000, scoped, tag = 'input window, operand 2']
    #allocation7 [shape = 's32[2]{0}', space=sflag, size = 0x8, scoped, tag = 'scoped memory for cnn_forward.7']
    #allocation8 [shape = 'u8[262144]{0}', space=vmem, size = 0x40000, scoped, tag = 'input window, operand 3']
    %9 = vsyncpa [#allocation5], 0
    %s10 = scalar_lea.sflag [#allocation5], 1
    %11 = vsyncpa %s10, 0
    %12 = vsyncpa [#allocation7], 0
    %s13 = scalar_lea.sflag [#allocation7], 1
    %14 = vsyncpa %s13, 0
    loop: start=0, step=1, limit=12
    $region2: #{cnn_forward.7} parent=1 // loop_pre_header
      _
    $region3: #{cnn_forward.7} parent=1 // loop_header
      %s16 = sphi 0, %s20
      %p17 = scmp.ge.s32.totalorder %s16, 12
      %s23 = sphi 0, %s35
      %s24 = sphi 0, %s31
      %s25 = sphi 0, %s23
      %s26 = sphi 0, %s24
      %s27 = sphi 0, %s25
      %s28 = sphi 0, %s26
      %s38 = sphi 0, %s40
      %s41 = sphi 0, %s38
      %s42 = sphi 0, %s41
      %s58 = sphi 0, %s42
      %s66 = sphi 0, %s68
      %s69 = sphi 0, %s66
      %s70 = sphi 0, %s69
      %s86 = sphi 0, %s70
      %s92 = sphi 0, %s94
      %s95 = sphi 0, %s92
      %s96 = sphi 0, %s95
      %s112 = sphi 0, %s96
      %s118 = sphi 0, %s120
      %s121 = sphi 0, %s118
      %s122 = sphi 0, %s121
      %s138 = sphi 0, %s122
      %s144 = sphi 0, %s146
      %s147 = sphi 0, %s144
      %s148 = sphi 0, %s147
      %s164 = sphi 0, %s148
    $region4: #{cnn_forward.7} parent=1 // loop_header_branch
      %19 = sbr.rel (%p17) target = $region8
    $region5: #{cnn_forward.7} parent=1 // loop_body
      %s21 = ssub.s32 %s16, 1
      %s22 = ssub.s32 %s16, 2
      %s29 = sadd.s32 1, %s24
      %p30 = scmp.ge.s32.totalorder %s29, 5
      %s31 = scalar_select %p30, 0, %s29
      %s32 = sadd.s32 1, %s23
      %s33 = scalar_select %p30, %s32, %s23
      %p34 = scmp.ge.s32.totalorder %s33, 2
      %s35 = scalar_select %p34, 0, %s33
      %s36 = ssub.s32 %s24, %s31
      %p37 = scmp.eq.s32.totalorder %s36, 0
      %s39 = sadd.s32 %s38, 1
      %s40 = scalar_select %p37, %s38, %s39
      %p43 = pneg %p37
      %p44 = scmp.eq.s32.totalorder %s16, 9
      %p45 = por %p43, %p44
      %p46 = scmp.ne.s32.totalorder %s38, %s41
      %p47 = scmp.eq.s32.totalorder %s16, 0
      %p48 = por %p46, %p47
      %p49 = scmp.ne.s32.totalorder %s38, %s41
      %p50 = scmp.eq.s32.totalorder %s21, 9
      %p51 = por %p49, %p50
      %p52 = scmp.ne.s32.totalorder %s41, %s42
      %p53 = scmp.eq.s32.totalorder %s21, 0
      %p54 = por %p52, %p53
      %p55 = scmp.ne.s32.totalorder %s41, %s42
      %p56 = scmp.eq.s32.totalorder %s22, 9
      %p57 = por %p55, %p56
      %p59 = scmp.ne.s32.totalorder %s42, %s58
      %p60 = scmp.eq.s32.totalorder %s22, 0
      %p61 = por %p59, %p60
      %s62 = ssub.s32 %s24, %s31
      %s63 = ssub.s32 %s23, %s35
      %s64 = sor.u32 %s62, %s63
      %p65 = scmp.eq.s32.totalorder %s64, 0
      %s67 = sadd.s32 %s66, 1
      %s68 = scalar_select %p65, %s66, %s67
      %p71 = pneg %p65
      %p72 = scmp.eq.s32.totalorder %s16, 9
      %p73 = por %p71, %p72
      %p74 = scmp.ne.s32.totalorder %s66, %s69
      %p75 = scmp.eq.s32.totalorder %s16, 0
      %p76 = por %p74, %p75
      %p77 = scmp.ne.s32.totalorder %s66, %s69
      %p78 = scmp.eq.s32.totalorder %s21, 9
      %p79 = por %p77, %p78
      %p80 = scmp.ne.s32.totalorder %s69, %s70
      %p81 = scmp.eq.s32.totalorder %s21, 0
      %p82 = por %p80, %p81
      %p83 = scmp.ne.s32.totalorder %s69, %s70
      %p84 = scmp.eq.s32.totalorder %s22, 9
      %p85 = por %p83, %p84
      %p87 = scmp.ne.s32.totalorder %s70, %s86
      %p88 = scmp.eq.s32.totalorder %s22, 0
      %p89 = por %p87, %p88
      %s90 = ssub.s32 %s23, %s35
      %p91 = scmp.eq.s32.totalorder %s90, 0
      %s93 = sadd.s32 %s92, 1
      %s94 = scalar_select %p91, %s92, %s93
      %p97 = pneg %p91
      %p98 = scmp.eq.s32.totalorder %s16, 9
      %p99 = por %p97, %p98
      %p100 = scmp.ne.s32.totalorder %s92, %s95
      %p101 = scmp.eq.s32.totalorder %s16, 0
      %p102 = por %p100, %p101
      %p103 = scmp.ne.s32.totalorder %s92, %s95
      %p104 = scmp.eq.s32.totalorder %s21, 9
      %p105 = por %p103, %p104
      %p106 = scmp.ne.s32.totalorder %s95, %s96
      %p107 = scmp.eq.s32.totalorder %s21, 0
      %p108 = por %p106, %p107
      %p109 = scmp.ne.s32.totalorder %s95, %s96
      %p110 = scmp.eq.s32.totalorder %s22, 9
      %p111 = por %p109, %p110
      %p113 = scmp.ne.s32.totalorder %s96, %s112
      %p114 = scmp.eq.s32.totalorder %s22, 0
      %p115 = por %p113, %p114
      %s116 = ssub.s32 %s23, %s35
      %p117 = scmp.eq.s32.totalorder %s116, 0
      %s119 = sadd.s32 %s118, 1
      %s120 = scalar_select %p117, %s118, %s119
      %p123 = pneg %p117
      %p124 = scmp.eq.s32.totalorder %s16, 9
      %p125 = por %p123, %p124
      %p126 = scmp.ne.s32.totalorder %s118, %s121
      %p127 = scmp.eq.s32.totalorder %s16, 0
      %p128 = por %p126, %p127
      %p129 = scmp.ne.s32.totalorder %s118, %s121
      %p130 = scmp.eq.s32.totalorder %s21, 9
      %p131 = por %p129, %p130
      %p132 = scmp.ne.s32.totalorder %s121, %s122
      %p133 = scmp.eq.s32.totalorder %s21, 0
      %p134 = por %p132, %p133
      %p135 = scmp.ne.s32.totalorder %s121, %s122
      %p136 = scmp.eq.s32.totalorder %s22, 9
      %p137 = por %p135, %p136
      %p139 = scmp.ne.s32.totalorder %s122, %s138
      %p140 = scmp.eq.s32.totalorder %s22, 0
      %p141 = por %p139, %p140
      %s142 = ssub.s32 %s23, %s35
      %p143 = scmp.eq.s32.totalorder %s142, 0
      %s145 = sadd.s32 %s144, 1
      %s146 = scalar_select %p143, %s144, %s145
      %p149 = pneg %p143
      %p150 = scmp.eq.s32.totalorder %s16, 9
      %p151 = por %p149, %p150
      %p152 = scmp.ne.s32.totalorder %s144, %s147
      %p153 = scmp.eq.s32.totalorder %s16, 0
      %p154 = por %p152, %p153
      %p155 = scmp.ne.s32.totalorder %s144, %s147
      %p156 = scmp.eq.s32.totalorder %s21, 9
      %p157 = por %p155, %p156
      %p158 = scmp.ne.s32.totalorder %s147, %s148
      %p159 = scmp.eq.s32.totalorder %s21, 0
      %p160 = por %p158, %p159
      %p161 = scmp.ne.s32.totalorder %s147, %s148
      %p162 = scmp.eq.s32.totalorder %s22, 9
      %p163 = por %p161, %p162
      %p165 = scmp.ne.s32.totalorder %s148, %s164
      %p166 = scmp.eq.s32.totalorder %s22, 0
      %p167 = por %p165, %p166
      %p168 = scmp.le.s32.totalorder 1, %s16
      %p169 = scmp.lt.s32.totalorder %s16, 11
      %p170 = pnand %p168, %p169
      %p171 = pneg %p170
      // Predicated region
      $region9: #{cnn_forward.7} parent=5 // pred_check
        _
      $region10: #{cnn_forward.7} parent=5 // pred_check_branch
        %173 = sbr.rel (%p170) target = $region12
      $region11: #{cnn_forward.7} parent=5 // pred_region
        %s174 = ssub.s32 %s16, 1
      $region12: #{cnn_forward.7} parent=5 // pred_fallthru
        _
      %p175 = scmp.lt.s32.totalorder %s16, 10
      // Predicated region
      $region13: #{cnn_forward.7} parent=5 // pred_check
        %p176 = pneg %p175
      $region14: #{cnn_forward.7} parent=5 // pred_check_branch
        %178 = sbr.rel (%p176) target = $region16
      $region15: #{cnn_forward.7} parent=5 // pred_region
        // Predicated region
        $region17: #{cnn_forward.7} parent=15 // pred_check
          %p179 = pneg %p48
        $region18: #{cnn_forward.7} parent=15 // pred_check_branch
          %181 = sbr.rel (%p179) target = $region20
        $region19: #{cnn_forward.7} parent=15 // pred_region
          %s182 = sand.u32 %s38, 1
          %s183 = sand.u32 %s38, 1
          %s184 = smul.addr %s183, 80
          %s185 = scalar_lea.vmem [#allocation3], %s184
          %s186 = smul.u32 10, %s24
          %s187 = smul.addr %s186, 4
          %s188 = scalar_lea.vmem %s0, %s187
          // Predicated region
          $region21: #{cnn_forward.7} parent=19 // pred_check
            _
          $region22: #{cnn_forward.7} parent=19 // pred_check_branch
            %190 = sbr.rel (0) target = $region24
          $region23: #{cnn_forward.7} parent=19 // pred_region
            // Predicated region
            $region25: #{cnn_forward.7} parent=23 // pred_check
              _
            $region26: #{cnn_forward.7} parent=23 // pred_check_branch
              %192 = sbr.rel (0) target = $region28
            $region27: #{cnn_forward.7} parent=23 // pred_region
              loop: start=0, step=1, limit=1
              $region29: #{cnn_forward.7} parent=27 // loop_pre_header
                _
              $region30: #{cnn_forward.7} parent=27 // loop_header
                %s194 = sphi 0, %s198
                %p195 = scmp.ge.s32.totalorder %s194, 1
                %s199 = sphi %s188, %s188
                %s200 = sphi %s185, %s185
              $region31: #{cnn_forward.7} parent=27 // loop_header_branch
                %197 = sbr.rel (%p195) target = $region35
              $region32: #{cnn_forward.7} parent=27 // loop_body
                %v201 = vld [vmem:[%s199] sm:$0xff]
                %202 = vst [vmem:[%s200] sm:$0xff] %v201
                %v203 = vld [vmem:[%s199 + $0x8] sm:$0xff]
                %204 = vst [vmem:[%s200 + $0x8] sm:$0xff] %v203
                %v205 = vld [vmem:[%s199 + $0x10] sm:$0xff]
                %206 = vst [vmem:[%s200 + $0x10] sm:$0xff] %v205
                %v207 = vld [vmem:[%s199 + $0x18] sm:$0xff]
                %208 = vst [vmem:[%s200 + $0x18] sm:$0xff] %v207
                %v209 = vld [vmem:[%s199 + $0x20] sm:$0xff]
                %210 = vst [vmem:[%s200 + $0x20] sm:$0xff] %v209
                %v211 = vld [vmem:[%s199 + $0xc8] sm:$0xff]
                %212 = vst [vmem:[%s200 + $0x28] sm:$0xff] %v211
                %v213 = vld [vmem:[%s199 + $0xd0] sm:$0xff]
                %214 = vst [vmem:[%s200 + $0x30] sm:$0xff] %v213
                %v215 = vld [vmem:[%s199 + $0xd8] sm:$0xff]
                %216 = vst [vmem:[%s200 + $0x38] sm:$0xff] %v215
                %v217 = vld [vmem:[%s199 + $0xe0] sm:$0xff]
                %218 = vst [vmem:[%s200 + $0x40] sm:$0xff] %v217
                %v219 = vld [vmem:[%s199 + $0xe8] sm:$0xff]
                %220 = vst [vmem:[%s200 + $0x48] sm:$0xff] %v219
              $region33: #{cnn_forward.7} parent=27 // loop_footer
                %s198 = sadd.s32 1, %s194
              $region34: #{cnn_forward.7} parent=27 // loop_footer_branch
                %193 = sbr.rel target = $region30
              $region35: #{cnn_forward.7} parent=27 // loop_exit
                _
            $region28: #{cnn_forward.7} parent=23 // pred_fallthru
              _
            // Predicated region
            $region36: #{cnn_forward.7} parent=23 // pred_check
              _
            $region37: #{cnn_forward.7} parent=23 // pred_check_branch
              %222 = sbr.rel target = $region39
            $region38: #{cnn_forward.7} parent=23 // pred_region
              _
            $region39: #{cnn_forward.7} parent=23 // pred_fallthru
              _
          $region24: #{cnn_forward.7} parent=19 // pred_fallthru
            _
          %223 = vnop
        $region20: #{cnn_forward.7} parent=15 // pred_fallthru
          _
        // Predicated region
        $region40: #{cnn_forward.7} parent=15 // pred_check
          %p224 = pneg %p76
        $region41: #{cnn_forward.7} parent=15 // pred_check_branch
          %226 = sbr.rel (%p224) target = $region43
        $region42: #{cnn_forward.7} parent=15 // pred_region
          %s227 = sand.u32 %s66, 1
          %s228 = scalar_lea.sflag [#allocation5], %s227
          %s229 = sand.u32 %s66, 1
          %s230 = smul.addr %s229, 2560
          %s231 = scalar_lea.vmem [#allocation4], %s230
          %s232 = smul.u32 160, %s24
          %s233 = smul.u32 4, %s23
          %s235 = ssub.s32 40960, 40960
          %236 = vsyncadd %s228, %s235
          %s237 = smul.addr %s232, 8
          %s238 = sadd.s32 %s233, %s237
          %s239 = smul.addr %s238, 64
          %s240 = scalar_lea.hbm %s1, %s239
          %s241 = sshll.u32 %s231, 4
          %s242 = int_to_ptr.vmem [resolvable:$true] %s241
          %247 = dma.hbm_to_vmem [thread:$0]  %s240, 40960, %s242, %s228, 512, 256, 16
        $region43: #{cnn_forward.7} parent=15 // pred_fallthru
          _
        // Predicated region
        $region44: #{cnn_forward.7} parent=15 // pred_check
          %p248 = pneg %p102
        $region45: #{cnn_forward.7} parent=15 // pred_check_branch
          %250 = sbr.rel (%p248) target = $region47
        $region46: #{cnn_forward.7} parent=15 // pred_region
          %s251 = sand.u32 %s16, 1
          %s252 = scalar_lea.sflag [#allocation7], %s251
          %s253 = sand.u32 %s92, 1
          %s254 = smul.addr %s253, 4
          %s255 = scalar_lea.vmem [#allocation6], %s254
          %s256 = smul.u32 4, %s23
          %s258 = ssub.s32 64, 64
          %259 = vsyncadd %s252, %s258
          %s260 = smul.addr %s256, 16
          %s261 = scalar_lea.hbm %s2, %s260
          %s263 = sshll.u32 %s255, 4
          %s264 = int_to_ptr.vmem [resolvable:$true] %s263
          %266 = dma.hbm_to_vmem [thread:$0]  %s261, 64, %s264, %s252
        $region47: #{cnn_forward.7} parent=15 // pred_fallthru
          _
        // Predicated region
        $region48: #{cnn_forward.7} parent=15 // pred_check
          %p267 = pneg %p128
        $region49: #{cnn_forward.7} parent=15 // pred_check_branch
          %269 = sbr.rel (%p267) target = $region51
        $region50: #{cnn_forward.7} parent=15 // pred_region
          %s270 = sand.u32 %s16, 1
          %s271 = scalar_lea.sflag [#allocation7], %s270
          %s272 = sand.u32 %s118, 1
          %s273 = smul.addr %s272, 256
          %s274 = scalar_lea.vmem [#allocation8], %s273
          %s275 = smul.u32 64, %s23
          %s277 = ssub.s32 4096, 4096
          %278 = vsyncadd %s271, %s277
          %s279 = smul.addr %s275, 64
          %s280 = scalar_lea.hbm %s3, %s279
          %s281 = sshll.u32 %s274, 4
          %s282 = int_to_ptr.vmem [resolvable:$true] %s281
          %287 = dma.hbm_to_vmem [thread:$0]  %s280, 4096, %s282, %s271, 64, 64, 4
        $region51: #{cnn_forward.7} parent=15 // pred_fallthru
          _
      $region16: #{cnn_forward.7} parent=5 // pred_fallthru
        _
      %p288 = scmp.le.s32.totalorder 1, %s16
      %p289 = scmp.lt.s32.totalorder %s16, 11
      %p290 = pnand %p288, %p289
      %p291 = pneg %p290
      // Predicated region
      $region52: #{cnn_forward.7} parent=5 // pred_check
        _
      $region53: #{cnn_forward.7} parent=5 // pred_check_branch
        %293 = sbr.rel (%p290) target = $region55
      $region54: #{cnn_forward.7} parent=5 // pred_region
        %s294 = ssub.s32 %s16, 1
        %s295 = sand.u32 %s41, 1
        %s296 = sand.u32 %s41, 1
        %s297 = smul.addr %s296, 80
        %s298 = scalar_lea.vmem [#allocation3], %s297
        // Predicated region
        $region56: #{cnn_forward.7} parent=54 // pred_check
          %p299 = pneg %p54
        $region57: #{cnn_forward.7} parent=54 // pred_check_branch
          %301 = sbr.rel (%p299) target = $region59
        $region58: #{cnn_forward.7} parent=54 // pred_region
          _
        $region59: #{cnn_forward.7} parent=54 // pred_fallthru
          _
        %s302 = sand.u32 %s69, 1
        %s303 = scalar_lea.sflag [#allocation5], %s302
        %s304 = sand.u32 %s69, 1
        %s305 = smul.addr %s304, 2560
        %s306 = scalar_lea.vmem [#allocation4], %s305
        // Predicated region
        $region60: #{cnn_forward.7} parent=54 // pred_check
          %p307 = pneg %p82
        $region61: #{cnn_forward.7} parent=54 // pred_check_branch
          %309 = sbr.rel (%p307) target = $region63
        $region62: #{cnn_forward.7} parent=54 // pred_region
          %310 = dma.done %s303, 40960
        $region63: #{cnn_forward.7} parent=54 // pred_fallthru
          _
        %s311 = sand.u32 %s21, 1
        %s312 = scalar_lea.sflag [#allocation7], %s311
        %s313 = sand.u32 %s95, 1
        %s314 = smul.addr %s313, 4
        %s315 = scalar_lea.vmem [#allocation6], %s314
        // Predicated region
        $region64: #{cnn_forward.7} parent=54 // pred_check
          %p316 = pneg %p108
        $region65: #{cnn_forward.7} parent=54 // pred_check_branch
          %318 = sbr.rel (%p316) target = $region67
        $region66: #{cnn_forward.7} parent=54 // pred_region
          %319 = dma.done %s312, 64
        $region67: #{cnn_forward.7} parent=54 // pred_fallthru
          _
        %s320 = sand.u32 %s21, 1
        %s321 = scalar_lea.sflag [#allocation7], %s320
        %s322 = sand.u32 %s121, 1
        %s323 = smul.addr %s322, 256
        %s324 = scalar_lea.vmem [#allocation8], %s323
        // Predicated region
        $region68: #{cnn_forward.7} parent=54 // pred_check
          %p325 = pneg %p134
        $region69: #{cnn_forward.7} parent=54 // pred_check_branch
          %327 = sbr.rel (%p325) target = $region71
        $region70: #{cnn_forward.7} parent=54 // pred_region
          %328 = dma.done %s321, 4096
        $region71: #{cnn_forward.7} parent=54 // pred_fallthru
          _
        %s329 = sand.u32 %s41, 1
        %s330 = sand.u32 %s41, 1
        %s331 = smul.addr %s330, 80
        %s332 = scalar_lea.vmem [#allocation3], %s331
        %p333 = pneg %p54
        %p334 = pneg %p51
        %s335 = sand.u32 %s69, 1
        %s336 = scalar_lea.sflag [#allocation5], %s335
        %s337 = sand.u32 %s69, 1
        %s338 = smul.addr %s337, 2560
        %s339 = scalar_lea.vmem [#allocation4], %s338
        %p340 = pneg %p82
        %p341 = pneg %p79
        %s342 = sand.u32 %s21, 1
        %s343 = scalar_lea.sflag [#allocation7], %s342
        %s344 = sand.u32 %s95, 1
        %s345 = smul.addr %s344, 4
        %s346 = scalar_lea.vmem [#allocation6], %s345
        %p347 = pneg %p108
        %p348 = pneg %p105
        %s349 = sand.u32 %s21, 1
        %s350 = scalar_lea.sflag [#allocation7], %s349
        %s351 = sand.u32 %s121, 1
        %s352 = smul.addr %s351, 256
        %s353 = scalar_lea.vmem [#allocation8], %s352
        %p354 = pneg %p134
        %p355 = pneg %p131
        %p356 = pneg %p160
        %p357 = pneg %p157
        %p358 = scmp.lt.s32.totalorder %s25, 1
        %s359 = scalar_select %p358, %s25, 1
        %s360 = smul.addr %s359, 2
        %s361 = smul.addr %s360, 8
        %s362 = scalar_lea.vmem %s4, %s361
        %s363 = smul.u32 10, %s26
        %s364 = smul.u32 160, %s26
        %s365 = smul.u32 4, %s25
        %s366 = smul.u32 4, %s25
        %s367 = smul.u32 64, %s25
        %p368 = scmp.lt.s32.totalorder %s25, 1
        %s369 = scalar_select %p368, %s25, 1
        %s370 = smul.addr %s369, 2
        %s371 = smul.addr %s370, 8
        %s372 = scalar_lea.vmem %s4, %s371
        %p374 = scmp.eq.s32.totalorder %s26, 0
        // Predicated region
        $region72: #{cnn_forward.7} parent=54 // pred_check
          %p375 = pneg %p374
        $region73: #{cnn_forward.7} parent=54 // pred_check_branch
          %377 = sbr.rel (%p375) target = $region75
        $region74: #{cnn_forward.7} parent=54 // pred_region
          %v378 = vld [vmem:[%s315] sm:$0xf]
          %v380 = vlaneseq
          %v381 = vshrl.u32 %v380, 7
          %v382 = vsub.s32 0, %v381
          %v383 = vrot.slane %v378, %v382
          %v384 = vlaneseq
          %v385 = vshrl.u32 %v384, 7
          %v386 = vsub.s32 1, %v385
          %v387 = vrot.slane %v378, %v386
          %v388 = vlaneseq
          %v389 = vshrl.u32 %v388, 7
          %v390 = vsub.s32 2, %v389
          %v391 = vrot.slane %v378, %v390
          %v392 = vlaneseq
          %v393 = vshrl.u32 %v392, 7
          %v394 = vsub.s32 3, %v393
          %v395 = vrot.slane %v378, %v394
          %v400 = vadd.f32 %v383, 0.0
          %v401 = vadd.f32 %v387, 0.0
          %v402 = vadd.f32 %v391, 0.0
          %v403 = vadd.f32 %v395, 0.0
          %404 = vst [vmem:[#allocation2] sm:$0xff] %v400
          %405 = vst [vmem:[#allocation2 + $0x8] sm:$0xff] %v401
          %406 = vst [vmem:[#allocation2 + $0x10] sm:$0xff] %v402
          %407 = vst [vmem:[#allocation2 + $0x18] sm:$0xff] %v403
          %408 = vst [vmem:[#allocation2 + $0x20] sm:$0xff] %v400
          %409 = vst [vmem:[#allocation2 + $0x28] sm:$0xff] %v401
          %410 = vst [vmem:[#allocation2 + $0x30] sm:$0xff] %v402
          %411 = vst [vmem:[#allocation2 + $0x38] sm:$0xff] %v403
        $region75: #{cnn_forward.7} parent=54 // pred_fallthru
          _
        %v412 = vld [vmem:[#allocation2] sm:$0xff]
        %v413 = vld [vmem:[#allocation2 + $0x8] sm:$0xff]
        %v414 = vld [vmem:[#allocation2 + $0x10] sm:$0xff]
        %v415 = vld [vmem:[#allocation2 + $0x18] sm:$0xff]
        %v416 = vld [vmem:[#allocation2 + $0x20] sm:$0xff]
        %v417 = vld [vmem:[#allocation2 + $0x28] sm:$0xff]
        %v418 = vld [vmem:[#allocation2 + $0x30] sm:$0xff]
        %v419 = vld [vmem:[#allocation2 + $0x38] sm:$0xff]
        %v420 = vld [vmem:[%s298] sm:$0xff]
        %v421 = vld [vmem:[%s298 + $0x8] sm:$0xff]
        %v422 = vld [vmem:[%s298 + $0x10] sm:$0xff]
        %v423 = vld [vmem:[%s298 + $0x18] sm:$0xff]
        %v424 = vld [vmem:[%s298 + $0x20] sm:$0xff]
        %v425 = vld [vmem:[%s298 + $0x28] sm:$0xff]
        %v426 = vld [vmem:[%s298 + $0x30] sm:$0xff]
        %v427 = vld [vmem:[%s298 + $0x38] sm:$0xff]
        %v428 = vld [vmem:[%s298 + $0x40] sm:$0xff]
        %v429 = vld [vmem:[%s298 + $0x48] sm:$0xff]
        %v430 = vld [vmem:[%s306] sm:$0xff]
        %v431 = vld [vmem:[%s306 + $0x8] sm:$0xff]
        %v432 = vld [vmem:[%s306 + $0x10] sm:$0xff]
        %v433 = vld [vmem:[%s306 + $0x18] sm:$0xff]
        %v434 = vld [vmem:[%s306 + $0x20] sm:$0xff]
        %v435 = vld [vmem:[%s306 + $0x28] sm:$0xff]
        %v436 = vld [vmem:[%s306 + $0x30] sm:$0xff]
        %v437 = vld [vmem:[%s306 + $0x38] sm:$0xff]
        %v438 = vld [vmem:[%s306 + $0x40] sm:$0xff]
        %v439 = vld [vmem:[%s306 + $0x48] sm:$0xff]
        %v440 = vld [vmem:[%s306 + $0x50] sm:$0xff]
        %v441 = vld [vmem:[%s306 + $0x58] sm:$0xff]
        %v442 = vld [vmem:[%s306 + $0x60] sm:$0xff]
        %v443 = vld [vmem:[%s306 + $0x68] sm:$0xff]
        %v444 = vld [vmem:[%s306 + $0x70] sm:$0xff]
        %v445 = vld [vmem:[%s306 + $0x78] sm:$0xff]
        %v446 = vld [vmem:[%s306 + $0x80] sm:$0xff]
        %v447 = vld [vmem:[%s306 + $0x88] sm:$0xff]
        %v448 = vld [vmem:[%s306 + $0x90] sm:$0xff]
        %v449 = vld [vmem:[%s306 + $0x98] sm:$0xff]
        %v450 = vld [vmem:[%s306 + $0xa0] sm:$0xff]
        %v451 = vld [vmem:[%s306 + $0xa8] sm:$0xff]
        %v452 = vld [vmem:[%s306 + $0xb0] sm:$0xff]
        %v453 = vld [vmem:[%s306 + $0xb8] sm:$0xff]
        %v454 = vld [vmem:[%s306 + $0xc0] sm:$0xff]
        %v455 = vld [vmem:[%s306 + $0xc8] sm:$0xff]
        %v456 = vld [vmem:[%s306 + $0xd0] sm:$0xff]
        %v457 = vld [vmem:[%s306 + $0xd8] sm:$0xff]
        %v458 = vld [vmem:[%s306 + $0xe0] sm:$0xff]
        %v459 = vld [vmem:[%s306 + $0xe8] sm:$0xff]
        %v460 = vld [vmem:[%s306 + $0xf0] sm:$0xff]
        %v461 = vld [vmem:[%s306 + $0xf8] sm:$0xff]
        %v462 = vld [vmem:[%s306 + $0x100] sm:$0xff]
        %v463 = vld [vmem:[%s306 + $0x108] sm:$0xff]
        %v464 = vld [vmem:[%s306 + $0x110] sm:$0xff]
        %v465 = vld [vmem:[%s306 + $0x118] sm:$0xff]
        %v466 = vld [vmem:[%s306 + $0x120] sm:$0xff]
        %v467 = vld [vmem:[%s306 + $0x128] sm:$0xff]
        %v468 = vld [vmem:[%s306 + $0x130] sm:$0xff]
        %v469 = vld [vmem:[%s306 + $0x138] sm:$0xff]
        %v470 = vld [vmem:[%s306 + $0x140] sm:$0xff]
        %v471 = vld [vmem:[%s306 + $0x148] sm:$0xff]
        %v472 = vld [vmem:[%s306 + $0x150] sm:$0xff]
        %v473 = vld [vmem:[%s306 + $0x158] sm:$0xff]
        %v474 = vld [vmem:[%s306 + $0x160] sm:$0xff]
        %v475 = vld [vmem:[%s306 + $0x168] sm:$0xff]
        %v476 = vld [vmem:[%s306 + $0x170] sm:$0xff]
        %v477 = vld [vmem:[%s306 + $0x178] sm:$0xff]
        %v478 = vld [vmem:[%s306 + $0x180] sm:$0xff]
        %v479 = vld [vmem:[%s306 + $0x188] sm:$0xff]
        %v480 = vld [vmem:[%s306 + $0x190] sm:$0xff]
        %v481 = vld [vmem:[%s306 + $0x198] sm:$0xff]
        %v482 = vld [vmem:[%s306 + $0x1a0] sm:$0xff]
        %v483 = vld [vmem:[%s306 + $0x1a8] sm:$0xff]
        %v484 = vld [vmem:[%s306 + $0x1b0] sm:$0xff]
        %v485 = vld [vmem:[%s306 + $0x1b8] sm:$0xff]
        %v486 = vld [vmem:[%s306 + $0x1c0] sm:$0xff]
        %v487 = vld [vmem:[%s306 + $0x1c8] sm:$0xff]
        %v488 = vld [vmem:[%s306 + $0x1d0] sm:$0xff]
        %v489 = vld [vmem:[%s306 + $0x1d8] sm:$0xff]
        %v490 = vld [vmem:[%s306 + $0x1e0] sm:$0xff]
        %v491 = vld [vmem:[%s306 + $0x1e8] sm:$0xff]
        %v492 = vld [vmem:[%s306 + $0x1f0] sm:$0xff]
        %v493 = vld [vmem:[%s306 + $0x1f8] sm:$0xff]
        %v494 = vld [vmem:[%s306 + $0x200] sm:$0xff]
        %v495 = vld [vmem:[%s306 + $0x208] sm:$0xff]
        %v496 = vld [vmem:[%s306 + $0x210] sm:$0xff]
        %v497 = vld [vmem:[%s306 + $0x218] sm:$0xff]
        %v498 = vld [vmem:[%s306 + $0x220] sm:$0xff]
        %v499 = vld [vmem:[%s306 + $0x228] sm:$0xff]
        %v500 = vld [vmem:[%s306 + $0x230] sm:$0xff]
        %v501 = vld [vmem:[%s306 + $0x238] sm:$0xff]
        %v502 = vld [vmem:[%s306 + $0x240] sm:$0xff]
        %v503 = vld [vmem:[%s306 + $0x248] sm:$0xff]
        %v504 = vld [vmem:[%s306 + $0x250] sm:$0xff]
        %v505 = vld [vmem:[%s306 + $0x258] sm:$0xff]
        %v506 = vld [vmem:[%s306 + $0x260] sm:$0xff]
        %v507 = vld [vmem:[%s306 + $0x268] sm:$0xff]
        %v508 = vld [vmem:[%s306 + $0x270] sm:$0xff]
        %v509 = vld [vmem:[%s306 + $0x278] sm:$0xff]
        %v510 = vld [vmem:[%s306 + $0x280] sm:$0xff]
        %v511 = vld [vmem:[%s306 + $0x288] sm:$0xff]
        %v512 = vld [vmem:[%s306 + $0x290] sm:$0xff]
        %v513 = vld [vmem:[%s306 + $0x298] sm:$0xff]
        %v514 = vld [vmem:[%s306 + $0x2a0] sm:$0xff]
        %v515 = vld [vmem:[%s306 + $0x2a8] sm:$0xff]
        %v516 = vld [vmem:[%s306 + $0x2b0] sm:$0xff]
        %v517 = vld [vmem:[%s306 + $0x2b8] sm:$0xff]
        %v518 = vld [vmem:[%s306 + $0x2c0] sm:$0xff]
        %v519 = vld [vmem:[%s306 + $0x2c8] sm:$0xff]
        %v520 = vld [vmem:[%s306 + $0x2d0] sm:$0xff]
        %v521 = vld [vmem:[%s306 + $0x2d8] sm:$0xff]
        %v522 = vld [vmem:[%s306 + $0x2e0] sm:$0xff]
        %v523 = vld [vmem:[%s306 + $0x2e8] sm:$0xff]
        %v524 = vld [vmem:[%s306 + $0x2f0] sm:$0xff]
        %v525 = vld [vmem:[%s306 + $0x2f8] sm:$0xff]
        %v526 = vld [vmem:[%s306 + $0x300] sm:$0xff]
        %v527 = vld [vmem:[%s306 + $0x308] sm:$0xff]
        %v528 = vld [vmem:[%s306 + $0x310] sm:$0xff]
        %v529 = vld [vmem:[%s306 + $0x318] sm:$0xff]
        %v530 = vld [vmem:[%s306 + $0x320] sm:$0xff]
        %v531 = vld [vmem:[%s306 + $0x328] sm:$0xff]
        %v532 = vld [vmem:[%s306 + $0x330] sm:$0xff]
        %v533 = vld [vmem:[%s306 + $0x338] sm:$0xff]
        %v534 = vld [vmem:[%s306 + $0x340] sm:$0xff]
        %v535 = vld [vmem:[%s306 + $0x348] sm:$0xff]
        %v536 = vld [vmem:[%s306 + $0x350] sm:$0xff]
        %v537 = vld [vmem:[%s306 + $0x358] sm:$0xff]
        %v538 = vld [vmem:[%s306 + $0x360] sm:$0xff]
        %v539 = vld [vmem:[%s306 + $0x368] sm:$0xff]
        %v540 = vld [vmem:[%s306 + $0x370] sm:$0xff]
        %v541 = vld [vmem:[%s306 + $0x378] sm:$0xff]
        %v542 = vld [vmem:[%s306 + $0x380] sm:$0xff]
        %v543 = vld [vmem:[%s306 + $0x388] sm:$0xff]
        %v544 = vld [vmem:[%s306 + $0x390] sm:$0xff]
        %v545 = vld [vmem:[%s306 + $0x398] sm:$0xff]
        %v546 = vld [vmem:[%s306 + $0x3a0] sm:$0xff]
        %v547 = vld [vmem:[%s306 + $0x3a8] sm:$0xff]
        %v548 = vld [vmem:[%s306 + $0x3b0] sm:$0xff]
        %v549 = vld [vmem:[%s306 + $0x3b8] sm:$0xff]
        %v550 = vld [vmem:[%s306 + $0x3c0] sm:$0xff]
        %v551 = vld [vmem:[%s306 + $0x3c8] sm:$0xff]
        %v552 = vld [vmem:[%s306 + $0x3d0] sm:$0xff]
        %v553 = vld [vmem:[%s306 + $0x3d8] sm:$0xff]
        %v554 = vld [vmem:[%s306 + $0x3e0] sm:$0xff]
        %v555 = vld [vmem:[%s306 + $0x3e8] sm:$0xff]
        %v556 = vld [vmem:[%s306 + $0x3f0] sm:$0xff]
        %v557 = vld [vmem:[%s306 + $0x3f8] sm:$0xff]
        %v558 = vld [vmem:[%s306 + $0x400] sm:$0xff]
        %v559 = vld [vmem:[%s306 + $0x408] sm:$0xff]
        %v560 = vld [vmem:[%s306 + $0x410] sm:$0xff]
        %v561 = vld [vmem:[%s306 + $0x418] sm:$0xff]
        %v562 = vld [vmem:[%s306 + $0x420] sm:$0xff]
        %v563 = vld [vmem:[%s306 + $0x428] sm:$0xff]
        %v564 = vld [vmem:[%s306 + $0x430] sm:$0xff]
        %v565 = vld [vmem:[%s306 + $0x438] sm:$0xff]
        %v566 = vld [vmem:[%s306 + $0x440] sm:$0xff]
        %v567 = vld [vmem:[%s306 + $0x448] sm:$0xff]
        %v568 = vld [vmem:[%s306 + $0x450] sm:$0xff]
        %v569 = vld [vmem:[%s306 + $0x458] sm:$0xff]
        %v570 = vld [vmem:[%s306 + $0x460] sm:$0xff]
        %v571 = vld [vmem:[%s306 + $0x468] sm:$0xff]
        %v572 = vld [vmem:[%s306 + $0x470] sm:$0xff]
        %v573 = vld [vmem:[%s306 + $0x478] sm:$0xff]
        %v574 = vld [vmem:[%s306 + $0x480] sm:$0xff]
        %v575 = vld [vmem:[%s306 + $0x488] sm:$0xff]
        %v576 = vld [vmem:[%s306 + $0x490] sm:$0xff]
        %v577 = vld [vmem:[%s306 + $0x498] sm:$0xff]
        %v578 = vld [vmem:[%s306 + $0x4a0] sm:$0xff]
        %v579 = vld [vmem:[%s306 + $0x4a8] sm:$0xff]
        %v580 = vld [vmem:[%s306 + $0x4b0] sm:$0xff]
        %v581 = vld [vmem:[%s306 + $0x4b8] sm:$0xff]
        %v582 = vld [vmem:[%s306 + $0x4c0] sm:$0xff]
        %v583 = vld [vmem:[%s306 + $0x4c8] sm:$0xff]
        %v584 = vld [vmem:[%s306 + $0x4d0] sm:$0xff]
        %v585 = vld [vmem:[%s306 + $0x4d8] sm:$0xff]
        %v586 = vld [vmem:[%s306 + $0x4e0] sm:$0xff]
        %v587 = vld [vmem:[%s306 + $0x4e8] sm:$0xff]
        %v588 = vld [vmem:[%s306 + $0x4f0] sm:$0xff]
        %v589 = vld [vmem:[%s306 + $0x4f8] sm:$0xff]
        %v590 = vld [vmem:[%s306 + $0x500] sm:$0xff]
        %v591 = vld [vmem:[%s306 + $0x508] sm:$0xff]
        %v592 = vld [vmem:[%s306 + $0x510] sm:$0xff]
        %v593 = vld [vmem:[%s306 + $0x518] sm:$0xff]
        %v594 = vld [vmem:[%s306 + $0x520] sm:$0xff]
        %v595 = vld [vmem:[%s306 + $0x528] sm:$0xff]
        %v596 = vld [vmem:[%s306 + $0x530] sm:$0xff]
        %v597 = vld [vmem:[%s306 + $0x538] sm:$0xff]
        %v598 = vld [vmem:[%s306 + $0x540] sm:$0xff]
        %v599 = vld [vmem:[%s306 + $0x548] sm:$0xff]
        %v600 = vld [vmem:[%s306 + $0x550] sm:$0xff]
        %v601 = vld [vmem:[%s306 + $0x558] sm:$0xff]
        %v602 = vld [vmem:[%s306 + $0x560] sm:$0xff]
        %v603 = vld [vmem:[%s306 + $0x568] sm:$0xff]
        %v604 = vld [vmem:[%s306 + $0x570] sm:$0xff]
        %v605 = vld [vmem:[%s306 + $0x578] sm:$0xff]
        %v606 = vld [vmem:[%s306 + $0x580] sm:$0xff]
        %v607 = vld [vmem:[%s306 + $0x588] sm:$0xff]
        %v608 = vld [vmem:[%s306 + $0x590] sm:$0xff]
        %v609 = vld [vmem:[%s306 + $0x598] sm:$0xff]
        %v610 = vld [vmem:[%s306 + $0x5a0] sm:$0xff]
        %v611 = vld [vmem:[%s306 + $0x5a8] sm:$0xff]
        %v612 = vld [vmem:[%s306 + $0x5b0] sm:$0xff]
        %v613 = vld [vmem:[%s306 + $0x5b8] sm:$0xff]
        %v614 = vld [vmem:[%s306 + $0x5c0] sm:$0xff]
        %v615 = vld [vmem:[%s306 + $0x5c8] sm:$0xff]
        %v616 = vld [vmem:[%s306 + $0x5d0] sm:$0xff]
        %v617 = vld [vmem:[%s306 + $0x5d8] sm:$0xff]
        %v618 = vld [vmem:[%s306 + $0x5e0] sm:$0xff]
        %v619 = vld [vmem:[%s306 + $0x5e8] sm:$0xff]
        %v620 = vld [vmem:[%s306 + $0x5f0] sm:$0xff]
        %v621 = vld [vmem:[%s306 + $0x5f8] sm:$0xff]
        %v622 = vld [vmem:[%s306 + $0x600] sm:$0xff]
        %v623 = vld [vmem:[%s306 + $0x608] sm:$0xff]
        %v624 = vld [vmem:[%s306 + $0x610] sm:$0xff]
        %v625 = vld [vmem:[%s306 + $0x618] sm:$0xff]
        %v626 = vld [vmem:[%s306 + $0x620] sm:$0xff]
        %v627 = vld [vmem:[%s306 + $0x628] sm:$0xff]
        %v628 = vld [vmem:[%s306 + $0x630] sm:$0xff]
        %v629 = vld [vmem:[%s306 + $0x638] sm:$0xff]
        %v630 = vld [vmem:[%s306 + $0x640] sm:$0xff]
        %v631 = vld [vmem:[%s306 + $0x648] sm:$0xff]
        %v632 = vld [vmem:[%s306 + $0x650] sm:$0xff]
        %v633 = vld [vmem:[%s306 + $0x658] sm:$0xff]
        %v634 = vld [vmem:[%s306 + $0x660] sm:$0xff]
        %v635 = vld [vmem:[%s306 + $0x668] sm:$0xff]
        %v636 = vld [vmem:[%s306 + $0x670] sm:$0xff]
        %v637 = vld [vmem:[%s306 + $0x678] sm:$0xff]
        %v638 = vld [vmem:[%s306 + $0x680] sm:$0xff]
        %v639 = vld [vmem:[%s306 + $0x688] sm:$0xff]
        %v640 = vld [vmem:[%s306 + $0x690] sm:$0xff]
        %v641 = vld [vmem:[%s306 + $0x698] sm:$0xff]
        %v642 = vld [vmem:[%s306 + $0x6a0] sm:$0xff]
        %v643 = vld [vmem:[%s306 + $0x6a8] sm:$0xff]
        %v644 = vld [vmem:[%s306 + $0x6b0] sm:$0xff]
        %v645 = vld [vmem:[%s306 + $0x6b8] sm:$0xff]
        %v646 = vld [vmem:[%s306 + $0x6c0] sm:$0xff]
        %v647 = vld [vmem:[%s306 + $0x6c8] sm:$0xff]
        %v648 = vld [vmem:[%s306 + $0x6d0] sm:$0xff]
        %v649 = vld [vmem:[%s306 + $0x6d8] sm:$0xff]
        %v650 = vld [vmem:[%s306 + $0x6e0] sm:$0xff]
        %v651 = vld [vmem:[%s306 + $0x6e8] sm:$0xff]
        %v652 = vld [vmem:[%s306 + $0x6f0] sm:$0xff]
        %v653 = vld [vmem:[%s306 + $0x6f8] sm:$0xff]
        %v654 = vld [vmem:[%s306 + $0x700] sm:$0xff]
        %v655 = vld [vmem:[%s306 + $0x708] sm:$0xff]
        %v656 = vld [vmem:[%s306 + $0x710] sm:$0xff]
        %v657 = vld [vmem:[%s306 + $0x718] sm:$0xff]
        %v658 = vld [vmem:[%s306 + $0x720] sm:$0xff]
        %v659 = vld [vmem:[%s306 + $0x728] sm:$0xff]
        %v660 = vld [vmem:[%s306 + $0x730] sm:$0xff]
        %v661 = vld [vmem:[%s306 + $0x738] sm:$0xff]
        %v662 = vld [vmem:[%s306 + $0x740] sm:$0xff]
        %v663 = vld [vmem:[%s306 + $0x748] sm:$0xff]
        %v664 = vld [vmem:[%s306 + $0x750] sm:$0xff]
        %v665 = vld [vmem:[%s306 + $0x758] sm:$0xff]
        %v666 = vld [vmem:[%s306 + $0x760] sm:$0xff]
        %v667 = vld [vmem:[%s306 + $0x768] sm:$0xff]
        %v668 = vld [vmem:[%s306 + $0x770] sm:$0xff]
        %v669 = vld [vmem:[%s306 + $0x778] sm:$0xff]
        %v670 = vld [vmem:[%s306 + $0x780] sm:$0xff]
        %v671 = vld [vmem:[%s306 + $0x788] sm:$0xff]
        %v672 = vld [vmem:[%s306 + $0x790] sm:$0xff]
        %v673 = vld [vmem:[%s306 + $0x798] sm:$0xff]
        %v674 = vld [vmem:[%s306 + $0x7a0] sm:$0xff]
        %v675 = vld [vmem:[%s306 + $0x7a8] sm:$0xff]
        %v676 = vld [vmem:[%s306 + $0x7b0] sm:$0xff]
        %v677 = vld [vmem:[%s306 + $0x7b8] sm:$0xff]
        %v678 = vld [vmem:[%s306 + $0x7c0] sm:$0xff]
        %v679 = vld [vmem:[%s306 + $0x7c8] sm:$0xff]
        %v680 = vld [vmem:[%s306 + $0x7d0] sm:$0xff]
        %v681 = vld [vmem:[%s306 + $0x7d8] sm:$0xff]
        %v682 = vld [vmem:[%s306 + $0x7e0] sm:$0xff]
        %v683 = vld [vmem:[%s306 + $0x7e8] sm:$0xff]
        %v684 = vld [vmem:[%s306 + $0x7f0] sm:$0xff]
        %v685 = vld [vmem:[%s306 + $0x7f8] sm:$0xff]
        %v686 = vld [vmem:[%s306 + $0x800] sm:$0xff]
        %v687 = vld [vmem:[%s306 + $0x808] sm:$0xff]
        %v688 = vld [vmem:[%s306 + $0x810] sm:$0xff]
        %v689 = vld [vmem:[%s306 + $0x818] sm:$0xff]
        %v690 = vld [vmem:[%s306 + $0x820] sm:$0xff]
        %v691 = vld [vmem:[%s306 + $0x828] sm:$0xff]
        %v692 = vld [vmem:[%s306 + $0x830] sm:$0xff]
        %v693 = vld [vmem:[%s306 + $0x838] sm:$0xff]
        %v694 = vld [vmem:[%s306 + $0x840] sm:$0xff]
        %v695 = vld [vmem:[%s306 + $0x848] sm:$0xff]
        %v696 = vld [vmem:[%s306 + $0x850] sm:$0xff]
        %v697 = vld [vmem:[%s306 + $0x858] sm:$0xff]
        %v698 = vld [vmem:[%s306 + $0x860] sm:$0xff]
        %v699 = vld [vmem:[%s306 + $0x868] sm:$0xff]
        %v700 = vld [vmem:[%s306 + $0x870] sm:$0xff]
        %v701 = vld [vmem:[%s306 + $0x878] sm:$0xff]
        %v702 = vld [vmem:[%s306 + $0x880] sm:$0xff]
        %v703 = vld [vmem:[%s306 + $0x888] sm:$0xff]
        %v704 = vld [vmem:[%s306 + $0x890] sm:$0xff]
        %v705 = vld [vmem:[%s306 + $0x898] sm:$0xff]
        %v706 = vld [vmem:[%s306 + $0x8a0] sm:$0xff]
        %v707 = vld [vmem:[%s306 + $0x8a8] sm:$0xff]
        %v708 = vld [vmem:[%s306 + $0x8b0] sm:$0xff]
        %v709 = vld [vmem:[%s306 + $0x8b8] sm:$0xff]
        %v710 = vld [vmem:[%s306 + $0x8c0] sm:$0xff]
        %v711 = vld [vmem:[%s306 + $0x8c8] sm:$0xff]
        %v712 = vld [vmem:[%s306 + $0x8d0] sm:$0xff]
        %v713 = vld [vmem:[%s306 + $0x8d8] sm:$0xff]
        %v714 = vld [vmem:[%s306 + $0x8e0] sm:$0xff]
        %v715 = vld [vmem:[%s306 + $0x8e8] sm:$0xff]
        %v716 = vld [vmem:[%s306 + $0x8f0] sm:$0xff]
        %v717 = vld [vmem:[%s306 + $0x8f8] sm:$0xff]
        %v718 = vld [vmem:[%s306 + $0x900] sm:$0xff]
        %v719 = vld [vmem:[%s306 + $0x908] sm:$0xff]
        %v720 = vld [vmem:[%s306 + $0x910] sm:$0xff]
        %v721 = vld [vmem:[%s306 + $0x918] sm:$0xff]
        %v722 = vld [vmem:[%s306 + $0x920] sm:$0xff]
        %v723 = vld [vmem:[%s306 + $0x928] sm:$0xff]
        %v724 = vld [vmem:[%s306 + $0x930] sm:$0xff]
        %v725 = vld [vmem:[%s306 + $0x938] sm:$0xff]
        %v726 = vld [vmem:[%s306 + $0x940] sm:$0xff]
        %v727 = vld [vmem:[%s306 + $0x948] sm:$0xff]
        %v728 = vld [vmem:[%s306 + $0x950] sm:$0xff]
        %v729 = vld [vmem:[%s306 + $0x958] sm:$0xff]
        %v730 = vld [vmem:[%s306 + $0x960] sm:$0xff]
        %v731 = vld [vmem:[%s306 + $0x968] sm:$0xff]
        %v732 = vld [vmem:[%s306 + $0x970] sm:$0xff]
        %v733 = vld [vmem:[%s306 + $0x978] sm:$0xff]
        %v734 = vld [vmem:[%s306 + $0x980] sm:$0xff]
        %v735 = vld [vmem:[%s306 + $0x988] sm:$0xff]
        %v736 = vld [vmem:[%s306 + $0x990] sm:$0xff]
        %v737 = vld [vmem:[%s306 + $0x998] sm:$0xff]
        %v738 = vld [vmem:[%s306 + $0x9a0] sm:$0xff]
        %v739 = vld [vmem:[%s306 + $0x9a8] sm:$0xff]
        %v740 = vld [vmem:[%s306 + $0x9b0] sm:$0xff]
        %v741 = vld [vmem:[%s306 + $0x9b8] sm:$0xff]
        %v742 = vld [vmem:[%s306 + $0x9c0] sm:$0xff]
        %v743 = vld [vmem:[%s306 + $0x9c8] sm:$0xff]
        %v744 = vld [vmem:[%s306 + $0x9d0] sm:$0xff]
        %v745 = vld [vmem:[%s306 + $0x9d8] sm:$0xff]
        %v746 = vld [vmem:[%s306 + $0x9e0] sm:$0xff]
        %v747 = vld [vmem:[%s306 + $0x9e8] sm:$0xff]
        %v748 = vld [vmem:[%s306 + $0x9f0] sm:$0xff]
        %v749 = vld [vmem:[%s306 + $0x9f8] sm:$0xff]
        %v760 = vunpack.c.l.b16 %v420
        %v761 = vunpack.c.h.b16 %v420
        %v762 = vunpack.c.l.b16 %v421
        %v763 = vunpack.c.h.b16 %v421
        %v764 = vunpack.c.l.b16 %v422
        %v765 = vunpack.c.h.b16 %v422
        %v766 = vunpack.c.l.b16 %v423
        %v767 = vunpack.c.h.b16 %v423
        %v768 = vunpack.c.l.b16 %v424
        %v769 = vunpack.c.h.b16 %v424
        %v770 = vunpack.c.l.b16 %v425
        %v771 = vunpack.c.h.b16 %v425
        %v772 = vunpack.c.l.b16 %v426
        %v773 = vunpack.c.h.b16 %v426
        %v774 = vunpack.c.l.b16 %v427
        %v775 = vunpack.c.h.b16 %v427
        %v776 = vunpack.c.l.b16 %v428
        %v777 = vunpack.c.h.b16 %v428
        %v778 = vunpack.c.l.b16 %v429
        %v779 = vunpack.c.h.b16 %v429
        %v780 = vpack.c.b16 %v770, %v760
        %v781 = vpack.c.b16 %v771, %v761
        %v782 = vpack.c.b16 %v772, %v762
        %v783 = vpack.c.b16 %v773, %v763
        %v784 = vpack.c.b16 %v774, %v764
        %v785 = vpack.c.b16 %v775, %v765
        %v786 = vpack.c.b16 %v776, %v766
        %v787 = vpack.c.b16 %v777, %v767
        %v788 = vpack.c.b16 %v778, %v768
        %v789 = vpack.c.b16 %v779, %v769
        %v1120 = vunpack.c.l.b16 %v430
        %v1121 = vunpack.c.h.b16 %v430
        %v1122 = vunpack.c.l.b16 %v431
        %v1123 = vunpack.c.h.b16 %v431
        %v1124 = vunpack.c.l.b16 %v432
        %v1125 = vunpack.c.h.b16 %v432
        %v1126 = vunpack.c.l.b16 %v433
        %v1127 = vunpack.c.h.b16 %v433
        %v1128 = vunpack.c.l.b16 %v434
        %v1129 = vunpack.c.h.b16 %v434
        %v1130 = vunpack.c.l.b16 %v435
        %v1131 = vunpack.c.h.b16 %v435
        %v1132 = vunpack.c.l.b16 %v436
        %v1133 = vunpack.c.h.b16 %v436
        %v1134 = vunpack.c.l.b16 %v437
        %v1135 = vunpack.c.h.b16 %v437
        %v1136 = vunpack.c.l.b16 %v438
        %v1137 = vunpack.c.h.b16 %v438
        %v1138 = vunpack.c.l.b16 %v439
        %v1139 = vunpack.c.h.b16 %v439
        %v1140 = vunpack.c.l.b16 %v440
        %v1141 = vunpack.c.h.b16 %v440
        %v1142 = vunpack.c.l.b16 %v441
        %v1143 = vunpack.c.h.b16 %v441
        %v1144 = vunpack.c.l.b16 %v442
        %v1145 = vunpack.c.h.b16 %v442
        %v1146 = vunpack.c.l.b16 %v443
        %v1147 = vunpack.c.h.b16 %v443
        %v1148 = vunpack.c.l.b16 %v444
        %v1149 = vunpack.c.h.b16 %v444
        %v1150 = vunpack.c.l.b16 %v445
        %v1151 = vunpack.c.h.b16 %v445
        %v1152 = vunpack.c.l.b16 %v446
        %v1153 = vunpack.c.h.b16 %v446
        %v1154 = vunpack.c.l.b16 %v447
        %v1155 = vunpack.c.h.b16 %v447
        %v1156 = vunpack.c.l.b16 %v448
        %v1157 = vunpack.c.h.b16 %v448
        %v1158 = vunpack.c.l.b16 %v449
        %v1159 = vunpack.c.h.b16 %v449
        %v1160 = vunpack.c.l.b16 %v450
        %v1161 = vunpack.c.h.b16 %v450
        %v1162 = vunpack.c.l.b16 %v451
        %v1163 = vunpack.c.h.b16 %v451
        %v1164 = vunpack.c.l.b16 %v452
        %v1165 = vunpack.c.h.b16 %v452
        %v1166 = vunpack.c.l.b16 %v453
        %v1167 = vunpack.c.h.b16 %v453
        %v1168 = vunpack.c.l.b16 %v454
        %v1169 = vunpack.c.h.b16 %v454
        %v1170 = vunpack.c.l.b16 %v455
        %v1171 = vunpack.c.h.b16 %v455
        %v1172 = vunpack.c.l.b16 %v456
        %v1173 = vunpack.c.h.b16 %v456
        %v1174 = vunpack.c.l.b16 %v457
        %v1175 = vunpack.c.h.b16 %v457
        %v1176 = vunpack.c.l.b16 %v458
        %v1177 = vunpack.c.h.b16 %v458
        %v1178 = vunpack.c.l.b16 %v459
        %v1179 = vunpack.c.h.b16 %v459
        %v1180 = vunpack.c.l.b16 %v460
        %v1181 = vunpack.c.h.b16 %v460
        %v1182 = vunpack.c.l.b16 %v461
        %v1183 = vunpack.c.h.b16 %v461
        %v1184 = vunpack.c.l.b16 %v462
        %v1185 = vunpack.c.h.b16 %v462
        %v1186 = vunpack.c.l.b16 %v463
        %v1187 = vunpack.c.h.b16 %v463
        %v1188 = vunpack.c.l.b16 %v464
        %v1189 = vunpack.c.h.b16 %v464
        %v1190 = vunpack.c.l.b16 %v465
        %v1191 = vunpack.c.h.b16 %v465
        %v1192 = vunpack.c.l.b16 %v466
        %v1193 = vunpack.c.h.b16 %v466
        %v1194 = vunpack.c.l.b16 %v467
        %v1195 = vunpack.c.h.b16 %v467
        %v1196 = vunpack.c.l.b16 %v468
        %v1197 = vunpack.c.h.b16 %v468
        %v1198 = vunpack.c.l.b16 %v469
        %v1199 = vunpack.c.h.b16 %v469
        %v1200 = vunpack.c.l.b16 %v470
        %v1201 = vunpack.c.h.b16 %v470
        %v1202 = vunpack.c.l.b16 %v471
        %v1203 = vunpack.c.h.b16 %v471
        %v1204 = vunpack.c.l.b16 %v472
        %v1205 = vunpack.c.h.b16 %v472
        %v1206 = vunpack.c.l.b16 %v473
        %v1207 = vunpack.c.h.b16 %v473
        %v1208 = vunpack.c.l.b16 %v474
        %v1209 = vunpack.c.h.b16 %v474
        %v1210 = vunpack.c.l.b16 %v475
        %v1211 = vunpack.c.h.b16 %v475
        %v1212 = vunpack.c.l.b16 %v476
        %v1213 = vunpack.c.h.b16 %v476
        %v1214 = vunpack.c.l.b16 %v477
        %v1215 = vunpack.c.h.b16 %v477
        %v1216 = vunpack.c.l.b16 %v478
        %v1217 = vunpack.c.h.b16 %v478
        %v1218 = vunpack.c.l.b16 %v479
        %v1219 = vunpack.c.h.b16 %v479
        %v1220 = vunpack.c.l.b16 %v480
        %v1221 = vunpack.c.h.b16 %v480
        %v1222 = vunpack.c.l.b16 %v481
        %v1223 = vunpack.c.h.b16 %v481
        %v1224 = vunpack.c.l.b16 %v482
        %v1225 = vunpack.c.h.b16 %v482
        %v1226 = vunpack.c.l.b16 %v483
        %v1227 = vunpack.c.h.b16 %v483
        %v1228 = vunpack.c.l.b16 %v484
        %v1229 = vunpack.c.h.b16 %v484
        %v1230 = vunpack.c.l.b16 %v485
        %v1231 = vunpack.c.h.b16 %v485
        %v1232 = vunpack.c.l.b16 %v486
        %v1233 = vunpack.c.h.b16 %v486
        %v1234 = vunpack.c.l.b16 %v487
        %v1235 = vunpack.c.h.b16 %v487
        %v1236 = vunpack.c.l.b16 %v488
        %v1237 = vunpack.c.h.b16 %v488
        %v1238 = vunpack.c.l.b16 %v489
        %v1239 = vunpack.c.h.b16 %v489
        %v1240 = vunpack.c.l.b16 %v490
        %v1241 = vunpack.c.h.b16 %v490
        %v1242 = vunpack.c.l.b16 %v491
        %v1243 = vunpack.c.h.b16 %v491
        %v1244 = vunpack.c.l.b16 %v492
        %v1245 = vunpack.c.h.b16 %v492
        %v1246 = vunpack.c.l.b16 %v493
        %v1247 = vunpack.c.h.b16 %v493
        %v1248 = vunpack.c.l.b16 %v494
        %v1249 = vunpack.c.h.b16 %v494
        %v1250 = vunpack.c.l.b16 %v495
        %v1251 = vunpack.c.h.b16 %v495
        %v1252 = vunpack.c.l.b16 %v496
        %v1253 = vunpack.c.h.b16 %v496
        %v1254 = vunpack.c.l.b16 %v497
        %v1255 = vunpack.c.h.b16 %v497
        %v1256 = vunpack.c.l.b16 %v498
        %v1257 = vunpack.c.h.b16 %v498
        %v1258 = vunpack.c.l.b16 %v499
        %v1259 = vunpack.c.h.b16 %v499
        %v1260 = vunpack.c.l.b16 %v500
        %v1261 = vunpack.c.h.b16 %v500
        %v1262 = vunpack.c.l.b16 %v501
        %v1263 = vunpack.c.h.b16 %v501
        %v1264 = vunpack.c.l.b16 %v502
        %v1265 = vunpack.c.h.b16 %v502
        %v1266 = vunpack.c.l.b16 %v503
        %v1267 = vunpack.c.h.b16 %v503
        %v1268 = vunpack.c.l.b16 %v504
        %v1269 = vunpack.c.h.b16 %v504
        %v1270 = vunpack.c.l.b16 %v505
        %v1271 = vunpack.c.h.b16 %v505
        %v1272 = vunpack.c.l.b16 %v506
        %v1273 = vunpack.c.h.b16 %v506
        %v1274 = vunpack.c.l.b16 %v507
        %v1275 = vunpack.c.h.b16 %v507
        %v1276 = vunpack.c.l.b16 %v508
        %v1277 = vunpack.c.h.b16 %v508
        %v1278 = vunpack.c.l.b16 %v509
        %v1279 = vunpack.c.h.b16 %v509
        %v1280 = vunpack.c.l.b16 %v510
        %v1281 = vunpack.c.h.b16 %v510
        %v1282 = vunpack.c.l.b16 %v511
        %v1283 = vunpack.c.h.b16 %v511
        %v1284 = vunpack.c.l.b16 %v512
        %v1285 = vunpack.c.h.b16 %v512
        %v1286 = vunpack.c.l.b16 %v513
        %v1287 = vunpack.c.h.b16 %v513
        %v1288 = vunpack.c.l.b16 %v514
        %v1289 = vunpack.c.h.b16 %v514
        %v1290 = vunpack.c.l.b16 %v515
        %v1291 = vunpack.c.h.b16 %v515
        %v1292 = vunpack.c.l.b16 %v516
        %v1293 = vunpack.c.h.b16 %v516
        %v1294 = vunpack.c.l.b16 %v517
        %v1295 = vunpack.c.h.b16 %v517
        %v1296 = vunpack.c.l.b16 %v518
        %v1297 = vunpack.c.h.b16 %v518
        %v1298 = vunpack.c.l.b16 %v519
        %v1299 = vunpack.c.h.b16 %v519
        %v1300 = vunpack.c.l.b16 %v520
        %v1301 = vunpack.c.h.b16 %v520
        %v1302 = vunpack.c.l.b16 %v521
        %v1303 = vunpack.c.h.b16 %v521
        %v1304 = vunpack.c.l.b16 %v522
        %v1305 = vunpack.c.h.b16 %v522
        %v1306 = vunpack.c.l.b16 %v523
        %v1307 = vunpack.c.h.b16 %v523
        %v1308 = vunpack.c.l.b16 %v524
        %v1309 = vunpack.c.h.b16 %v524
        %v1310 = vunpack.c.l.b16 %v525
        %v1311 = vunpack.c.h.b16 %v525
        %v1312 = vunpack.c.l.b16 %v526
        %v1313 = vunpack.c.h.b16 %v526
        %v1314 = vunpack.c.l.b16 %v527
        %v1315 = vunpack.c.h.b16 %v527
        %v1316 = vunpack.c.l.b16 %v528
        %v1317 = vunpack.c.h.b16 %v528
        %v1318 = vunpack.c.l.b16 %v529
        %v1319 = vunpack.c.h.b16 %v529
        %v1320 = vunpack.c.l.b16 %v530
        %v1321 = vunpack.c.h.b16 %v530
        %v1322 = vunpack.c.l.b16 %v531
        %v1323 = vunpack.c.h.b16 %v531
        %v1324 = vunpack.c.l.b16 %v532
        %v1325 = vunpack.c.h.b16 %v532
        %v1326 = vunpack.c.l.b16 %v533
        %v1327 = vunpack.c.h.b16 %v533
        %v1328 = vunpack.c.l.b16 %v534
        %v1329 = vunpack.c.h.b16 %v534
        %v1330 = vunpack.c.l.b16 %v535
        %v1331 = vunpack.c.h.b16 %v535
        %v1332 = vunpack.c.l.b16 %v536
        %v1333 = vunpack.c.h.b16 %v536
        %v1334 = vunpack.c.l.b16 %v537
        %v1335 = vunpack.c.h.b16 %v537
        %v1336 = vunpack.c.l.b16 %v538
        %v1337 = vunpack.c.h.b16 %v538
        %v1338 = vunpack.c.l.b16 %v539
        %v1339 = vunpack.c.h.b16 %v539
        %v1340 = vunpack.c.l.b16 %v540
        %v1341 = vunpack.c.h.b16 %v540
        %v1342 = vunpack.c.l.b16 %v541
        %v1343 = vunpack.c.h.b16 %v541
        %v1344 = vunpack.c.l.b16 %v542
        %v1345 = vunpack.c.h.b16 %v542
        %v1346 = vunpack.c.l.b16 %v543
        %v1347 = vunpack.c.h.b16 %v543
        %v1348 = vunpack.c.l.b16 %v544
        %v1349 = vunpack.c.h.b16 %v544
        %v1350 = vunpack.c.l.b16 %v545
        %v1351 = vunpack.c.h.b16 %v545
        %v1352 = vunpack.c.l.b16 %v546
        %v1353 = vunpack.c.h.b16 %v546
        %v1354 = vunpack.c.l.b16 %v547
        %v1355 = vunpack.c.h.b16 %v547
        %v1356 = vunpack.c.l.b16 %v548
        %v1357 = vunpack.c.h.b16 %v548
        %v1358 = vunpack.c.l.b16 %v549
        %v1359 = vunpack.c.h.b16 %v549
        %v1360 = vunpack.c.l.b16 %v550
        %v1361 = vunpack.c.h.b16 %v550
        %v1362 = vunpack.c.l.b16 %v551
        %v1363 = vunpack.c.h.b16 %v551
        %v1364 = vunpack.c.l.b16 %v552
        %v1365 = vunpack.c.h.b16 %v552
        %v1366 = vunpack.c.l.b16 %v553
        %v1367 = vunpack.c.h.b16 %v553
        %v1368 = vunpack.c.l.b16 %v554
        %v1369 = vunpack.c.h.b16 %v554
        %v1370 = vunpack.c.l.b16 %v555
        %v1371 = vunpack.c.h.b16 %v555
        %v1372 = vunpack.c.l.b16 %v556
        %v1373 = vunpack.c.h.b16 %v556
        %v1374 = vunpack.c.l.b16 %v557
        %v1375 = vunpack.c.h.b16 %v557
        %v1376 = vunpack.c.l.b16 %v558
        %v1377 = vunpack.c.h.b16 %v558
        %v1378 = vunpack.c.l.b16 %v559
        %v1379 = vunpack.c.h.b16 %v559
        %v1380 = vunpack.c.l.b16 %v560
        %v1381 = vunpack.c.h.b16 %v560
        %v1382 = vunpack.c.l.b16 %v561
        %v1383 = vunpack.c.h.b16 %v561
        %v1384 = vunpack.c.l.b16 %v562
        %v1385 = vunpack.c.h.b16 %v562
        %v1386 = vunpack.c.l.b16 %v563
        %v1387 = vunpack.c.h.b16 %v563
        %v1388 = vunpack.c.l.b16 %v564
        %v1389 = vunpack.c.h.b16 %v564
        %v1390 = vunpack.c.l.b16 %v565
        %v1391 = vunpack.c.h.b16 %v565
        %v1392 = vunpack.c.l.b16 %v566
        %v1393 = vunpack.c.h.b16 %v566
        %v1394 = vunpack.c.l.b16 %v567
        %v1395 = vunpack.c.h.b16 %v567
        %v1396 = vunpack.c.l.b16 %v568
        %v1397 = vunpack.c.h.b16 %v568
        %v1398 = vunpack.c.l.b16 %v569
        %v1399 = vunpack.c.h.b16 %v569
        %v1400 = vunpack.c.l.b16 %v570
        %v1401 = vunpack.c.h.b16 %v570
        %v1402 = vunpack.c.l.b16 %v571
        %v1403 = vunpack.c.h.b16 %v571
        %v1404 = vunpack.c.l.b16 %v572
        %v1405 = vunpack.c.h.b16 %v572
        %v1406 = vunpack.c.l.b16 %v573
        %v1407 = vunpack.c.h.b16 %v573
        %v1408 = vunpack.c.l.b16 %v574
        %v1409 = vunpack.c.h.b16 %v574
        %v1410 = vunpack.c.l.b16 %v575
        %v1411 = vunpack.c.h.b16 %v575
        %v1412 = vunpack.c.l.b16 %v576
        %v1413 = vunpack.c.h.b16 %v576
        %v1414 = vunpack.c.l.b16 %v577
        %v1415 = vunpack.c.h.b16 %v577
        %v1416 = vunpack.c.l.b16 %v578
        %v1417 = vunpack.c.h.b16 %v578
        %v1418 = vunpack.c.l.b16 %v579
        %v1419 = vunpack.c.h.b16 %v579
        %v1420 = vunpack.c.l.b16 %v580
        %v1421 = vunpack.c.h.b16 %v580
        %v1422 = vunpack.c.l.b16 %v581
        %v1423 = vunpack.c.h.b16 %v581
        %v1424 = vunpack.c.l.b16 %v582
        %v1425 = vunpack.c.h.b16 %v582
        %v1426 = vunpack.c.l.b16 %v583
        %v1427 = vunpack.c.h.b16 %v583
        %v1428 = vunpack.c.l.b16 %v584
        %v1429 = vunpack.c.h.b16 %v584
        %v1430 = vunpack.c.l.b16 %v585
        %v1431 = vunpack.c.h.b16 %v585
        %v1432 = vunpack.c.l.b16 %v586
        %v1433 = vunpack.c.h.b16 %v586
        %v1434 = vunpack.c.l.b16 %v587
        %v1435 = vunpack.c.h.b16 %v587
        %v1436 = vunpack.c.l.b16 %v588
        %v1437 = vunpack.c.h.b16 %v588
        %v1438 = vunpack.c.l.b16 %v589
        %v1439 = vunpack.c.h.b16 %v589
        %v1440 = vunpack.c.l.b16 %v590
        %v1441 = vunpack.c.h.b16 %v590
        %v1442 = vunpack.c.l.b16 %v591
        %v1443 = vunpack.c.h.b16 %v591
        %v1444 = vunpack.c.l.b16 %v592
        %v1445 = vunpack.c.h.b16 %v592
        %v1446 = vunpack.c.l.b16 %v593
        %v1447 = vunpack.c.h.b16 %v593
        %v1448 = vunpack.c.l.b16 %v594
        %v1449 = vunpack.c.h.b16 %v594
        %v1450 = vunpack.c.l.b16 %v595
        %v1451 = vunpack.c.h.b16 %v595
        %v1452 = vunpack.c.l.b16 %v596
        %v1453 = vunpack.c.h.b16 %v596
        %v1454 = vunpack.c.l.b16 %v597
        %v1455 = vunpack.c.h.b16 %v597
        %v1456 = vunpack.c.l.b16 %v598
        %v1457 = vunpack.c.h.b16 %v598
        %v1458 = vunpack.c.l.b16 %v599
        %v1459 = vunpack.c.h.b16 %v599
        %v1460 = vunpack.c.l.b16 %v600
        %v1461 = vunpack.c.h.b16 %v600
        %v1462 = vunpack.c.l.b16 %v601
        %v1463 = vunpack.c.h.b16 %v601
        %v1464 = vunpack.c.l.b16 %v602
        %v1465 = vunpack.c.h.b16 %v602
        %v1466 = vunpack.c.l.b16 %v603
        %v1467 = vunpack.c.h.b16 %v603
        %v1468 = vunpack.c.l.b16 %v604
        %v1469 = vunpack.c.h.b16 %v604
        %v1470 = vunpack.c.l.b16 %v605
        %v1471 = vunpack.c.h.b16 %v605
        %v1472 = vunpack.c.l.b16 %v606
        %v1473 = vunpack.c.h.b16 %v606
        %v1474 = vunpack.c.l.b16 %v607
        %v1475 = vunpack.c.h.b16 %v607
        %v1476 = vunpack.c.l.b16 %v608
        %v1477 = vunpack.c.h.b16 %v608
        %v1478 = vunpack.c.l.b16 %v609
        %v1479 = vunpack.c.h.b16 %v609
        %v1480 = vunpack.c.l.b16 %v610
        %v1481 = vunpack.c.h.b16 %v610
        %v1482 = vunpack.c.l.b16 %v611
        %v1483 = vunpack.c.h.b16 %v611
        %v1484 = vunpack.c.l.b16 %v612
        %v1485 = vunpack.c.h.b16 %v612
        %v1486 = vunpack.c.l.b16 %v613
        %v1487 = vunpack.c.h.b16 %v613
        %v1488 = vunpack.c.l.b16 %v614
        %v1489 = vunpack.c.h.b16 %v614
        %v1490 = vunpack.c.l.b16 %v615
        %v1491 = vunpack.c.h.b16 %v615
        %v1492 = vunpack.c.l.b16 %v616
        %v1493 = vunpack.c.h.b16 %v616
        %v1494 = vunpack.c.l.b16 %v617
        %v1495 = vunpack.c.h.b16 %v617
        %v1496 = vunpack.c.l.b16 %v618
        %v1497 = vunpack.c.h.b16 %v618
        %v1498 = vunpack.c.l.b16 %v619
        %v1499 = vunpack.c.h.b16 %v619
        %v1500 = vunpack.c.l.b16 %v620
        %v1501 = vunpack.c.h.b16 %v620
        %v1502 = vunpack.c.l.b16 %v621
        %v1503 = vunpack.c.h.b16 %v621
        %v1504 = vunpack.c.l.b16 %v622
        %v1505 = vunpack.c.h.b16 %v622
        %v1506 = vunpack.c.l.b16 %v623
        %v1507 = vunpack.c.h.b16 %v623
        %v1508 = vunpack.c.l.b16 %v624
        %v1509 = vunpack.c.h.b16 %v624
        %v1510 = vunpack.c.l.b16 %v625
        %v1511 = vunpack.c.h.b16 %v625
        %v1512 = vunpack.c.l.b16 %v626
        %v1513 = vunpack.c.h.b16 %v626
        %v1514 = vunpack.c.l.b16 %v627
        %v1515 = vunpack.c.h.b16 %v627
        %v1516 = vunpack.c.l.b16 %v628
        %v1517 = vunpack.c.h.b16 %v628
        %v1518 = vunpack.c.l.b16 %v629
        %v1519 = vunpack.c.h.b16 %v629
        %v1520 = vunpack.c.l.b16 %v630
        %v1521 = vunpack.c.h.b16 %v630
        %v1522 = vunpack.c.l.b16 %v631
        %v1523 = vunpack.c.h.b16 %v631
        %v1524 = vunpack.c.l.b16 %v632
        %v1525 = vunpack.c.h.b16 %v632
        %v1526 = vunpack.c.l.b16 %v633
        %v1527 = vunpack.c.h.b16 %v633
        %v1528 = vunpack.c.l.b16 %v634
        %v1529 = vunpack.c.h.b16 %v634
        %v1530 = vunpack.c.l.b16 %v635
        %v1531 = vunpack.c.h.b16 %v635
        %v1532 = vunpack.c.l.b16 %v636
        %v1533 = vunpack.c.h.b16 %v636
        %v1534 = vunpack.c.l.b16 %v637
        %v1535 = vunpack.c.h.b16 %v637
        %v1536 = vunpack.c.l.b16 %v638
        %v1537 = vunpack.c.h.b16 %v638
        %v1538 = vunpack.c.l.b16 %v639
        %v1539 = vunpack.c.h.b16 %v639
        %v1540 = vunpack.c.l.b16 %v640
        %v1541 = vunpack.c.h.b16 %v640
        %v1542 = vunpack.c.l.b16 %v641
        %v1543 = vunpack.c.h.b16 %v641
        %v1544 = vunpack.c.l.b16 %v642
        %v1545 = vunpack.c.h.b16 %v642
        %v1546 = vunpack.c.l.b16 %v643
        %v1547 = vunpack.c.h.b16 %v643
        %v1548 = vunpack.c.l.b16 %v644
        %v1549 = vunpack.c.h.b16 %v644
        %v1550 = vunpack.c.l.b16 %v645
        %v1551 = vunpack.c.h.b16 %v645
        %v1552 = vunpack.c.l.b16 %v646
        %v1553 = vunpack.c.h.b16 %v646
        %v1554 = vunpack.c.l.b16 %v647
        %v1555 = vunpack.c.h.b16 %v647
        %v1556 = vunpack.c.l.b16 %v648
        %v1557 = vunpack.c.h.b16 %v648
        %v1558 = vunpack.c.l.b16 %v649
        %v1559 = vunpack.c.h.b16 %v649
        %v1560 = vunpack.c.l.b16 %v650
        %v1561 = vunpack.c.h.b16 %v650
        %v1562 = vunpack.c.l.b16 %v651
        %v1563 = vunpack.c.h.b16 %v651
        %v1564 = vunpack.c.l.b16 %v652
        %v1565 = vunpack.c.h.b16 %v652
        %v1566 = vunpack.c.l.b16 %v653
        %v1567 = vunpack.c.h.b16 %v653
        %v1568 = vunpack.c.l.b16 %v654
        %v1569 = vunpack.c.h.b16 %v654
        %v1570 = vunpack.c.l.b16 %v655
        %v1571 = vunpack.c.h.b16 %v655
        %v1572 = vunpack.c.l.b16 %v656
        %v1573 = vunpack.c.h.b16 %v656
        %v1574 = vunpack.c.l.b16 %v657
        %v1575 = vunpack.c.h.b16 %v657
        %v1576 = vunpack.c.l.b16 %v658
        %v1577 = vunpack.c.h.b16 %v658
        %v1578 = vunpack.c.l.b16 %v659
        %v1579 = vunpack.c.h.b16 %v659
        %v1580 = vunpack.c.l.b16 %v660
        %v1581 = vunpack.c.h.b16 %v660
        %v1582 = vunpack.c.l.b16 %v661
        %v1583 = vunpack.c.h.b16 %v661
        %v1584 = vunpack.c.l.b16 %v662
        %v1585 = vunpack.c.h.b16 %v662
        %v1586 = vunpack.c.l.b16 %v663
        %v1587 = vunpack.c.h.b16 %v663
        %v1588 = vunpack.c.l.b16 %v664
        %v1589 = vunpack.c.h.b16 %v664
        %v1590 = vunpack.c.l.b16 %v665
        %v1591 = vunpack.c.h.b16 %v665
        %v1592 = vunpack.c.l.b16 %v666
        %v1593 = vunpack.c.h.b16 %v666
        %v1594 = vunpack.c.l.b16 %v667
        %v1595 = vunpack.c.h.b16 %v667
        %v1596 = vunpack.c.l.b16 %v668
        %v1597 = vunpack.c.h.b16 %v668
        %v1598 = vunpack.c.l.b16 %v669
        %v1599 = vunpack.c.h.b16 %v669
        %v1600 = vunpack.c.l.b16 %v670
        %v1601 = vunpack.c.h.b16 %v670
        %v1602 = vunpack.c.l.b16 %v671
        %v1603 = vunpack.c.h.b16 %v671
        %v1604 = vunpack.c.l.b16 %v672
        %v1605 = vunpack.c.h.b16 %v672
        %v1606 = vunpack.c.l.b16 %v673
        %v1607 = vunpack.c.h.b16 %v673
        %v1608 = vunpack.c.l.b16 %v674
        %v1609 = vunpack.c.h.b16 %v674
        %v1610 = vunpack.c.l.b16 %v675
        %v1611 = vunpack.c.h.b16 %v675
        %v1612 = vunpack.c.l.b16 %v676
        %v1613 = vunpack.c.h.b16 %v676
        %v1614 = vunpack.c.l.b16 %v677
        %v1615 = vunpack.c.h.b16 %v677
        %v1616 = vunpack.c.l.b16 %v678
        %v1617 = vunpack.c.h.b16 %v678
        %v1618 = vunpack.c.l.b16 %v679
        %v1619 = vunpack.c.h.b16 %v679
        %v1620 = vunpack.c.l.b16 %v680
        %v1621 = vunpack.c.h.b16 %v680
        %v1622 = vunpack.c.l.b16 %v681
        %v1623 = vunpack.c.h.b16 %v681
        %v1624 = vunpack.c.l.b16 %v682
        %v1625 = vunpack.c.h.b16 %v682
        %v1626 = vunpack.c.l.b16 %v683
        %v1627 = vunpack.c.h.b16 %v683
        %v1628 = vunpack.c.l.b16 %v684
        %v1629 = vunpack.c.h.b16 %v684
        %v1630 = vunpack.c.l.b16 %v685
        %v1631 = vunpack.c.h.b16 %v685
        %v1632 = vunpack.c.l.b16 %v686
        %v1633 = vunpack.c.h.b16 %v686
        %v1634 = vunpack.c.l.b16 %v687
        %v1635 = vunpack.c.h.b16 %v687
        %v1636 = vunpack.c.l.b16 %v688
        %v1637 = vunpack.c.h.b16 %v688
        %v1638 = vunpack.c.l.b16 %v689
        %v1639 = vunpack.c.h.b16 %v689
        %v1640 = vunpack.c.l.b16 %v690
        %v1641 = vunpack.c.h.b16 %v690
        %v1642 = vunpack.c.l.b16 %v691
        %v1643 = vunpack.c.h.b16 %v691
        %v1644 = vunpack.c.l.b16 %v692
        %v1645 = vunpack.c.h.b16 %v692
        %v1646 = vunpack.c.l.b16 %v693
        %v1647 = vunpack.c.h.b16 %v693
        %v1648 = vunpack.c.l.b16 %v694
        %v1649 = vunpack.c.h.b16 %v694
        %v1650 = vunpack.c.l.b16 %v695
        %v1651 = vunpack.c.h.b16 %v695
        %v1652 = vunpack.c.l.b16 %v696
        %v1653 = vunpack.c.h.b16 %v696
        %v1654 = vunpack.c.l.b16 %v697
        %v1655 = vunpack.c.h.b16 %v697
        %v1656 = vunpack.c.l.b16 %v698
        %v1657 = vunpack.c.h.b16 %v698
        %v1658 = vunpack.c.l.b16 %v699
        %v1659 = vunpack.c.h.b16 %v699
        %v1660 = vunpack.c.l.b16 %v700
        %v1661 = vunpack.c.h.b16 %v700
        %v1662 = vunpack.c.l.b16 %v701
        %v1663 = vunpack.c.h.b16 %v701
        %v1664 = vunpack.c.l.b16 %v702
        %v1665 = vunpack.c.h.b16 %v702
        %v1666 = vunpack.c.l.b16 %v703
        %v1667 = vunpack.c.h.b16 %v703
        %v1668 = vunpack.c.l.b16 %v704
        %v1669 = vunpack.c.h.b16 %v704
        %v1670 = vunpack.c.l.b16 %v705
        %v1671 = vunpack.c.h.b16 %v705
        %v1672 = vunpack.c.l.b16 %v706
        %v1673 = vunpack.c.h.b16 %v706
        %v1674 = vunpack.c.l.b16 %v707
        %v1675 = vunpack.c.h.b16 %v707
        %v1676 = vunpack.c.l.b16 %v708
        %v1677 = vunpack.c.h.b16 %v708
        %v1678 = vunpack.c.l.b16 %v709
        %v1679 = vunpack.c.h.b16 %v709
        %v1680 = vunpack.c.l.b16 %v710
        %v1681 = vunpack.c.h.b16 %v710
        %v1682 = vunpack.c.l.b16 %v711
        %v1683 = vunpack.c.h.b16 %v711
        %v1684 = vunpack.c.l.b16 %v712
        %v1685 = vunpack.c.h.b16 %v712
        %v1686 = vunpack.c.l.b16 %v713
        %v1687 = vunpack.c.h.b16 %v713
        %v1688 = vunpack.c.l.b16 %v714
        %v1689 = vunpack.c.h.b16 %v714
        %v1690 = vunpack.c.l.b16 %v715
        %v1691 = vunpack.c.h.b16 %v715
        %v1692 = vunpack.c.l.b16 %v716
        %v1693 = vunpack.c.h.b16 %v716
        %v1694 = vunpack.c.l.b16 %v717
        %v1695 = vunpack.c.h.b16 %v717
        %v1696 = vunpack.c.l.b16 %v718
        %v1697 = vunpack.c.h.b16 %v718
        %v1698 = vunpack.c.l.b16 %v719
        %v1699 = vunpack.c.h.b16 %v719
        %v1700 = vunpack.c.l.b16 %v720
        %v1701 = vunpack.c.h.b16 %v720
        %v1702 = vunpack.c.l.b16 %v721
        %v1703 = vunpack.c.h.b16 %v721
        %v1704 = vunpack.c.l.b16 %v722
        %v1705 = vunpack.c.h.b16 %v722
        %v1706 = vunpack.c.l.b16 %v723
        %v1707 = vunpack.c.h.b16 %v723
        %v1708 = vunpack.c.l.b16 %v724
        %v1709 = vunpack.c.h.b16 %v724
        %v1710 = vunpack.c.l.b16 %v725
        %v1711 = vunpack.c.h.b16 %v725
        %v1712 = vunpack.c.l.b16 %v726
        %v1713 = vunpack.c.h.b16 %v726
        %v1714 = vunpack.c.l.b16 %v727
        %v1715 = vunpack.c.h.b16 %v727
        %v1716 = vunpack.c.l.b16 %v728
        %v1717 = vunpack.c.h.b16 %v728
        %v1718 = vunpack.c.l.b16 %v729
        %v1719 = vunpack.c.h.b16 %v729
        %v1720 = vunpack.c.l.b16 %v730
        %v1721 = vunpack.c.h.b16 %v730
        %v1722 = vunpack.c.l.b16 %v731
        %v1723 = vunpack.c.h.b16 %v731
        %v1724 = vunpack.c.l.b16 %v732
        %v1725 = vunpack.c.h.b16 %v732
        %v1726 = vunpack.c.l.b16 %v733
        %v1727 = vunpack.c.h.b16 %v733
        %v1728 = vunpack.c.l.b16 %v734
        %v1729 = vunpack.c.h.b16 %v734
        %v1730 = vunpack.c.l.b16 %v735
        %v1731 = vunpack.c.h.b16 %v735
        %v1732 = vunpack.c.l.b16 %v736
        %v1733 = vunpack.c.h.b16 %v736
        %v1734 = vunpack.c.l.b16 %v737
        %v1735 = vunpack.c.h.b16 %v737
        %v1736 = vunpack.c.l.b16 %v738
        %v1737 = vunpack.c.h.b16 %v738
        %v1738 = vunpack.c.l.b16 %v739
        %v1739 = vunpack.c.h.b16 %v739
        %v1740 = vunpack.c.l.b16 %v740
        %v1741 = vunpack.c.h.b16 %v740
        %v1742 = vunpack.c.l.b16 %v741
        %v1743 = vunpack.c.h.b16 %v741
        %v1744 = vunpack.c.l.b16 %v742
        %v1745 = vunpack.c.h.b16 %v742
        %v1746 = vunpack.c.l.b16 %v743
        %v1747 = vunpack.c.h.b16 %v743
        %v1748 = vunpack.c.l.b16 %v744
        %v1749 = vunpack.c.h.b16 %v744
        %v1750 = vunpack.c.l.b16 %v745
        %v1751 = vunpack.c.h.b16 %v745
        %v1752 = vunpack.c.l.b16 %v746
        %v1753 = vunpack.c.h.b16 %v746
        %v1754 = vunpack.c.l.b16 %v747
        %v1755 = vunpack.c.h.b16 %v747
        %v1756 = vunpack.c.l.b16 %v748
        %v1757 = vunpack.c.h.b16 %v748
        %v1758 = vunpack.c.l.b16 %v749
        %v1759 = vunpack.c.h.b16 %v749
        %v1760 = vpack.c.b16 %v1124, %v1120
        %v1761 = vpack.c.b16 %v1125, %v1121
        %v1762 = vpack.c.b16 %v1126, %v1122
        %v1763 = vpack.c.b16 %v1127, %v1123
        %v1764 = vpack.c.b16 %v1132, %v1128
        %v1765 = vpack.c.b16 %v1133, %v1129
        %v1766 = vpack.c.b16 %v1134, %v1130
        %v1767 = vpack.c.b16 %v1135, %v1131
        %v1768 = vpack.c.b16 %v1140, %v1136
        %v1769 = vpack.c.b16 %v1141, %v1137
        %v1770 = vpack.c.b16 %v1142, %v1138
        %v1771 = vpack.c.b16 %v1143, %v1139
        %v1772 = vpack.c.b16 %v1148, %v1144
        %v1773 = vpack.c.b16 %v1149, %v1145
        %v1774 = vpack.c.b16 %v1150, %v1146
        %v1775 = vpack.c.b16 %v1151, %v1147
        %v1776 = vpack.c.b16 %v1156, %v1152
        %v1777 = vpack.c.b16 %v1157, %v1153
        %v1778 = vpack.c.b16 %v1158, %v1154
        %v1779 = vpack.c.b16 %v1159, %v1155
        %v1780 = vpack.c.b16 %v1164, %v1160
        %v1781 = vpack.c.b16 %v1165, %v1161
        %v1782 = vpack.c.b16 %v1166, %v1162
        %v1783 = vpack.c.b16 %v1167, %v1163
        %v1784 = vpack.c.b16 %v1172, %v1168
        %v1785 = vpack.c.b16 %v1173, %v1169
        %v1786 = vpack.c.b16 %v1174, %v1170
        %v1787 = vpack.c.b16 %v1175, %v1171
        %v1788 = vpack.c.b16 %v1180, %v1176
        %v1789 = vpack.c.b16 %v1181, %v1177
        %v1790 = vpack.c.b16 %v1182, %v1178
        %v1791 = vpack.c.b16 %v1183, %v1179
        %v1792 = vpack.c.b16 %v1188, %v1184
        %v1793 = vpack.c.b16 %v1189, %v1185
        %v1794 = vpack.c.b16 %v1190, %v1186
        %v1795 = vpack.c.b16 %v1191, %v1187
        %v1796 = vpack.c.b16 %v1196, %v1192
        %v1797 = vpack.c.b16 %v1197, %v1193
        %v1798 = vpack.c.b16 %v1198, %v1194
        %v1799 = vpack.c.b16 %v1199, %v1195
        %v1800 = vpack.c.b16 %v1204, %v1200
        %v1801 = vpack.c.b16 %v1205, %v1201
        %v1802 = vpack.c.b16 %v1206, %v1202
        %v1803 = vpack.c.b16 %v1207, %v1203
        %v1804 = vpack.c.b16 %v1212, %v1208
        %v1805 = vpack.c.b16 %v1213, %v1209
        %v1806 = vpack.c.b16 %v1214, %v1210
        %v1807 = vpack.c.b16 %v1215, %v1211
        %v1808 = vpack.c.b16 %v1220, %v1216
        %v1809 = vpack.c.b16 %v1221, %v1217
        %v1810 = vpack.c.b16 %v1222, %v1218
        %v1811 = vpack.c.b16 %v1223, %v1219
        %v1812 = vpack.c.b16 %v1228, %v1224
        %v1813 = vpack.c.b16 %v1229, %v1225
        %v1814 = vpack.c.b16 %v1230, %v1226
        %v1815 = vpack.c.b16 %v1231, %v1227
        %v1816 = vpack.c.b16 %v1236, %v1232
        %v1817 = vpack.c.b16 %v1237, %v1233
        %v1818 = vpack.c.b16 %v1238, %v1234
        %v1819 = vpack.c.b16 %v1239, %v1235
        %v1820 = vpack.c.b16 %v1244, %v1240
        %v1821 = vpack.c.b16 %v1245, %v1241
        %v1822 = vpack.c.b16 %v1246, %v1242
        %v1823 = vpack.c.b16 %v1247, %v1243
        %v1824 = vpack.c.b16 %v1252, %v1248
        %v1825 = vpack.c.b16 %v1253, %v1249
        %v1826 = vpack.c.b16 %v1254, %v1250
        %v1827 = vpack.c.b16 %v1255, %v1251
        %v1828 = vpack.c.b16 %v1260, %v1256
        %v1829 = vpack.c.b16 %v1261, %v1257
        %v1830 = vpack.c.b16 %v1262, %v1258
        %v1831 = vpack.c.b16 %v1263, %v1259
        %v1832 = vpack.c.b16 %v1268, %v1264
        %v1833 = vpack.c.b16 %v1269, %v1265
        %v1834 = vpack.c.b16 %v1270, %v1266
        %v1835 = vpack.c.b16 %v1271, %v1267
        %v1836 = vpack.c.b16 %v1276, %v1272
        %v1837 = vpack.c.b16 %v1277, %v1273
        %v1838 = vpack.c.b16 %v1278, %v1274
        %v1839 = vpack.c.b16 %v1279, %v1275
        %v1840 = vpack.c.b16 %v1284, %v1280
        %v1841 = vpack.c.b16 %v1285, %v1281
        %v1842 = vpack.c.b16 %v1286, %v1282
        %v1843 = vpack.c.b16 %v1287, %v1283
        %v1844 = vpack.c.b16 %v1292, %v1288
        %v1845 = vpack.c.b16 %v1293, %v1289
        %v1846 = vpack.c.b16 %v1294, %v1290
        %v1847 = vpack.c.b16 %v1295, %v1291
        %v1848 = vpack.c.b16 %v1300, %v1296
        %v1849 = vpack.c.b16 %v1301, %v1297
        %v1850 = vpack.c.b16 %v1302, %v1298
        %v1851 = vpack.c.b16 %v1303, %v1299
        %v1852 = vpack.c.b16 %v1308, %v1304
        %v1853 = vpack.c.b16 %v1309, %v1305
        %v1854 = vpack.c.b16 %v1310, %v1306
        %v1855 = vpack.c.b16 %v1311, %v1307
        %v1856 = vpack.c.b16 %v1316, %v1312
        %v1857 = vpack.c.b16 %v1317, %v1313
        %v1858 = vpack.c.b16 %v1318, %v1314
        %v1859 = vpack.c.b16 %v1319, %v1315
        %v1860 = vpack.c.b16 %v1324, %v1320
        %v1861 = vpack.c.b16 %v1325, %v1321
        %v1862 = vpack.c.b16 %v1326, %v1322
        %v1863 = vpack.c.b16 %v1327, %v1323
        %v1864 = vpack.c.b16 %v1332, %v1328
        %v1865 = vpack.c.b16 %v1333, %v1329
        %v1866 = vpack.c.b16 %v1334, %v1330
        %v1867 = vpack.c.b16 %v1335, %v1331
        %v1868 = vpack.c.b16 %v1340, %v1336
        %v1869 = vpack.c.b16 %v1341, %v1337
        %v1870 = vpack.c.b16 %v1342, %v1338
        %v1871 = vpack.c.b16 %v1343, %v1339
        %v1872 = vpack.c.b16 %v1348, %v1344
        %v1873 = vpack.c.b16 %v1349, %v1345
        %v1874 = vpack.c.b16 %v1350, %v1346
        %v1875 = vpack.c.b16 %v1351, %v1347
        %v1876 = vpack.c.b16 %v1356, %v1352
        %v1877 = vpack.c.b16 %v1357, %v1353
        %v1878 = vpack.c.b16 %v1358, %v1354
        %v1879 = vpack.c.b16 %v1359, %v1355
        %v1880 = vpack.c.b16 %v1364, %v1360
        %v1881 = vpack.c.b16 %v1365, %v1361
        %v1882 = vpack.c.b16 %v1366, %v1362
        %v1883 = vpack.c.b16 %v1367, %v1363
        %v1884 = vpack.c.b16 %v1372, %v1368
        %v1885 = vpack.c.b16 %v1373, %v1369
        %v1886 = vpack.c.b16 %v1374, %v1370
        %v1887 = vpack.c.b16 %v1375, %v1371
        %v1888 = vpack.c.b16 %v1380, %v1376
        %v1889 = vpack.c.b16 %v1381, %v1377
        %v1890 = vpack.c.b16 %v1382, %v1378
        %v1891 = vpack.c.b16 %v1383, %v1379
        %v1892 = vpack.c.b16 %v1388, %v1384
        %v1893 = vpack.c.b16 %v1389, %v1385
        %v1894 = vpack.c.b16 %v1390, %v1386
        %v1895 = vpack.c.b16 %v1391, %v1387
        %v1896 = vpack.c.b16 %v1396, %v1392
        %v1897 = vpack.c.b16 %v1397, %v1393
        %v1898 = vpack.c.b16 %v1398, %v1394
        %v1899 = vpack.c.b16 %v1399, %v1395
        %v1900 = vpack.c.b16 %v1404, %v1400
        %v1901 = vpack.c.b16 %v1405, %v1401
        %v1902 = vpack.c.b16 %v1406, %v1402
        %v1903 = vpack.c.b16 %v1407, %v1403
        %v1904 = vpack.c.b16 %v1412, %v1408
        %v1905 = vpack.c.b16 %v1413, %v1409
        %v1906 = vpack.c.b16 %v1414, %v1410
        %v1907 = vpack.c.b16 %v1415, %v1411
        %v1908 = vpack.c.b16 %v1420, %v1416
        %v1909 = vpack.c.b16 %v1421, %v1417
        %v1910 = vpack.c.b16 %v1422, %v1418
        %v1911 = vpack.c.b16 %v1423, %v1419
        %v1912 = vpack.c.b16 %v1428, %v1424
        %v1913 = vpack.c.b16 %v1429, %v1425
        %v1914 = vpack.c.b16 %v1430, %v1426
        %v1915 = vpack.c.b16 %v1431, %v1427
        %v1916 = vpack.c.b16 %v1436, %v1432
        %v1917 = vpack.c.b16 %v1437, %v1433
        %v1918 = vpack.c.b16 %v1438, %v1434
        %v1919 = vpack.c.b16 %v1439, %v1435
        %v1920 = vpack.c.b16 %v1444, %v1440
        %v1921 = vpack.c.b16 %v1445, %v1441
        %v1922 = vpack.c.b16 %v1446, %v1442
        %v1923 = vpack.c.b16 %v1447, %v1443
        %v1924 = vpack.c.b16 %v1452, %v1448
        %v1925 = vpack.c.b16 %v1453, %v1449
        %v1926 = vpack.c.b16 %v1454, %v1450
        %v1927 = vpack.c.b16 %v1455, %v1451
        %v1928 = vpack.c.b16 %v1460, %v1456
        %v1929 = vpack.c.b16 %v1461, %v1457
        %v1930 = vpack.c.b16 %v1462, %v1458
        %v1931 = vpack.c.b16 %v1463, %v1459
        %v1932 = vpack.c.b16 %v1468, %v1464
        %v1933 = vpack.c.b16 %v1469, %v1465
        %v1934 = vpack.c.b16 %v1470, %v1466
        %v1935 = vpack.c.b16 %v1471, %v1467
        %v1936 = vpack.c.b16 %v1476, %v1472
        %v1937 = vpack.c.b16 %v1477, %v1473
        %v1938 = vpack.c.b16 %v1478, %v1474
        %v1939 = vpack.c.b16 %v1479, %v1475
        %v1940 = vpack.c.b16 %v1484, %v1480
        %v1941 = vpack.c.b16 %v1485, %v1481
        %v1942 = vpack.c.b16 %v1486, %v1482
        %v1943 = vpack.c.b16 %v1487, %v1483
        %v1944 = vpack.c.b16 %v1492, %v1488
        %v1945 = vpack.c.b16 %v1493, %v1489
        %v1946 = vpack.c.b16 %v1494, %v1490
        %v1947 = vpack.c.b16 %v1495, %v1491
        %v1948 = vpack.c.b16 %v1500, %v1496
        %v1949 = vpack.c.b16 %v1501, %v1497
        %v1950 = vpack.c.b16 %v1502, %v1498
        %v1951 = vpack.c.b16 %v1503, %v1499
        %v1952 = vpack.c.b16 %v1508, %v1504
        %v1953 = vpack.c.b16 %v1509, %v1505
        %v1954 = vpack.c.b16 %v1510, %v1506
        %v1955 = vpack.c.b16 %v1511, %v1507
        %v1956 = vpack.c.b16 %v1516, %v1512
        %v1957 = vpack.c.b16 %v1517, %v1513
        %v1958 = vpack.c.b16 %v1518, %v1514
        %v1959 = vpack.c.b16 %v1519, %v1515
        %v1960 = vpack.c.b16 %v1524, %v1520
        %v1961 = vpack.c.b16 %v1525, %v1521
        %v1962 = vpack.c.b16 %v1526, %v1522
        %v1963 = vpack.c.b16 %v1527, %v1523
        %v1964 = vpack.c.b16 %v1532, %v1528
        %v1965 = vpack.c.b16 %v1533, %v1529
        %v1966 = vpack.c.b16 %v1534, %v1530
        %v1967 = vpack.c.b16 %v1535, %v1531
        %v1968 = vpack.c.b16 %v1540, %v1536
        %v1969 = vpack.c.b16 %v1541, %v1537
        %v1970 = vpack.c.b16 %v1542, %v1538
        %v1971 = vpack.c.b16 %v1543, %v1539
        %v1972 = vpack.c.b16 %v1548, %v1544
        %v1973 = vpack.c.b16 %v1549, %v1545
        %v1974 = vpack.c.b16 %v1550, %v1546
        %v1975 = vpack.c.b16 %v1551, %v1547
        %v1976 = vpack.c.b16 %v1556, %v1552
        %v1977 = vpack.c.b16 %v1557, %v1553
        %v1978 = vpack.c.b16 %v1558, %v1554
        %v1979 = vpack.c.b16 %v1559, %v1555
        %v1980 = vpack.c.b16 %v1564, %v1560
        %v1981 = vpack.c.b16 %v1565, %v1561
        %v1982 = vpack.c.b16 %v1566, %v1562
        %v1983 = vpack.c.b16 %v1567, %v1563
        %v1984 = vpack.c.b16 %v1572, %v1568
        %v1985 = vpack.c.b16 %v1573, %v1569
        %v1986 = vpack.c.b16 %v1574, %v1570
        %v1987 = vpack.c.b16 %v1575, %v1571
        %v1988 = vpack.c.b16 %v1580, %v1576
        %v1989 = vpack.c.b16 %v1581, %v1577
        %v1990 = vpack.c.b16 %v1582, %v1578
        %v1991 = vpack.c.b16 %v1583, %v1579
        %v1992 = vpack.c.b16 %v1588, %v1584
        %v1993 = vpack.c.b16 %v1589, %v1585
        %v1994 = vpack.c.b16 %v1590, %v1586
        %v1995 = vpack.c.b16 %v1591, %v1587
        %v1996 = vpack.c.b16 %v1596, %v1592
        %v1997 = vpack.c.b16 %v1597, %v1593
        %v1998 = vpack.c.b16 %v1598, %v1594
        %v1999 = vpack.c.b16 %v1599, %v1595
        %v2000 = vpack.c.b16 %v1604, %v1600
        %v2001 = vpack.c.b16 %v1605, %v1601
        %v2002 = vpack.c.b16 %v1606, %v1602
        %v2003 = vpack.c.b16 %v1607, %v1603
        %v2004 = vpack.c.b16 %v1612, %v1608
        %v2005 = vpack.c.b16 %v1613, %v1609
        %v2006 = vpack.c.b16 %v1614, %v1610
        %v2007 = vpack.c.b16 %v1615, %v1611
        %v2008 = vpack.c.b16 %v1620, %v1616
        %v2009 = vpack.c.b16 %v1621, %v1617
        %v2010 = vpack.c.b16 %v1622, %v1618
        %v2011 = vpack.c.b16 %v1623, %v1619
        %v2012 = vpack.c.b16 %v1628, %v1624
        %v2013 = vpack.c.b16 %v1629, %v1625
        %v2014 = vpack.c.b16 %v1630, %v1626
        %v2015 = vpack.c.b16 %v1631, %v1627
        %v2016 = vpack.c.b16 %v1636, %v1632
        %v2017 = vpack.c.b16 %v1637, %v1633
        %v2018 = vpack.c.b16 %v1638, %v1634
        %v2019 = vpack.c.b16 %v1639, %v1635
        %v2020 = vpack.c.b16 %v1644, %v1640
        %v2021 = vpack.c.b16 %v1645, %v1641
        %v2022 = vpack.c.b16 %v1646, %v1642
        %v2023 = vpack.c.b16 %v1647, %v1643
        %v2024 = vpack.c.b16 %v1652, %v1648
        %v2025 = vpack.c.b16 %v1653, %v1649
        %v2026 = vpack.c.b16 %v1654, %v1650
        %v2027 = vpack.c.b16 %v1655, %v1651
        %v2028 = vpack.c.b16 %v1660, %v1656
        %v2029 = vpack.c.b16 %v1661, %v1657
        %v2030 = vpack.c.b16 %v1662, %v1658
        %v2031 = vpack.c.b16 %v1663, %v1659
        %v2032 = vpack.c.b16 %v1668, %v1664
        %v2033 = vpack.c.b16 %v1669, %v1665
        %v2034 = vpack.c.b16 %v1670, %v1666
        %v2035 = vpack.c.b16 %v1671, %v1667
        %v2036 = vpack.c.b16 %v1676, %v1672
        %v2037 = vpack.c.b16 %v1677, %v1673
        %v2038 = vpack.c.b16 %v1678, %v1674
        %v2039 = vpack.c.b16 %v1679, %v1675
        %v2040 = vpack.c.b16 %v1684, %v1680
        %v2041 = vpack.c.b16 %v1685, %v1681
        %v2042 = vpack.c.b16 %v1686, %v1682
        %v2043 = vpack.c.b16 %v1687, %v1683
        %v2044 = vpack.c.b16 %v1692, %v1688
        %v2045 = vpack.c.b16 %v1693, %v1689
        %v2046 = vpack.c.b16 %v1694, %v1690
        %v2047 = vpack.c.b16 %v1695, %v1691
        %v2048 = vpack.c.b16 %v1700, %v1696
        %v2049 = vpack.c.b16 %v1701, %v1697
        %v2050 = vpack.c.b16 %v1702, %v1698
        %v2051 = vpack.c.b16 %v1703, %v1699
        %v2052 = vpack.c.b16 %v1708, %v1704
        %v2053 = vpack.c.b16 %v1709, %v1705
        %v2054 = vpack.c.b16 %v1710, %v1706
        %v2055 = vpack.c.b16 %v1711, %v1707
        %v2056 = vpack.c.b16 %v1716, %v1712
        %v2057 = vpack.c.b16 %v1717, %v1713
        %v2058 = vpack.c.b16 %v1718, %v1714
        %v2059 = vpack.c.b16 %v1719, %v1715
        %v2060 = vpack.c.b16 %v1724, %v1720
        %v2061 = vpack.c.b16 %v1725, %v1721
        %v2062 = vpack.c.b16 %v1726, %v1722
        %v2063 = vpack.c.b16 %v1727, %v1723
        %v2064 = vpack.c.b16 %v1732, %v1728
        %v2065 = vpack.c.b16 %v1733, %v1729
        %v2066 = vpack.c.b16 %v1734, %v1730
        %v2067 = vpack.c.b16 %v1735, %v1731
        %v2068 = vpack.c.b16 %v1740, %v1736
        %v2069 = vpack.c.b16 %v1741, %v1737
        %v2070 = vpack.c.b16 %v1742, %v1738
        %v2071 = vpack.c.b16 %v1743, %v1739
        %v2072 = vpack.c.b16 %v1748, %v1744
        %v2073 = vpack.c.b16 %v1749, %v1745
        %v2074 = vpack.c.b16 %v1750, %v1746
        %v2075 = vpack.c.b16 %v1751, %v1747
        %v2076 = vpack.c.b16 %v1756, %v1752
        %v2077 = vpack.c.b16 %v1757, %v1753
        %v2078 = vpack.c.b16 %v1758, %v1754
        %v2079 = vpack.c.b16 %v1759, %v1755
        %2400 = vmatprep.subr.bf16.mxu0 %v1789
        %2401 = vmatpush1.bf16.msra.mxu0 %v1788
        %2402 = vmatprep.subr.bf16.mxu0 %v1785
        %2403 = vmatpush1.bf16.msra.mxu0 %v1784
        %2404 = vmatprep.subr.bf16.mxu0 %v1781
        %2405 = vmatpush1.bf16.msra.mxu0 %v1780
        %2406 = vmatprep.subr.bf16.mxu0 %v1777
        %2407 = vmatpush1.bf16.msra.mxu0 %v1776
        %2408 = vmatprep.subr.bf16.mxu0 %v1773
        %2409 = vmatpush1.bf16.msra.mxu0 %v1772
        %2410 = vmatprep.subr.bf16.mxu0 %v1769
        %2411 = vmatpush1.bf16.msra.mxu0 %v1768
        %2412 = vmatprep.subr.bf16.mxu0 %v1765
        %2413 = vmatpush1.bf16.msra.mxu0 %v1764
        %2414 = vmatprep.subr.bf16.mxu0 %v1761
        %2415 = vmatpush1.bf16.msra.mxu0 %v1760
        %2416 = vmatprep.subr.bf16.mxu0 %v1821
        %2417 = vmatpush2.bf16.msra.mxu0 %v1820
        %2418 = vmatprep.subr.bf16.mxu0 %v1817
        %2419 = vmatpush2.bf16.msra.mxu0 %v1816
        %2420 = vmatprep.subr.bf16.mxu0 %v1813
        %2421 = vmatpush2.bf16.msra.mxu0 %v1812
        %2422 = vmatprep.subr.bf16.mxu0 %v1809
        %2423 = vmatpush2.bf16.msra.mxu0 %v1808
        %2424 = vmatprep.subr.bf16.mxu0 %v1805
        %2425 = vmatpush2.bf16.msra.mxu0 %v1804
        %2426 = vmatprep.subr.bf16.mxu0 %v1801
        %2427 = vmatpush2.bf16.msra.mxu0 %v1800
        %2428 = vmatprep.subr.bf16.mxu0 %v1797
        %2429 = vmatpush2.bf16.msra.mxu0 %v1796
        %2430 = vmatprep.subr.bf16.mxu0 %v1793
        %2431 = vmatpush2.bf16.msra.mxu0 %v1792
        %2432 = vmatprep.mubr.bf16.mxu0 %v781
        %2433 = vmatmul.mubr.bf16.gmra.mxu0 %v780
        %v2434 = vpop.f32.mrf.mxu0
        %v2435 = vadd.f32 0.0, %v2434
        %v2436 = vpop.f32.mrf.mxu0
        %v2437 = vadd.f32 0.0, %v2436
        %v2438 = vpop.f32.mrf.mxu0
        %v2439 = vadd.f32 0.0, %v2438
        %v2440 = vpop.f32.mrf.mxu0
        %v2441 = vadd.f32 0.0, %v2440
        %2442 = vdwg.mxu0
        %2443 = vmatprep.subr.bf16.mxu0 %v1853
        %2444 = vmatpush1.bf16.msra.mxu0 %v1852
        %2445 = vmatprep.subr.bf16.mxu0 %v1849
        %2446 = vmatpush1.bf16.msra.mxu0 %v1848
        %2447 = vmatprep.subr.bf16.mxu0 %v1845
        %2448 = vmatpush1.bf16.msra.mxu0 %v1844
        %2449 = vmatprep.subr.bf16.mxu0 %v1841
        %2450 = vmatpush1.bf16.msra.mxu0 %v1840
        %2451 = vmatprep.subr.bf16.mxu0 %v1837
        %2452 = vmatpush1.bf16.msra.mxu0 %v1836
        %2453 = vmatprep.subr.bf16.mxu0 %v1833
        %2454 = vmatpush1.bf16.msra.mxu0 %v1832
        %2455 = vmatprep.subr.bf16.mxu0 %v1829
        %2456 = vmatpush1.bf16.msra.mxu0 %v1828
        %2457 = vmatprep.subr.bf16.mxu0 %v1825
        %2458 = vmatpush1.bf16.msra.mxu0 %v1824
        %2459 = vmatprep.subr.bf16.mxu0 %v1885
        %2460 = vmatpush2.bf16.msra.mxu0 %v1884
        %2461 = vmatprep.subr.bf16.mxu0 %v1881
        %2462 = vmatpush2.bf16.msra.mxu0 %v1880
        %2463 = vmatprep.subr.bf16.mxu0 %v1877
        %2464 = vmatpush2.bf16.msra.mxu0 %v1876
        %2465 = vmatprep.subr.bf16.mxu0 %v1873
        %2466 = vmatpush2.bf16.msra.mxu0 %v1872
        %2467 = vmatprep.subr.bf16.mxu0 %v1869
        %2468 = vmatpush2.bf16.msra.mxu0 %v1868
        %2469 = vmatprep.subr.bf16.mxu0 %v1865
        %2470 = vmatpush2.bf16.msra.mxu0 %v1864
        %2471 = vmatprep.subr.bf16.mxu0 %v1861
        %2472 = vmatpush2.bf16.msra.mxu0 %v1860
        %2473 = vmatprep.subr.bf16.mxu0 %v1857
        %2474 = vmatpush2.bf16.msra.mxu0 %v1856
        %2475 = vmatprep.mubr.bf16.mxu0 %v783
        %2476 = vmatmul.mubr.bf16.gmra.mxu0 %v782
        %v2477 = vpop.f32.mrf.mxu0
        %v2478 = vadd.f32 %v2435, %v2477
        %v2479 = vpop.f32.mrf.mxu0
        %v2480 = vadd.f32 %v2437, %v2479
        %v2481 = vpop.f32.mrf.mxu0
        %v2482 = vadd.f32 %v2439, %v2481
        %v2483 = vpop.f32.mrf.mxu0
        %v2484 = vadd.f32 %v2441, %v2483
        %2485 = vdwg.mxu0
        %2486 = vmatprep.subr.bf16.mxu0 %v1917
        %2487 = vmatpush1.bf16.msra.mxu0 %v1916
        %2488 = vmatprep.subr.bf16.mxu0 %v1913
        %2489 = vmatpush1.bf16.msra.mxu0 %v1912
        %2490 = vmatprep.subr.bf16.mxu0 %v1909
        %2491 = vmatpush1.bf16.msra.mxu0 %v1908
        %2492 = vmatprep.subr.bf16.mxu0 %v1905
        %2493 = vmatpush1.bf16.msra.mxu0 %v1904
        %2494 = vmatprep.subr.bf16.mxu0 %v1901
        %2495 = vmatpush1.bf16.msra.mxu0 %v1900
        %2496 = vmatprep.subr.bf16.mxu0 %v1897
        %2497 = vmatpush1.bf16.msra.mxu0 %v1896
        %2498 = vmatprep.subr.bf16.mxu0 %v1893
        %2499 = vmatpush1.bf16.msra.mxu0 %v1892
        %2500 = vmatprep.subr.bf16.mxu0 %v1889
        %2501 = vmatpush1.bf16.msra.mxu0 %v1888
        %2502 = vmatprep.subr.bf16.mxu0 %v1949
        %2503 = vmatpush2.bf16.msra.mxu0 %v1948
        %2504 = vmatprep.subr.bf16.mxu0 %v1945
        %2505 = vmatpush2.bf16.msra.mxu0 %v1944
        %2506 = vmatprep.subr.bf16.mxu0 %v1941
        %2507 = vmatpush2.bf16.msra.mxu0 %v1940
        %2508 = vmatprep.subr.bf16.mxu0 %v1937
        %2509 = vmatpush2.bf16.msra.mxu0 %v1936
        %2510 = vmatprep.subr.bf16.mxu0 %v1933
        %2511 = vmatpush2.bf16.msra.mxu0 %v1932
        %2512 = vmatprep.subr.bf16.mxu0 %v1929
        %2513 = vmatpush2.bf16.msra.mxu0 %v1928
        %2514 = vmatprep.subr.bf16.mxu0 %v1925
        %2515 = vmatpush2.bf16.msra.mxu0 %v1924
        %2516 = vmatprep.subr.bf16.mxu0 %v1921
        %2517 = vmatpush2.bf16.msra.mxu0 %v1920
        %2518 = vmatprep.mubr.bf16.mxu0 %v785
        %2519 = vmatmul.mubr.bf16.gmra.mxu0 %v784
        %v2520 = vpop.f32.mrf.mxu0
        %v2521 = vadd.f32 %v2478, %v2520
        %v2522 = vpop.f32.mrf.mxu0
        %v2523 = vadd.f32 %v2480, %v2522
        %v2524 = vpop.f32.mrf.mxu0
        %v2525 = vadd.f32 %v2482, %v2524
        %v2526 = vpop.f32.mrf.mxu0
        %v2527 = vadd.f32 %v2484, %v2526
        %2528 = vdwg.mxu0
        %2529 = vmatprep.subr.bf16.mxu0 %v1981
        %2530 = vmatpush1.bf16.msra.mxu0 %v1980
        %2531 = vmatprep.subr.bf16.mxu0 %v1977
        %2532 = vmatpush1.bf16.msra.mxu0 %v1976
        %2533 = vmatprep.subr.bf16.mxu0 %v1973
        %2534 = vmatpush1.bf16.msra.mxu0 %v1972
        %2535 = vmatprep.subr.bf16.mxu0 %v1969
        %2536 = vmatpush1.bf16.msra.mxu0 %v1968
        %2537 = vmatprep.subr.bf16.mxu0 %v1965
        %2538 = vmatpush1.bf16.msra.mxu0 %v1964
        %2539 = vmatprep.subr.bf16.mxu0 %v1961
        %2540 = vmatpush1.bf16.msra.mxu0 %v1960
        %2541 = vmatprep.subr.bf16.mxu0 %v1957
        %2542 = vmatpush1.bf16.msra.mxu0 %v1956
        %2543 = vmatprep.subr.bf16.mxu0 %v1953
        %2544 = vmatpush1.bf16.msra.mxu0 %v1952
        %2545 = vmatprep.subr.bf16.mxu0 %v2013
        %2546 = vmatpush2.bf16.msra.mxu0 %v2012
        %2547 = vmatprep.subr.bf16.mxu0 %v2009
        %2548 = vmatpush2.bf16.msra.mxu0 %v2008
        %2549 = vmatprep.subr.bf16.mxu0 %v2005
        %2550 = vmatpush2.bf16.msra.mxu0 %v2004
        %2551 = vmatprep.subr.bf16.mxu0 %v2001
        %2552 = vmatpush2.bf16.msra.mxu0 %v2000
        %2553 = vmatprep.subr.bf16.mxu0 %v1997
        %2554 = vmatpush2.bf16.msra.mxu0 %v1996
        %2555 = vmatprep.subr.bf16.mxu0 %v1993
        %2556 = vmatpush2.bf16.msra.mxu0 %v1992
        %2557 = vmatprep.subr.bf16.mxu0 %v1989
        %2558 = vmatpush2.bf16.msra.mxu0 %v1988
        %2559 = vmatprep.subr.bf16.mxu0 %v1985
        %2560 = vmatpush2.bf16.msra.mxu0 %v1984
        %2561 = vmatprep.mubr.bf16.mxu0 %v787
        %2562 = vmatmul.mubr.bf16.gmra.mxu0 %v786
        %v2563 = vpop.f32.mrf.mxu0
        %v2564 = vadd.f32 %v2521, %v2563
        %v2565 = vpop.f32.mrf.mxu0
        %v2566 = vadd.f32 %v2523, %v2565
        %v2567 = vpop.f32.mrf.mxu0
        %v2568 = vadd.f32 %v2525, %v2567
        %v2569 = vpop.f32.mrf.mxu0
        %v2570 = vadd.f32 %v2527, %v2569
        %2571 = vdwg.mxu0
        %2572 = vmatprep.subr.bf16.mxu0 %v2045
        %2573 = vmatpush1.bf16.msra.mxu0 %v2044
        %2574 = vmatprep.subr.bf16.mxu0 %v2041
        %2575 = vmatpush1.bf16.msra.mxu0 %v2040
        %2576 = vmatprep.subr.bf16.mxu0 %v2037
        %2577 = vmatpush1.bf16.msra.mxu0 %v2036
        %2578 = vmatprep.subr.bf16.mxu0 %v2033
        %2579 = vmatpush1.bf16.msra.mxu0 %v2032
        %2580 = vmatprep.subr.bf16.mxu0 %v2029
        %2581 = vmatpush1.bf16.msra.mxu0 %v2028
        %2582 = vmatprep.subr.bf16.mxu0 %v2025
        %2583 = vmatpush1.bf16.msra.mxu0 %v2024
        %2584 = vmatprep.subr.bf16.mxu0 %v2021
        %2585 = vmatpush1.bf16.msra.mxu0 %v2020
        %2586 = vmatprep.subr.bf16.mxu0 %v2017
        %2587 = vmatpush1.bf16.msra.mxu0 %v2016
        %2588 = vmatprep.subr.bf16.mxu0 %v2077
        %2589 = vmatpush2.bf16.msra.mxu0 %v2076
        %2590 = vmatprep.subr.bf16.mxu0 %v2073
        %2591 = vmatpush2.bf16.msra.mxu0 %v2072
        %2592 = vmatprep.subr.bf16.mxu0 %v2069
        %2593 = vmatpush2.bf16.msra.mxu0 %v2068
        %2594 = vmatprep.subr.bf16.mxu0 %v2065
        %2595 = vmatpush2.bf16.msra.mxu0 %v2064
        %2596 = vmatprep.subr.bf16.mxu0 %v2061
        %2597 = vmatpush2.bf16.msra.mxu0 %v2060
        %2598 = vmatprep.subr.bf16.mxu0 %v2057
        %2599 = vmatpush2.bf16.msra.mxu0 %v2056
        %2600 = vmatprep.subr.bf16.mxu0 %v2053
        %2601 = vmatpush2.bf16.msra.mxu0 %v2052
        %2602 = vmatprep.subr.bf16.mxu0 %v2049
        %2603 = vmatpush2.bf16.msra.mxu0 %v2048
        %2604 = vmatprep.mubr.bf16.mxu0 %v789
        %2605 = vmatmul.mubr.bf16.gmra.mxu0 %v788
        %v2606 = vpop.f32.mrf.mxu0
        %v2607 = vadd.f32 %v2564, %v2606
        %v2608 = vpop.f32.mrf.mxu0
        %v2609 = vadd.f32 %v2566, %v2608
        %v2610 = vpop.f32.mrf.mxu0
        %v2611 = vadd.f32 %v2568, %v2610
        %v2612 = vpop.f32.mrf.mxu0
        %v2613 = vadd.f32 %v2570, %v2612
        %2614 = vdwg.mxu0
        %2615 = vmatprep.subr.bf16.mxu0 %v1791
        %2616 = vmatpush1.bf16.msra.mxu0 %v1790
        %2617 = vmatprep.subr.bf16.mxu0 %v1787
        %2618 = vmatpush1.bf16.msra.mxu0 %v1786
        %2619 = vmatprep.subr.bf16.mxu0 %v1783
        %2620 = vmatpush1.bf16.msra.mxu0 %v1782
        %2621 = vmatprep.subr.bf16.mxu0 %v1779
        %2622 = vmatpush1.bf16.msra.mxu0 %v1778
        %2623 = vmatprep.subr.bf16.mxu0 %v1775
        %2624 = vmatpush1.bf16.msra.mxu0 %v1774
        %2625 = vmatprep.subr.bf16.mxu0 %v1771
        %2626 = vmatpush1.bf16.msra.mxu0 %v1770
        %2627 = vmatprep.subr.bf16.mxu0 %v1767
        %2628 = vmatpush1.bf16.msra.mxu0 %v1766
        %2629 = vmatprep.subr.bf16.mxu0 %v1763
        %2630 = vmatpush1.bf16.msra.mxu0 %v1762
        %2631 = vmatprep.subr.bf16.mxu0 %v1823
        %2632 = vmatpush2.bf16.msra.mxu0 %v1822
        %2633 = vmatprep.subr.bf16.mxu0 %v1819
        %2634 = vmatpush2.bf16.msra.mxu0 %v1818
        %2635 = vmatprep.subr.bf16.mxu0 %v1815
        %2636 = vmatpush2.bf16.msra.mxu0 %v1814
        %2637 = vmatprep.subr.bf16.mxu0 %v1811
        %2638 = vmatpush2.bf16.msra.mxu0 %v1810
        %2639 = vmatprep.subr.bf16.mxu0 %v1807
        %2640 = vmatpush2.bf16.msra.mxu0 %v1806
        %2641 = vmatprep.subr.bf16.mxu0 %v1803
        %2642 = vmatpush2.bf16.msra.mxu0 %v1802
        %2643 = vmatprep.subr.bf16.mxu0 %v1799
        %2644 = vmatpush2.bf16.msra.mxu0 %v1798
        %2645 = vmatprep.subr.bf16.mxu0 %v1795
        %2646 = vmatpush2.bf16.msra.mxu0 %v1794
        %2647 = vmatprep.mubr.bf16.mxu0 %v781
        %2648 = vmatmul.mubr.bf16.gmra.mxu0 %v780
        %v2649 = vpop.f32.mrf.mxu0
        %v2650 = vadd.f32 0.0, %v2649
        %v2651 = vpop.f32.mrf.mxu0
        %v2652 = vadd.f32 0.0, %v2651
        %v2653 = vpop.f32.mrf.mxu0
        %v2654 = vadd.f32 0.0, %v2653
        %v2655 = vpop.f32.mrf.mxu0
        %v2656 = vadd.f32 0.0, %v2655
        %2657 = vdwg.mxu0
        %2658 = vmatprep.subr.bf16.mxu0 %v1855
        %2659 = vmatpush1.bf16.msra.mxu0 %v1854
        %2660 = vmatprep.subr.bf16.mxu0 %v1851
        %2661 = vmatpush1.bf16.msra.mxu0 %v1850
        %2662 = vmatprep.subr.bf16.mxu0 %v1847
        %2663 = vmatpush1.bf16.msra.mxu0 %v1846
        %2664 = vmatprep.subr.bf16.mxu0 %v1843
        %2665 = vmatpush1.bf16.msra.mxu0 %v1842
        %2666 = vmatprep.subr.bf16.mxu0 %v1839
        %2667 = vmatpush1.bf16.msra.mxu0 %v1838
        %2668 = vmatprep.subr.bf16.mxu0 %v1835
        %2669 = vmatpush1.bf16.msra.mxu0 %v1834
        %2670 = vmatprep.subr.bf16.mxu0 %v1831
        %2671 = vmatpush1.bf16.msra.mxu0 %v1830
        %2672 = vmatprep.subr.bf16.mxu0 %v1827
        %2673 = vmatpush1.bf16.msra.mxu0 %v1826
        %2674 = vmatprep.subr.bf16.mxu0 %v1887
        %2675 = vmatpush2.bf16.msra.mxu0 %v1886
        %2676 = vmatprep.subr.bf16.mxu0 %v1883
        %2677 = vmatpush2.bf16.msra.mxu0 %v1882
        %2678 = vmatprep.subr.bf16.mxu0 %v1879
        %2679 = vmatpush2.bf16.msra.mxu0 %v1878
        %2680 = vmatprep.subr.bf16.mxu0 %v1875
        %2681 = vmatpush2.bf16.msra.mxu0 %v1874
        %2682 = vmatprep.subr.bf16.mxu0 %v1871
        %2683 = vmatpush2.bf16.msra.mxu0 %v1870
        %2684 = vmatprep.subr.bf16.mxu0 %v1867
        %2685 = vmatpush2.bf16.msra.mxu0 %v1866
        %2686 = vmatprep.subr.bf16.mxu0 %v1863
        %2687 = vmatpush2.bf16.msra.mxu0 %v1862
        %2688 = vmatprep.subr.bf16.mxu0 %v1859
        %2689 = vmatpush2.bf16.msra.mxu0 %v1858
        %2690 = vmatprep.mubr.bf16.mxu0 %v783
        %2691 = vmatmul.mubr.bf16.gmra.mxu0 %v782
        %v2692 = vpop.f32.mrf.mxu0
        %v2693 = vadd.f32 %v2650, %v2692
        %v2694 = vpop.f32.mrf.mxu0
        %v2695 = vadd.f32 %v2652, %v2694
        %v2696 = vpop.f32.mrf.mxu0
        %v2697 = vadd.f32 %v2654, %v2696
        %v2698 = vpop.f32.mrf.mxu0
        %v2699 = vadd.f32 %v2656, %v2698
        %2700 = vdwg.mxu0
        %2701 = vmatprep.subr.bf16.mxu0 %v1919
        %2702 = vmatpush1.bf16.msra.mxu0 %v1918
        %2703 = vmatprep.subr.bf16.mxu0 %v1915
        %2704 = vmatpush1.bf16.msra.mxu0 %v1914
        %2705 = vmatprep.subr.bf16.mxu0 %v1911
        %2706 = vmatpush1.bf16.msra.mxu0 %v1910
        %2707 = vmatprep.subr.bf16.mxu0 %v1907
        %2708 = vmatpush1.bf16.msra.mxu0 %v1906
        %2709 = vmatprep.subr.bf16.mxu0 %v1903
        %2710 = vmatpush1.bf16.msra.mxu0 %v1902
        %2711 = vmatprep.subr.bf16.mxu0 %v1899
        %2712 = vmatpush1.bf16.msra.mxu0 %v1898
        %2713 = vmatprep.subr.bf16.mxu0 %v1895
        %2714 = vmatpush1.bf16.msra.mxu0 %v1894
        %2715 = vmatprep.subr.bf16.mxu0 %v1891
        %2716 = vmatpush1.bf16.msra.mxu0 %v1890
        %2717 = vmatprep.subr.bf16.mxu0 %v1951
        %2718 = vmatpush2.bf16.msra.mxu0 %v1950
        %2719 = vmatprep.subr.bf16.mxu0 %v1947
        %2720 = vmatpush2.bf16.msra.mxu0 %v1946
        %2721 = vmatprep.subr.bf16.mxu0 %v1943
        %2722 = vmatpush2.bf16.msra.mxu0 %v1942
        %2723 = vmatprep.subr.bf16.mxu0 %v1939
        %2724 = vmatpush2.bf16.msra.mxu0 %v1938
        %2725 = vmatprep.subr.bf16.mxu0 %v1935
        %2726 = vmatpush2.bf16.msra.mxu0 %v1934
        %2727 = vmatprep.subr.bf16.mxu0 %v1931
        %2728 = vmatpush2.bf16.msra.mxu0 %v1930
        %2729 = vmatprep.subr.bf16.mxu0 %v1927
        %2730 = vmatpush2.bf16.msra.mxu0 %v1926
        %2731 = vmatprep.subr.bf16.mxu0 %v1923
        %2732 = vmatpush2.bf16.msra.mxu0 %v1922
        %2733 = vmatprep.mubr.bf16.mxu0 %v785
        %2734 = vmatmul.mubr.bf16.gmra.mxu0 %v784
        %v2735 = vpop.f32.mrf.mxu0
        %v2736 = vadd.f32 %v2693, %v2735
        %v2737 = vpop.f32.mrf.mxu0
        %v2738 = vadd.f32 %v2695, %v2737
        %v2739 = vpop.f32.mrf.mxu0
        %v2740 = vadd.f32 %v2697, %v2739
        %v2741 = vpop.f32.mrf.mxu0
        %v2742 = vadd.f32 %v2699, %v2741
        %2743 = vdwg.mxu0
        %2744 = vmatprep.subr.bf16.mxu0 %v1983
        %2745 = vmatpush1.bf16.msra.mxu0 %v1982
        %2746 = vmatprep.subr.bf16.mxu0 %v1979
        %2747 = vmatpush1.bf16.msra.mxu0 %v1978
        %2748 = vmatprep.subr.bf16.mxu0 %v1975
        %2749 = vmatpush1.bf16.msra.mxu0 %v1974
        %2750 = vmatprep.subr.bf16.mxu0 %v1971
        %2751 = vmatpush1.bf16.msra.mxu0 %v1970
        %2752 = vmatprep.subr.bf16.mxu0 %v1967
        %2753 = vmatpush1.bf16.msra.mxu0 %v1966
        %2754 = vmatprep.subr.bf16.mxu0 %v1963
        %2755 = vmatpush1.bf16.msra.mxu0 %v1962
        %2756 = vmatprep.subr.bf16.mxu0 %v1959
        %2757 = vmatpush1.bf16.msra.mxu0 %v1958
        %2758 = vmatprep.subr.bf16.mxu0 %v1955
        %2759 = vmatpush1.bf16.msra.mxu0 %v1954
        %2760 = vmatprep.subr.bf16.mxu0 %v2015
        %2761 = vmatpush2.bf16.msra.mxu0 %v2014
        %2762 = vmatprep.subr.bf16.mxu0 %v2011
        %2763 = vmatpush2.bf16.msra.mxu0 %v2010
        %2764 = vmatprep.subr.bf16.mxu0 %v2007
        %2765 = vmatpush2.bf16.msra.mxu0 %v2006
        %2766 = vmatprep.subr.bf16.mxu0 %v2003
        %2767 = vmatpush2.bf16.msra.mxu0 %v2002
        %2768 = vmatprep.subr.bf16.mxu0 %v1999
        %2769 = vmatpush2.bf16.msra.mxu0 %v1998
        %2770 = vmatprep.subr.bf16.mxu0 %v1995
        %2771 = vmatpush2.bf16.msra.mxu0 %v1994
        %2772 = vmatprep.subr.bf16.mxu0 %v1991
        %2773 = vmatpush2.bf16.msra.mxu0 %v1990
        %2774 = vmatprep.subr.bf16.mxu0 %v1987
        %2775 = vmatpush2.bf16.msra.mxu0 %v1986
        %2776 = vmatprep.mubr.bf16.mxu0 %v787
        %2777 = vmatmul.mubr.bf16.gmra.mxu0 %v786
        %v2778 = vpop.f32.mrf.mxu0
        %v2779 = vadd.f32 %v2736, %v2778
        %v2780 = vpop.f32.mrf.mxu0
        %v2781 = vadd.f32 %v2738, %v2780
        %v2782 = vpop.f32.mrf.mxu0
        %v2783 = vadd.f32 %v2740, %v2782
        %v2784 = vpop.f32.mrf.mxu0
        %v2785 = vadd.f32 %v2742, %v2784
        %2786 = vdwg.mxu0
        %2787 = vmatprep.subr.bf16.mxu0 %v2047
        %2788 = vmatpush1.bf16.msra.mxu0 %v2046
        %2789 = vmatprep.subr.bf16.mxu0 %v2043
        %2790 = vmatpush1.bf16.msra.mxu0 %v2042
        %2791 = vmatprep.subr.bf16.mxu0 %v2039
        %2792 = vmatpush1.bf16.msra.mxu0 %v2038
        %2793 = vmatprep.subr.bf16.mxu0 %v2035
        %2794 = vmatpush1.bf16.msra.mxu0 %v2034
        %2795 = vmatprep.subr.bf16.mxu0 %v2031
        %2796 = vmatpush1.bf16.msra.mxu0 %v2030
        %2797 = vmatprep.subr.bf16.mxu0 %v2027
        %2798 = vmatpush1.bf16.msra.mxu0 %v2026
        %2799 = vmatprep.subr.bf16.mxu0 %v2023
        %2800 = vmatpush1.bf16.msra.mxu0 %v2022
        %2801 = vmatprep.subr.bf16.mxu0 %v2019
        %2802 = vmatpush1.bf16.msra.mxu0 %v2018
        %2803 = vmatprep.subr.bf16.mxu0 %v2079
        %2804 = vmatpush2.bf16.msra.mxu0 %v2078
        %2805 = vmatprep.subr.bf16.mxu0 %v2075
        %2806 = vmatpush2.bf16.msra.mxu0 %v2074
        %2807 = vmatprep.subr.bf16.mxu0 %v2071
        %2808 = vmatpush2.bf16.msra.mxu0 %v2070
        %2809 = vmatprep.subr.bf16.mxu0 %v2067
        %2810 = vmatpush2.bf16.msra.mxu0 %v2066
        %2811 = vmatprep.subr.bf16.mxu0 %v2063
        %2812 = vmatpush2.bf16.msra.mxu0 %v2062
        %2813 = vmatprep.subr.bf16.mxu0 %v2059
        %2814 = vmatpush2.bf16.msra.mxu0 %v2058
        %2815 = vmatprep.subr.bf16.mxu0 %v2055
        %2816 = vmatpush2.bf16.msra.mxu0 %v2054
        %2817 = vmatprep.subr.bf16.mxu0 %v2051
        %2818 = vmatpush2.bf16.msra.mxu0 %v2050
        %2819 = vmatprep.mubr.bf16.mxu0 %v789
        %2820 = vmatmul.mubr.bf16.gmra.mxu0 %v788
        %v2821 = vpop.f32.mrf.mxu0
        %v2822 = vadd.f32 %v2779, %v2821
        %v2823 = vpop.f32.mrf.mxu0
        %v2824 = vadd.f32 %v2781, %v2823
        %v2825 = vpop.f32.mrf.mxu0
        %v2826 = vadd.f32 %v2783, %v2825
        %v2827 = vpop.f32.mrf.mxu0
        %v2828 = vadd.f32 %v2785, %v2827
        %2829 = vdwg.mxu0
        %v2830 = vadd.f32 %v412, %v2607
        %v2831 = vadd.f32 %v413, %v2609
        %v2832 = vadd.f32 %v414, %v2822
        %v2833 = vadd.f32 %v415, %v2824
        %v2834 = vadd.f32 %v416, %v2611
        %v2835 = vadd.f32 %v417, %v2613
        %v2836 = vadd.f32 %v418, %v2826
        %v2837 = vadd.f32 %v419, %v2828
        %2838 = vst [vmem:[#allocation2] sm:$0xff] %v2830
        %2839 = vst [vmem:[#allocation2 + $0x8] sm:$0xff] %v2831
        %2840 = vst [vmem:[#allocation2 + $0x10] sm:$0xff] %v2832
        %2841 = vst [vmem:[#allocation2 + $0x18] sm:$0xff] %v2833
        %2842 = vst [vmem:[#allocation2 + $0x20] sm:$0xff] %v2834
        %2843 = vst [vmem:[#allocation2 + $0x28] sm:$0xff] %v2835
        %2844 = vst [vmem:[#allocation2 + $0x30] sm:$0xff] %v2836
        %2845 = vst [vmem:[#allocation2 + $0x38] sm:$0xff] %v2837
        %p2846 = scmp.eq.s32.totalorder %s26, 4
        // Predicated region
        $region76: #{cnn_forward.7} parent=54 // pred_check
          %p2847 = pneg %p2846
        $region77: #{cnn_forward.7} parent=54 // pred_check_branch
          %2849 = sbr.rel (%p2847) target = $region79
        $region78: #{cnn_forward.7} parent=54 // pred_region
          %v2850 = vld [vmem:[#allocation2] sm:$0xff]
          %v2851 = vld [vmem:[#allocation2 + $0x8] sm:$0xff]
          %v2852 = vld [vmem:[#allocation2 + $0x10] sm:$0xff]
          %v2853 = vld [vmem:[#allocation2 + $0x18] sm:$0xff]
          %v2854 = vld [vmem:[#allocation2 + $0x20] sm:$0xff]
          %v2855 = vld [vmem:[#allocation2 + $0x28] sm:$0xff]
          %v2856 = vld [vmem:[#allocation2 + $0x30] sm:$0xff]
          %v2857 = vld [vmem:[#allocation2 + $0x38] sm:$0xff]
          %v2858 = vmax.f32 %v2850, 0.0
          %v2859 = vmax.f32 %v2851, 0.0
          %v2860 = vmax.f32 %v2852, 0.0
          %v2861 = vmax.f32 %v2853, 0.0
          %v2862 = vmax.f32 %v2854, 0.0
          %v2863 = vmax.f32 %v2855, 0.0
          %v2864 = vmax.f32 %v2856, 0.0
          %v2865 = vmax.f32 %v2857, 0.0
          %v2866 = vpack.c.bf16 %v2862, %v2858
          %v2867 = vpack.c.bf16 %v2863, %v2859
          %v2868 = vpack.c.bf16 %v2864, %v2860
          %v2869 = vpack.c.bf16 %v2865, %v2861
          %v2870 = vld [vmem:[%s324] sm:$0xf]
          %v2871 = vld [vmem:[%s324 + $0x4] sm:$0xf]
          %v2872 = vld [vmem:[%s324 + $0x8] sm:$0xf]
          %v2873 = vld [vmem:[%s324 + $0xc] sm:$0xf]
          %v2874 = vld [vmem:[%s324 + $0x10] sm:$0xf]
          %v2875 = vld [vmem:[%s324 + $0x14] sm:$0xf]
          %v2876 = vld [vmem:[%s324 + $0x18] sm:$0xf]
          %v2877 = vld [vmem:[%s324 + $0x1c] sm:$0xf]
          %v2878 = vld [vmem:[%s324 + $0x20] sm:$0xf]
          %v2879 = vld [vmem:[%s324 + $0x24] sm:$0xf]
          %v2880 = vld [vmem:[%s324 + $0x28] sm:$0xf]
          %v2881 = vld [vmem:[%s324 + $0x2c] sm:$0xf]
          %v2882 = vld [vmem:[%s324 + $0x30] sm:$0xf]
          %v2883 = vld [vmem:[%s324 + $0x34] sm:$0xf]
          %v2884 = vld [vmem:[%s324 + $0x38] sm:$0xf]
          %v2885 = vld [vmem:[%s324 + $0x3c] sm:$0xf]
          %v2886 = vld [vmem:[%s324 + $0x40] sm:$0xf]
          %v2887 = vld [vmem:[%s324 + $0x44] sm:$0xf]
          %v2888 = vld [vmem:[%s324 + $0x48] sm:$0xf]
          %v2889 = vld [vmem:[%s324 + $0x4c] sm:$0xf]
          %v2890 = vld [vmem:[%s324 + $0x50] sm:$0xf]
          %v2891 = vld [vmem:[%s324 + $0x54] sm:$0xf]
          %v2892 = vld [vmem:[%s324 + $0x58] sm:$0xf]
          %v2893 = vld [vmem:[%s324 + $0x5c] sm:$0xf]
          %v2894 = vld [vmem:[%s324 + $0x60] sm:$0xf]
          %v2895 = vld [vmem:[%s324 + $0x64] sm:$0xf]
          %v2896 = vld [vmem:[%s324 + $0x68] sm:$0xf]
          %v2897 = vld [vmem:[%s324 + $0x6c] sm:$0xf]
          %v2898 = vld [vmem:[%s324 + $0x70] sm:$0xf]
          %v2899 = vld [vmem:[%s324 + $0x74] sm:$0xf]
          %v2900 = vld [vmem:[%s324 + $0x78] sm:$0xf]
          %v2901 = vld [vmem:[%s324 + $0x7c] sm:$0xf]
          %v2902 = vld [vmem:[%s324 + $0x80] sm:$0xf]
          %v2903 = vld [vmem:[%s324 + $0x84] sm:$0xf]
          %v2904 = vld [vmem:[%s324 + $0x88] sm:$0xf]
          %v2905 = vld [vmem:[%s324 + $0x8c] sm:$0xf]
          %v2906 = vld [vmem:[%s324 + $0x90] sm:$0xf]
          %v2907 = vld [vmem:[%s324 + $0x94] sm:$0xf]
          %v2908 = vld [vmem:[%s324 + $0x98] sm:$0xf]
          %v2909 = vld [vmem:[%s324 + $0x9c] sm:$0xf]
          %v2910 = vld [vmem:[%s324 + $0xa0] sm:$0xf]
          %v2911 = vld [vmem:[%s324 + $0xa4] sm:$0xf]
          %v2912 = vld [vmem:[%s324 + $0xa8] sm:$0xf]
          %v2913 = vld [vmem:[%s324 + $0xac] sm:$0xf]
          %v2914 = vld [vmem:[%s324 + $0xb0] sm:$0xf]
          %v2915 = vld [vmem:[%s324 + $0xb4] sm:$0xf]
          %v2916 = vld [vmem:[%s324 + $0xb8] sm:$0xf]
          %v2917 = vld [vmem:[%s324 + $0xbc] sm:$0xf]
          %v2918 = vld [vmem:[%s324 + $0xc0] sm:$0xf]
          %v2919 = vld [vmem:[%s324 + $0xc4] sm:$0xf]
          %v2920 = vld [vmem:[%s324 + $0xc8] sm:$0xf]
          %v2921 = vld [vmem:[%s324 + $0xcc] sm:$0xf]
          %v2922 = vld [vmem:[%s324 + $0xd0] sm:$0xf]
          %v2923 = vld [vmem:[%s324 + $0xd4] sm:$0xf]
          %v2924 = vld [vmem:[%s324 + $0xd8] sm:$0xf]
          %v2925 = vld [vmem:[%s324 + $0xdc] sm:$0xf]
          %v2926 = vld [vmem:[%s324 + $0xe0] sm:$0xf]
          %v2927 = vld [vmem:[%s324 + $0xe4] sm:$0xf]
          %v2928 = vld [vmem:[%s324 + $0xe8] sm:$0xf]
          %v2929 = vld [vmem:[%s324 + $0xec] sm:$0xf]
          %v2930 = vld [vmem:[%s324 + $0xf0] sm:$0xf]
          %v2931 = vld [vmem:[%s324 + $0xf4] sm:$0xf]
          %v2932 = vld [vmem:[%s324 + $0xf8] sm:$0xf]
          %v2933 = vld [vmem:[%s324 + $0xfc] sm:$0xf]
          %v2998 = vunpack.c.l.b16 %v2870
          %v2999 = vunpack.c.l.b16 %v2871
          %v3000 = vunpack.c.l.b16 %v2872
          %v3001 = vunpack.c.l.b16 %v2873
          %v3002 = vunpack.c.l.b16 %v2874
          %v3003 = vunpack.c.l.b16 %v2875
          %v3004 = vunpack.c.l.b16 %v2876
          %v3005 = vunpack.c.l.b16 %v2877
          %v3006 = vunpack.c.l.b16 %v2878
          %v3007 = vunpack.c.l.b16 %v2879
          %v3008 = vunpack.c.l.b16 %v2880
          %v3009 = vunpack.c.l.b16 %v2881
          %v3010 = vunpack.c.l.b16 %v2882
          %v3011 = vunpack.c.l.b16 %v2883
          %v3012 = vunpack.c.l.b16 %v2884
          %v3013 = vunpack.c.l.b16 %v2885
          %v3014 = vunpack.c.l.b16 %v2886
          %v3015 = vunpack.c.l.b16 %v2887
          %v3016 = vunpack.c.l.b16 %v2888
          %v3017 = vunpack.c.l.b16 %v2889
          %v3018 = vunpack.c.l.b16 %v2890
          %v3019 = vunpack.c.l.b16 %v2891
          %v3020 = vunpack.c.l.b16 %v2892
          %v3021 = vunpack.c.l.b16 %v2893
          %v3022 = vunpack.c.l.b16 %v2894
          %v3023 = vunpack.c.l.b16 %v2895
          %v3024 = vunpack.c.l.b16 %v2896
          %v3025 = vunpack.c.l.b16 %v2897
          %v3026 = vunpack.c.l.b16 %v2898
          %v3027 = vunpack.c.l.b16 %v2899
          %v3028 = vunpack.c.l.b16 %v2900
          %v3029 = vunpack.c.l.b16 %v2901
          %v3030 = vunpack.c.l.b16 %v2902
          %v3031 = vunpack.c.l.b16 %v2903
          %v3032 = vunpack.c.l.b16 %v2904
          %v3033 = vunpack.c.l.b16 %v2905
          %v3034 = vunpack.c.l.b16 %v2906
          %v3035 = vunpack.c.l.b16 %v2907
          %v3036 = vunpack.c.l.b16 %v2908
          %v3037 = vunpack.c.l.b16 %v2909
          %v3038 = vunpack.c.l.b16 %v2910
          %v3039 = vunpack.c.l.b16 %v2911
          %v3040 = vunpack.c.l.b16 %v2912
          %v3041 = vunpack.c.l.b16 %v2913
          %v3042 = vunpack.c.l.b16 %v2914
          %v3043 = vunpack.c.l.b16 %v2915
          %v3044 = vunpack.c.l.b16 %v2916
          %v3045 = vunpack.c.l.b16 %v2917
          %v3046 = vunpack.c.l.b16 %v2918
          %v3047 = vunpack.c.l.b16 %v2919
          %v3048 = vunpack.c.l.b16 %v2920
          %v3049 = vunpack.c.l.b16 %v2921
          %v3050 = vunpack.c.l.b16 %v2922
          %v3051 = vunpack.c.l.b16 %v2923
          %v3052 = vunpack.c.l.b16 %v2924
          %v3053 = vunpack.c.l.b16 %v2925
          %v3054 = vunpack.c.l.b16 %v2926
          %v3055 = vunpack.c.l.b16 %v2927
          %v3056 = vunpack.c.l.b16 %v2928
          %v3057 = vunpack.c.l.b16 %v2929
          %v3058 = vunpack.c.l.b16 %v2930
          %v3059 = vunpack.c.l.b16 %v2931
          %v3060 = vunpack.c.l.b16 %v2932
          %v3061 = vunpack.c.l.b16 %v2933
          %v3062 = vpack.c.b16 %v2999, %v2998
          %v3063 = vpack.c.b16 %v3001, %v3000
          %v3064 = vpack.c.b16 %v3003, %v3002
          %v3065 = vpack.c.b16 %v3005, %v3004
          %v3066 = vpack.c.b16 %v3007, %v3006
          %v3067 = vpack.c.b16 %v3009, %v3008
          %v3068 = vpack.c.b16 %v3011, %v3010
          %v3069 = vpack.c.b16 %v3013, %v3012
          %v3070 = vpack.c.b16 %v3015, %v3014
          %v3071 = vpack.c.b16 %v3017, %v3016
          %v3072 = vpack.c.b16 %v3019, %v3018
          %v3073 = vpack.c.b16 %v3021, %v3020
          %v3074 = vpack.c.b16 %v3023, %v3022
          %v3075 = vpack.c.b16 %v3025, %v3024
          %v3076 = vpack.c.b16 %v3027, %v3026
          %v3077 = vpack.c.b16 %v3029, %v3028
          %v3078 = vpack.c.b16 %v3031, %v3030
          %v3079 = vpack.c.b16 %v3033, %v3032
          %v3080 = vpack.c.b16 %v3035, %v3034
          %v3081 = vpack.c.b16 %v3037, %v3036
          %v3082 = vpack.c.b16 %v3039, %v3038
          %v3083 = vpack.c.b16 %v3041, %v3040
          %v3084 = vpack.c.b16 %v3043, %v3042
          %v3085 = vpack.c.b16 %v3045, %v3044
          %v3086 = vpack.c.b16 %v3047, %v3046
          %v3087 = vpack.c.b16 %v3049, %v3048
          %v3088 = vpack.c.b16 %v3051, %v3050
          %v3089 = vpack.c.b16 %v3053, %v3052
          %v3090 = vpack.c.b16 %v3055, %v3054
          %v3091 = vpack.c.b16 %v3057, %v3056
          %v3092 = vpack.c.b16 %v3059, %v3058
          %v3093 = vpack.c.b16 %v3061, %v3060
          %3126 = vmatprep.subr.bf16.mxu0 0
          %3127 = vmatpush1.bf16.msra.mxu0 %v3069
          %3128 = vmatprep.subr.bf16.mxu0 0
          %3129 = vmatpush1.bf16.msra.mxu0 %v3068
          %3130 = vmatprep.subr.bf16.mxu0 0
          %3131 = vmatpush1.bf16.msra.mxu0 %v3067
          %3132 = vmatprep.subr.bf16.mxu0 0
          %3133 = vmatpush1.bf16.msra.mxu0 %v3066
          %3134 = vmatprep.subr.bf16.mxu0 0
          %3135 = vmatpush1.bf16.msra.mxu0 %v3065
          %3136 = vmatprep.subr.bf16.mxu0 0
          %3137 = vmatpush1.bf16.msra.mxu0 %v3064
          %3138 = vmatprep.subr.bf16.mxu0 0
          %3139 = vmatpush1.bf16.msra.mxu0 %v3063
          %3140 = vmatprep.subr.bf16.mxu0 0
          %3141 = vmatpush1.bf16.msra.mxu0 %v3062
          %3142 = vmatprep.subr.bf16.mxu0 0
          %3143 = vmatpush2.bf16.msra.mxu0 %v3077
          %3144 = vmatprep.subr.bf16.mxu0 0
          %3145 = vmatpush2.bf16.msra.mxu0 %v3076
          %3146 = vmatprep.subr.bf16.mxu0 0
          %3147 = vmatpush2.bf16.msra.mxu0 %v3075
          %3148 = vmatprep.subr.bf16.mxu0 0
          %3149 = vmatpush2.bf16.msra.mxu0 %v3074
          %3150 = vmatprep.subr.bf16.mxu0 0
          %3151 = vmatpush2.bf16.msra.mxu0 %v3073
          %3152 = vmatprep.subr.bf16.mxu0 0
          %3153 = vmatpush2.bf16.msra.mxu0 %v3072
          %3154 = vmatprep.subr.bf16.mxu0 0
          %3155 = vmatpush2.bf16.msra.mxu0 %v3071
          %3156 = vmatprep.subr.bf16.mxu0 0
          %3157 = vmatpush2.bf16.msra.mxu0 %v3070
          %3158 = vmatprep.mubr.bf16.mxu0 %v2867
          %3159 = vmatmul.mubr.bf16.gmra.mxu0 %v2866
          %v3160 = vpop.f32.mrf.mxu0
          %v3161 = vadd.f32 0.0, %v3160
          %v3162 = vpop.f32.mrf.mxu0
          %v3163 = vpop.f32.mrf.mxu0
          %v3164 = vadd.f32 0.0, %v3163
          %v3165 = vpop.f32.mrf.mxu0
          %3166 = vdwg.mxu0
          %3167 = vmatprep.subr.bf16.mxu0 0
          %3168 = vmatpush1.bf16.msra.mxu0 %v3085
          %3169 = vmatprep.subr.bf16.mxu0 0
          %3170 = vmatpush1.bf16.msra.mxu0 %v3084
          %3171 = vmatprep.subr.bf16.mxu0 0
          %3172 = vmatpush1.bf16.msra.mxu0 %v3083
          %3173 = vmatprep.subr.bf16.mxu0 0
          %3174 = vmatpush1.bf16.msra.mxu0 %v3082
          %3175 = vmatprep.subr.bf16.mxu0 0
          %3176 = vmatpush1.bf16.msra.mxu0 %v3081
          %3177 = vmatprep.subr.bf16.mxu0 0
          %3178 = vmatpush1.bf16.msra.mxu0 %v3080
          %3179 = vmatprep.subr.bf16.mxu0 0
          %3180 = vmatpush1.bf16.msra.mxu0 %v3079
          %3181 = vmatprep.subr.bf16.mxu0 0
          %3182 = vmatpush1.bf16.msra.mxu0 %v3078
          %3183 = vmatprep.subr.bf16.mxu0 0
          %3184 = vmatpush2.bf16.msra.mxu0 %v3093
          %3185 = vmatprep.subr.bf16.mxu0 0
          %3186 = vmatpush2.bf16.msra.mxu0 %v3092
          %3187 = vmatprep.subr.bf16.mxu0 0
          %3188 = vmatpush2.bf16.msra.mxu0 %v3091
          %3189 = vmatprep.subr.bf16.mxu0 0
          %3190 = vmatpush2.bf16.msra.mxu0 %v3090
          %3191 = vmatprep.subr.bf16.mxu0 0
          %3192 = vmatpush2.bf16.msra.mxu0 %v3089
          %3193 = vmatprep.subr.bf16.mxu0 0
          %3194 = vmatpush2.bf16.msra.mxu0 %v3088
          %3195 = vmatprep.subr.bf16.mxu0 0
          %3196 = vmatpush2.bf16.msra.mxu0 %v3087
          %3197 = vmatprep.subr.bf16.mxu0 0
          %3198 = vmatpush2.bf16.msra.mxu0 %v3086
          %3199 = vmatprep.mubr.bf16.mxu0 %v2869
          %3200 = vmatmul.mubr.bf16.gmra.mxu0 %v2868
          %v3201 = vpop.f32.mrf.mxu0
          %v3202 = vadd.f32 %v3161, %v3201
          %v3203 = vpop.f32.mrf.mxu0
          %v3204 = vpop.f32.mrf.mxu0
          %v3205 = vadd.f32 %v3164, %v3204
          %v3206 = vpop.f32.mrf.mxu0
          %3207 = vdwg.mxu0
          %3208 = vst [vmem:[%s372] sm:$0xff] %v3202
          %3209 = vst [vmem:[%s372 + $0x8] sm:$0xff] %v3205
        $region79: #{cnn_forward.7} parent=54 // pred_fallthru
          _
        %p3210 = scmp.lt.s32.totalorder %s25, 1
        %s3211 = scalar_select %p3210, %s25, 1
        %s3212 = smul.addr %s3211, 2
        %s3213 = smul.addr %s3212, 8
        %s3214 = scalar_lea.vmem %s4, %s3213
        // Predicated region
        $region80: #{cnn_forward.7} parent=54 // pred_check
          %p3215 = pneg %p157
        $region81: #{cnn_forward.7} parent=54 // pred_check_branch
          %3217 = sbr.rel (%p3215) target = $region83
        $region82: #{cnn_forward.7} parent=54 // pred_region
          _
        $region83: #{cnn_forward.7} parent=54 // pred_fallthru
          _
      $region55: #{cnn_forward.7} parent=5 // pred_fallthru
        _
      %p3218 = scmp.le.s32.totalorder 2, %s16
      // Predicated region
      $region84: #{cnn_forward.7} parent=5 // pred_check
        %p3219 = pneg %p3218
      $region85: #{cnn_forward.7} parent=5 // pred_check_branch
        %3221 = sbr.rel (%p3219) target = $region87
      $region86: #{cnn_forward.7} parent=5 // pred_region
        %s3222 = ssub.s32 %s16, 2
        // Predicated region
        $region88: #{cnn_forward.7} parent=86 // pred_check
          %p3223 = pneg %p163
        $region89: #{cnn_forward.7} parent=86 // pred_check_branch
          %3225 = sbr.rel (%p3223) target = $region91
        $region90: #{cnn_forward.7} parent=86 // pred_region
          %p3226 = scmp.lt.s32.totalorder %s27, 1
          %s3227 = scalar_select %p3226, %s27, 1
          %s3228 = smul.addr %s3227, 2
          %s3229 = smul.addr %s3228, 8
          %s3230 = scalar_lea.vmem %s4, %s3229
        $region91: #{cnn_forward.7} parent=86 // pred_fallthru
          _
      $region87: #{cnn_forward.7} parent=5 // pred_fallthru
        _
    $region6: #{cnn_forward.7} parent=1 // loop_footer
      %s20 = sadd.s32 1, %s16
    $region7: #{cnn_forward.7} parent=1 // loop_footer_branch
      %15 = sbr.rel target = $region3
    $region8: #{cnn_forward.7} parent=1 // loop_exit
      _
    %3231 = vsyncpa [#allocation5], 1
    %s3232 = scalar_lea.sflag [#allocation5], 1
    %3233 = vsyncpa %s3232, 1
    %3234 = vsyncpa [#allocation7], 1
    %s3235 = scalar_lea.sflag [#allocation7], 1
    %3236 = vsyncpa %s3235, 1

</llo_original>
